<compile_context>
chip_gen: v7x
topology: tpu7x:2x2x1
jax: 0.10.0
libtpu: 0.0.40
codegen_flags: <defaults>
</compile_context>

<pallas_src>
import functools
import math

import jax
import jax.numpy as jnp
from jax.experimental import pallas as pl
from jax.experimental.pallas import tpu as pltpu

DTYPE = jnp.float32            # activations / LN statistics / softmax math
WEIGHT_DTYPE = jnp.bfloat16    # MXU-native weight storage
# EUP approximate reciprocal in the softmax normalization: rows sum to ~1 (not exactly 1).
# Set to False for bit-faithful softmax division.
_SOFTMAX_APPROX_RECIP = True


@functools.lru_cache(maxsize=None)
def _vmem_limit_bytes():
    cap = 128 * 1024 * 1024
    try:
        cap = int(pltpu.get_tpu_info().vmem_capacity_bytes)
    except Exception:
        pass
    # ~half of physical VMEM, capped at 64 MiB: 64 MiB on v5e/v6e, 32 MiB on v7x (64 MiB / TC).
    return int(min(cap // 2, 64 * 1024 * 1024))


def _pick_tile(dim, pref, align):
    """Largest tile <= pref that divides dim and is a multiple of align; else the full dim."""
    if dim <= pref:
        return dim
    t = (pref // align) * align
    while t >= align:
        if dim % t == 0:
            return t
        t -= align
    return dim


# ----------------------------- Tiled linear (optional fused residual) -----------------------------

def _matmul_kernel(*refs, activation, fuse_residual, nk):
    if fuse_residual:
        x_ref, w_ref, b_ref, r_ref, o_ref, acc_ref = refs
    else:
        x_ref, w_ref, b_ref, o_ref, acc_ref = refs
        r_ref = None

    @pl.when(pl.program_id(2) == 0)
    def _():
        acc_ref[...] = jnp.zeros_like(acc_ref)

    acc_ref[...] += jnp.dot(x_ref[...].astype(jnp.bfloat16),
                            w_ref[...].astype(jnp.bfloat16),
                            preferred_element_type=jnp.float32)

    @pl.when(pl.program_id(2) == nk - 1)
    def _():
        acc = acc_ref[...] + b_ref[...].astype(jnp.float32)
        if activation == "relu":
            acc = jnp.maximum(acc, 0.0)
        if r_ref is not None:
            acc = acc + r_ref[...].astype(jnp.float32)
        o_ref[...] = acc.astype(o_ref.dtype)


def linear(x2d, w, b, *, activation=None, residual=None, tm=256, tn=1024, tk=512):
    """y = act(x2d @ w + b) [+ residual]; bf16 MXU operands, f32 accumulation, (M,N,K) tiling."""
    M, K = x2d.shape
    N = w.shape[1]
    tm = _pick_tile(M, tm, 8)
    tn = _pick_tile(N, tn, 128)
    tk = _pick_tile(K, tk, 128)
    nk = K // tk
    grid = (M // tm, N // tn, nk)

    in_specs = [
        pl.BlockSpec((tm, tk), lambda i, j, k: (i, k)),
        pl.BlockSpec((tk, tn), lambda i, j, k: (k, j)),
        pl.BlockSpec((1, tn), lambda i, j, k: (0, j)),
    ]
    args = [x2d, w, b.reshape(1, N)]
    if residual is not None:
        in_specs.append(pl.BlockSpec((tm, tn), lambda i, j, k: (i, j)))
        args.append(residual)

    flops = 2 * M * N * K
    bytes_accessed = 4 * (M * K + M * N + (M * N if residual is not None else 0)) + 2 * K * N

    return pl.pallas_call(
        functools.partial(_matmul_kernel, activation=activation,
                          fuse_residual=residual is not None, nk=nk),
        out_shape=jax.ShapeDtypeStruct((M, N), x2d.dtype),
        grid=grid,
        in_specs=in_specs,
        out_specs=pl.BlockSpec((tm, tn), lambda i, j, k: (i, j)),
        scratch_shapes=[pltpu.VMEM((tm, tn), jnp.float32)],
        compiler_params=pltpu.CompilerParams(
            dimension_semantics=("parallel", "parallel", "arbitrary"),
            vmem_limit_bytes=_vmem_limit_bytes()),
        cost_estimate=pl.CostEstimate(flops=flops, transcendentals=0,
                                      bytes_accessed=bytes_accessed),
    )(*args)


# ----------------------------- Fused LayerNorm + linear -----------------------------

def _ln_matmul_kernel(x_ref, g_ref, bt_ref, w_ref, b_ref, o_ref, xn_ref, *, activation, eps):
    # The normalized row is computed once per M-tile (j == 0) and cached in a bf16 VMEM
    # scratch; the N tiles (j > 0) reuse it. j is the innermost "arbitrary" grid axis.
    @pl.when(pl.program_id(1) == 0)
    def _():
        x = x_ref[...].astype(jnp.float32)
        mean = jnp.mean(x, axis=-1, keepdims=True)
        var = jnp.mean(jnp.square(x - mean), axis=-1, keepdims=True)
        xn = (x - mean) * jax.lax.rsqrt(var + eps)
        xn = xn * g_ref[...].astype(jnp.float32) + bt_ref[...].astype(jnp.float32)
        xn_ref[...] = xn.astype(xn_ref.dtype)

    acc = jnp.dot(xn_ref[...], w_ref[...].astype(jnp.bfloat16),
                  preferred_element_type=jnp.float32)
    acc = acc + b_ref[...].astype(jnp.float32)
    if activation == "relu":
        acc = jnp.maximum(acc, 0.0)
    o_ref[...] = acc.astype(o_ref.dtype)


def ln_linear(x2d, gamma, beta, w, b, *, activation=None, eps=1e-6, tm=256, tn=1024):
    """y = act(LayerNorm(x2d) @ w + b) with the LN fused into the GEMM (full K row per tile).

    TODO(synk): for very large d_model the LN statistics would need a two-pass split across
    K tiles; here the full (tm, K) row is kept resident, which is fine for typical d_model.
    """
    M, K = x2d.shape
    N = w.shape[1]
    tm = _pick_tile(M, tm, 16)
    tn = _pick_tile(N, tn, 128)
    grid = (M // tm, N // tn)
    flops = 2 * M * N * K + 8 * M * K
    bytes_accessed = 4 * (M * K + M * N + 2 * K + N) + 2 * K * N
    return pl.pallas_call(
        functools.partial(_ln_matmul_kernel, activation=activation, eps=eps),
        out_shape=jax.ShapeDtypeStruct((M, N), x2d.dtype),
        grid=grid,
        in_specs=[
            pl.BlockSpec((tm, K), lambda i, j: (i, 0)),
            pl.BlockSpec((1, K), lambda i, j: (0, 0)),
            pl.BlockSpec((1, K), lambda i, j: (0, 0)),
            pl.BlockSpec((K, tn), lambda i, j: (0, j)),
            pl.BlockSpec((1, tn), lambda i, j: (0, j)),
        ],
        out_specs=pl.BlockSpec((tm, tn), lambda i, j: (i, j)),
        scratch_shapes=[pltpu.VMEM((tm, K), jnp.bfloat16)],
        compiler_params=pltpu.CompilerParams(
            # j must run 0..N/tn-1 in order per i (scratch reuse), so it is "arbitrary".
            dimension_semantics=("parallel", "arbitrary"),
            vmem_limit_bytes=_vmem_limit_bytes()),
        cost_estimate=pl.CostEstimate(flops=flops, transcendentals=M,
                                      bytes_accessed=bytes_accessed),
    )(x2d, gamma.reshape(1, K), beta.reshape(1, K), w, b.reshape(1, N))


# ----------------------------- Standalone LayerNorm (final norm) -----------------------------

def _layernorm_kernel(x_ref, g_ref, b_ref, o_ref, *, eps):
    x = x_ref[...].astype(jnp.float32)
    mean = jnp.mean(x, axis=-1, keepdims=True)
    var = jnp.mean(jnp.square(x - mean), axis=-1, keepdims=True)
    inv = jax.lax.rsqrt(var + eps)
    o_ref[...] = ((x - mean) * inv * g_ref[...] + b_ref[...]).astype(o_ref.dtype)


def layer_norm_2d(x2d, gamma, beta, eps=1e-6, tm=512):
    M, D = x2d.shape
    tm = _pick_tile(M, tm, 8)
    return pl.pallas_call(
        functools.partial(_layernorm_kernel, eps=eps),
        out_shape=jax.ShapeDtypeStruct((M, D), x2d.dtype),
        grid=(M // tm,),
        in_specs=[
            pl.BlockSpec((tm, D), lambda i: (i, 0)),
            pl.BlockSpec((1, D), lambda i: (0, 0)),
            pl.BlockSpec((1, D), lambda i: (0, 0)),
        ],
        out_specs=pl.BlockSpec((tm, D), lambda i: (i, 0)),
        compiler_params=pltpu.CompilerParams(
            dimension_semantics=("parallel",),
            vmem_limit_bytes=_vmem_limit_bytes()),
        cost_estimate=pl.CostEstimate(flops=8 * M * D, transcendentals=M,
                                      bytes_accessed=4 * (2 * M * D + 2 * D)),
    )(x2d, gamma.reshape(1, D), beta.reshape(1, D))


# ----------------------------- Fused multi-head attention -----------------------------

def _mha_kernel(q_ref, k_ref, v_ref, mask_ref, o_ref, *,
                num_heads, scale, d_model, q_off, k_off, v_off):
    # Static column slices out of the fused projection slab(s); bf16 MXU operands, f32 softmax.
    q = q_ref[0, :, q_off:q_off + d_model].astype(jnp.bfloat16)   # (tq, D)
    k = k_ref[0, :, k_off:k_off + d_model].astype(jnp.bfloat16)   # (Sk, D)
    v = v_ref[0, :, v_off:v_off + d_model].astype(jnp.bfloat16)   # (Sk, D)
    # additive bias built in-kernel from the raw 0/1 mask (0 = keep -> 0, masked -> -1e9)
    bias = (mask_ref[0].astype(jnp.float32) - 1.0) * 1e9          # (tq, Sk)
    dk = d_model // num_heads
    contract = (((1,), (1,)), ((), ()))
    # TODO(synk): for dk that is a multiple of 128 this loop could be one batched dot_general
    # over heads; per-head direct stores keep the live vreg set to a single (tq, dk) result.
    for h in range(num_heads):
        sl = slice(h * dk, (h + 1) * dk)
        s = jax.lax.dot_general(q[:, sl], k[:, sl], contract,
                                preferred_element_type=jnp.float32)
        s = s * scale + bias
        s = s - jnp.max(s, axis=-1, keepdims=True)
        p = jnp.exp(s)
        denom = jnp.sum(p, axis=-1, keepdims=True)
        if _SOFTMAX_APPROX_RECIP:
            p = p * pl.reciprocal(denom, approx=True)
        else:
            p = p / denom
        o_ref[0, :, sl] = jnp.dot(p.astype(jnp.bfloat16), v[:, sl],
                                  preferred_element_type=jnp.float32).astype(o_ref.dtype)


def attention(q_slab, kv_slab, mask3, *, num_heads, d_model, q_off, k_off, v_off, tq=256):
    """Multi-head attention reading q/k/v directly out of fused projection slabs.

    q_slab: (B, Sq, Wq) with Q at columns [q_off, q_off+d_model).
    kv_slab: (B, Sk, Wkv) with K at [k_off, ...) and V at [v_off, ...).
    mask3: (B, Sq, Sk), 1 = keep, 0 = masked.
    """
    B, Sq, Wq = q_slab.shape
    Sk, Wkv = kv_slab.shape[1], kv_slab.shape[2]
    tq = _pick_tile(Sq, tq, 8)
    nq = Sq // tq
    dk = d_model // num_heads
    scale = 1.0 / math.sqrt(dk)

    lane_aligned = (d_model % 128 == 0 and q_off % d_model == 0
                    and k_off % d_model == 0 and v_off % d_model == 0)
    if lane_aligned:
        # BlockSpec picks the d_model-wide column block -> only the needed columns are DMA'd.
        qcb, kcb, vcb = q_off // d_model, k_off // d_model, v_off // d_model
        q_spec = pl.BlockSpec((1, tq, d_model), lambda b, qi: (b, qi, qcb))
        k_spec = pl.BlockSpec((1, Sk, d_model), lambda b, qi: (b, 0, kcb))
        v_spec = pl.BlockSpec((1, Sk, d_model), lambda b, qi: (b, 0, vcb))
        kq_off = kk_off = kv_off = 0
    else:
        # full-width blocks (last dim equals the array dim), static slice in-kernel
        q_spec = pl.BlockSpec((1, tq, Wq), lambda b, qi: (b, qi, 0))
        k_spec = pl.BlockSpec((1, Sk, Wkv), lambda b, qi: (b, 0, 0))
        v_spec = pl.BlockSpec((1, Sk, Wkv), lambda b, qi: (b, 0, 0))
        kq_off, kk_off, kv_off = q_off, k_off, v_off

    flops = 4 * B * Sq * Sk * d_model
    transcendentals = B * num_heads * Sq * Sk
    bytes_accessed = 4 * (B * Sq * Wq + B * Sk * Wkv + B * Sq * Sk + B * Sq * d_model)

    return pl.pallas_call(
        functools.partial(_mha_kernel, num_heads=num_heads, scale=scale, d_model=d_model,
                          q_off=kq_off, k_off=kk_off, v_off=kv_off),
        out_shape=jax.ShapeDtypeStruct((B, Sq, d_model), q_slab.dtype),
        grid=(B, nq),
        in_specs=[q_spec, k_spec, v_spec,
                  pl.BlockSpec((1, tq, Sk), lambda b, qi: (b, qi, 0))],
        out_specs=pl.BlockSpec((1, tq, d_model), lambda b, qi: (b, qi, 0)),
        compiler_params=pltpu.CompilerParams(
            dimension_semantics=("parallel", "parallel"),
            vmem_limit_bytes=_vmem_limit_bytes()),
        cost_estimate=pl.CostEstimate(flops=flops, transcendentals=transcendentals,
                                      bytes_accessed=bytes_accessed),
    )(q_slab, kv_slab, kv_slab, mask3)


# ----------------------------- Model glue -----------------------------

def self_attention_block(p, ln_p, x2d, dec_mask, B, S, num_heads):
    D = x2d.shape[1]
    # fused LN + QKV projection: one GEMM over the concatenated (D, 3D) weight
    qkv3 = ln_linear(x2d, ln_p["gamma"], ln_p["beta"], p["w_qkv"], p["b_qkv"]).reshape(B, S, 3 * D)
    o = attention(qkv3, qkv3, dec_mask, num_heads=num_heads, d_model=D,
                  q_off=0, k_off=D, v_off=2 * D)
    # output projection with the residual add fused into the epilogue
    return linear(o.reshape(B * S, D), p["w_o"], p["b_o"], residual=x2d)


def cross_attention_block(p, ln_p, x2d, enc2d, enc_mask, B, Sq, Sk, num_heads):
    D = x2d.shape[1]
    q3 = ln_linear(x2d, ln_p["gamma"], ln_p["beta"], p["w_q"], p["b_q"]).reshape(B, Sq, D)
    kv3 = linear(enc2d, p["w_kv"], p["b_kv"]).reshape(B, Sk, 2 * D)   # fused K|V projection
    o = attention(q3, kv3, enc_mask, num_heads=num_heads, d_model=D,
                  q_off=0, k_off=0, v_off=D)
    return linear(o.reshape(B * Sq, D), p["w_o"], p["b_o"], residual=x2d)


def ffn_block(p, ln_p, x2d):
    h = ln_linear(x2d, ln_p["gamma"], ln_p["beta"], p["w1"], p["b1"], activation="relu")
    return linear(h, p["w2"], p["b2"], residual=x2d)


def decoder_forward(params, x, encoder_output, encoder_mask, decoder_mask, num_heads):
    B, Sq, D = x.shape
    Sk = encoder_output.shape[1]
    x2d = x.reshape(B * Sq, D)
    enc2d = encoder_output.reshape(B * Sk, D)
    # raw 0/1 masks are passed straight to the attention kernels (bias built in-kernel)
    for p in params["layers"]:
        x2d = self_attention_block(p["self_attn"], p["ln1"], x2d, decoder_mask, B, Sq, num_heads)
        x2d = cross_attention_block(p["cross_attn"], p["ln2"], x2d, enc2d, encoder_mask,
                                    B, Sq, Sk, num_heads)
        x2d = ffn_block(p["ffn"], p["ln3"], x2d)
    out2d = layer_norm_2d(x2d, params["norm"]["gamma"], params["norm"]["beta"])
    return out2d.reshape(B, Sq, D)


# ----------------------------- Deterministic init -----------------------------

def _dense(key, fan_in, fan_out):
    w = (jax.random.normal(key, (fan_in, fan_out), DTYPE) * 0.02).astype(WEIGHT_DTYPE)
    b = jnp.zeros((fan_out,), DTYPE)
    return w, b


def _self_attn_params(key, d_model):
    kq, kk, kv, ko = jax.random.split(key, 4)
    wq, bq = _dense(kq, d_model, d_model)
    wk, bk = _dense(kk, d_model, d_model)
    wv, bv = _dense(kv, d_model, d_model)
    wo, bo = _dense(ko, d_model, d_model)
    return {"w_qkv": jnp.concatenate([wq, wk, wv], axis=1),
            "b_qkv": jnp.concatenate([bq, bk, bv], axis=0),
            "w_o": wo, "b_o": bo}


def _cross_attn_params(key, d_model):
    kq, kk, kv, ko = jax.random.split(key, 4)
    wq, bq = _dense(kq, d_model, d_model)
    wk, bk = _dense(kk, d_model, d_model)
    wv, bv = _dense(kv, d_model, d_model)
    wo, bo = _dense(ko, d_model, d_model)
    return {"w_q": wq, "b_q": bq,
            "w_kv": jnp.concatenate([wk, wv], axis=1),
            "b_kv": jnp.concatenate([bk, bv], axis=0),
            "w_o": wo, "b_o": bo}


def _ln_params(d_model):
    return {"gamma": jnp.ones((d_model,), DTYPE), "beta": jnp.zeros((d_model,), DTYPE)}


def init_params(key, num_layers, d_model, d_ff):
    layers = []
    for _ in range(num_layers):
        k_sa, k_ca, k_f1, k_f2, key = jax.random.split(key, 5)
        w1, b1 = _dense(k_f1, d_model, d_ff)
        w2, b2 = _dense(k_f2, d_ff, d_model)
        layers.append({
            "self_attn": _self_attn_params(k_sa, d_model),
            "cross_attn": _cross_attn_params(k_ca, d_model),
            "ffn": {"w1": w1, "b1": b1, "w2": w2, "b2": b2},
            "ln1": _ln_params(d_model),
            "ln2": _ln_params(d_model),
            "ln3": _ln_params(d_model),
        })
    return {"layers": layers, "norm": _ln_params(d_model)}


# ----------------------------- Main -----------------------------

if __name__ == "__main__":
    B, S_DEC, S_ENC, D_MODEL, N_HEADS, D_FF, N_LAYERS = 2, 8, 8, 32, 4, 64, 2

    key = jax.random.PRNGKey(0)
    kx, ke, kp = jax.random.split(key, 3)

    x = jax.random.normal(kx, (B, S_DEC, D_MODEL), DTYPE)
    encoder_output = jax.random.normal(ke, (B, S_ENC, D_MODEL), DTYPE)
    # decoder_mask: causal; encoder_mask: no padding (all ones). 1 = keep, 0 = masked.
    decoder_mask = jnp.broadcast_to(
        jnp.tril(jnp.ones((S_DEC, S_DEC), DTYPE))[None], (B, S_DEC, S_DEC))
    encoder_mask = jnp.ones((B, S_DEC, S_ENC), DTYPE)

    params = init_params(kp, N_LAYERS, D_MODEL, D_FF)

    fwd = jax.jit(functools.partial(decoder_forward, num_heads=N_HEADS))
    out = fwd(params, x, encoder_output, encoder_mask, decoder_mask)
    out = jax.block_until_ready(out)
    assert out.shape == (B, S_DEC, D_MODEL)
    assert bool(jnp.all(jnp.isfinite(out)))
    print("KERNEL_OK")
</pallas_src>

<mosaic_0001>
module attributes {stable_mosaic.version = 11 : i64} {
  func.func @_matmul_kernel(%arg0: i32, %arg1: i32, %arg2: i32, %arg3: memref<16x32xf32, #tpu.memory_space<vmem>>, %arg4: memref<32x32xbf16, #tpu.memory_space<vmem>>, %arg5: memref<1x32xf32, #tpu.memory_space<vmem>>, %arg6: memref<16x32xf32, #tpu.memory_space<vmem>>, %arg7: memref<16x32xf32, #tpu.memory_space<vmem>>, %arg8: memref<16x32xf32, #tpu.memory_space<vmem>>) attributes {dimension_semantics = [#tpu.dimension_semantics<parallel>, #tpu.dimension_semantics<parallel>, #tpu.dimension_semantics<arbitrary>], iteration_bounds = array<i64: 1, 1, 1>, scalar_prefetch = 0 : i64, scratch_operands = 1 : i64, tpu.core_type = #tpu.core_type<tc>, window_params = [{transform_indices = @transform_0, window_bounds = array<i64: 16, 32>}, {transform_indices = @transform_1, window_bounds = array<i64: 32, 32>}, {transform_indices = @transform_2, window_bounds = array<i64: 1, 32>}, {transform_indices = @transform_3, window_bounds = array<i64: 16, 32>}, {transform_indices = @transform_4, window_bounds = array<i64: 16, 32>}]} {
    %c0_i32 = arith.constant 0 : i32
    %0 = arith.cmpi eq, %arg2, %c0_i32 : i32
    %1 = arith.extui %0 : i1 to i32
    %c0_i32_0 = arith.constant 0 : i32
    %2 = arith.cmpi ne, %1, %c0_i32_0 : i32
    scf.if %2 {
      %cst_10 = arith.constant 0.000000e+00 : f32
      %13 = vector.broadcast %cst_10 : f32 to vector<16x32xf32>
      %c0_11 = arith.constant 0 : index
      %c0_12 = arith.constant 0 : index
      %14 = vector.load %arg8[%c0_11, %c0_12] : memref<16x32xf32, #tpu.memory_space<vmem>>, vector<16x32xf32>
      tpu.vector_store %arg8[%c0_11, %c0_12], %13 {strides = array<i32>} : memref<16x32xf32, #tpu.memory_space<vmem>>, vector<16x32xf32>,
    } else {
    }
    %c0 = arith.constant 0 : index
    %c0_1 = arith.constant 0 : index
    %3 = vector.load %arg8[%c0, %c0_1] : memref<16x32xf32, #tpu.memory_space<vmem>>, vector<16x32xf32>
    %c0_2 = arith.constant 0 : index
    %c0_3 = arith.constant 0 : index
    %4 = vector.load %arg3[%c0_2, %c0_3] : memref<16x32xf32, #tpu.memory_space<vmem>>, vector<16x32xf32>
    %5 = arith.truncf %4 : vector<16x32xf32> to vector<16x32xbf16>
    %c0_4 = arith.constant 0 : index
    %c0_5 = arith.constant 0 : index
    %6 = vector.load %arg4[%c0_4, %c0_5] : memref<32x32xbf16, #tpu.memory_space<vmem>>, vector<32x32xbf16>
    %cst = arith.constant dense<0.000000e+00> : vector<16x32xf32>
    %7 = tpu.matmul %5, %6, %cst {dimension_numbers = #tpu.dot_dimension_numbers<[1], [0], [0], [1], [0, 0, 1, 1], [], []>} : vector<16x32xbf16>, vector<32x32xbf16>, vector<16x32xf32> -> vector<16x32xf32>
    %8 = arith.addf %3, %7 : vector<16x32xf32>
    %c0_6 = arith.constant 0 : index
    %c0_7 = arith.constant 0 : index
    %9 = vector.load %arg8[%c0_6, %c0_7] : memref<16x32xf32, #tpu.memory_space<vmem>>, vector<16x32xf32>
    tpu.vector_store %arg8[%c0_6, %c0_7], %8 {strides = array<i32>} : memref<16x32xf32, #tpu.memory_space<vmem>>, vector<16x32xf32>,
    %c0_i32_8 = arith.constant 0 : i32
    %10 = arith.cmpi eq, %arg2, %c0_i32_8 : i32
    %11 = arith.extui %10 : i1 to i32
    %c0_i32_9 = arith.constant 0 : i32
    %12 = arith.cmpi ne, %11, %c0_i32_9 : i32
    scf.if %12 {
      %c0_10 = arith.constant 0 : index
      %c0_11 = arith.constant 0 : index
      %13 = vector.load %arg8[%c0_10, %c0_11] : memref<16x32xf32, #tpu.memory_space<vmem>>, vector<16x32xf32>
      %c0_12 = arith.constant 0 : index
      %c0_13 = arith.constant 0 : index
      %14 = vector.load %arg5[%c0_12, %c0_13] : memref<1x32xf32, #tpu.memory_space<vmem>>, vector<1x32xf32>
      %15 = vector.broadcast %14 : vector<1x32xf32> to vector<16x32xf32>
      %16 = arith.addf %13, %15 : vector<16x32xf32>
      %c0_14 = arith.constant 0 : index
      %c0_15 = arith.constant 0 : index
      %17 = vector.load %arg6[%c0_14, %c0_15] : memref<16x32xf32, #tpu.memory_space<vmem>>, vector<16x32xf32>
      %18 = arith.addf %16, %17 : vector<16x32xf32>
      %c0_16 = arith.constant 0 : index
      %c0_17 = arith.constant 0 : index
      %19 = vector.load %arg7[%c0_16, %c0_17] : memref<16x32xf32, #tpu.memory_space<vmem>>, vector<16x32xf32>
      tpu.vector_store %arg7[%c0_16, %c0_17], %18 {strides = array<i32>} : memref<16x32xf32, #tpu.memory_space<vmem>>, vector<16x32xf32>,
    } else {
    }
    return
  }
  func.func @transform_0(%arg0: i32, %arg1: i32, %arg2: i32) -> (i32, i32) {
    %c0_i32 = arith.constant 0 : i32
    return %arg0, %arg2 : i32, i32
  }
  func.func @transform_1(%arg0: i32, %arg1: i32, %arg2: i32) -> (i32, i32) {
    %c0_i32 = arith.constant 0 : i32
    return %arg2, %arg1 : i32, i32
  }
  func.func @transform_2(%arg0: i32, %arg1: i32, %arg2: i32) -> (i32, i32) {
    %c0_i32 = arith.constant 0 : i32
    %c0_i32_0 = arith.constant 0 : i32
    return %c0_i32, %arg1 : i32, i32
  }
  func.func @transform_3(%arg0: i32, %arg1: i32, %arg2: i32) -> (i32, i32) {
    %c0_i32 = arith.constant 0 : i32
    return %arg0, %arg1 : i32, i32
  }
  func.func @transform_4(%arg0: i32, %arg1: i32, %arg2: i32) -> (i32, i32) {
    %c0_i32 = arith.constant 0 : i32
    return %arg0, %arg1 : i32, i32
  }
}

module attributes {stable_mosaic.version = 11 : i64} {
  func.func @_mha_kernel(%arg0: i32, %arg1: i32, %arg2: memref<1x8x96xf32, #tpu.memory_space<vmem>>, %arg3: memref<1x8x96xf32, #tpu.memory_space<vmem>>, %arg4: memref<1x8x96xf32, #tpu.memory_space<vmem>>, %arg5: memref<1x8x8xf32, #tpu.memory_space<vmem>>, %arg6: memref<1x8x32xf32, #tpu.memory_space<vmem>>) attributes {dimension_semantics = [#tpu.dimension_semantics<parallel>, #tpu.dimension_semantics<parallel>], iteration_bounds = array<i64: 2, 1>, scalar_prefetch = 0 : i64, scratch_operands = 0 : i64, tpu.core_type = #tpu.core_type<tc>, window_params = [{transform_indices = @transform_0, window_bounds = array<i64: 1, 8, 96>}, {transform_indices = @transform_1, window_bounds = array<i64: 1, 8, 96>}, {transform_indices = @transform_2, window_bounds = array<i64: 1, 8, 96>}, {transform_indices = @transform_3, window_bounds = array<i64: 1, 8, 8>}, {transform_indices = @transform_4, window_bounds = array<i64: 1, 8, 32>}]} {
    %c0 = arith.constant 0 : index
    %c0_0 = arith.constant 0 : index
    %c0_1 = arith.constant 0 : index
    %0 = vector.load %arg2[%c0, %c0_0, %c0_1] : memref<1x8x96xf32, #tpu.memory_space<vmem>>, vector<1x8x32xf32>
    %1 = vector.shape_cast %0 : vector<1x8x32xf32> to vector<8x32xf32>
    %2 = arith.truncf %1 : vector<8x32xf32> to vector<8x32xbf16>
    %c0_2 = arith.constant 0 : index
    %c0_3 = arith.constant 0 : index
    %c32 = arith.constant 32 : index
    %3 = vector.load %arg3[%c0_2, %c0_3, %c32] : memref<1x8x96xf32, #tpu.memory_space<vmem>>, vector<1x8x32xf32>
    %4 = vector.shape_cast %3 : vector<1x8x32xf32> to vector<8x32xf32>
    %5 = arith.truncf %4 : vector<8x32xf32> to vector<8x32xbf16>
    %c0_4 = arith.constant 0 : index
    %c0_5 = arith.constant 0 : index
    %c64 = arith.constant 64 : index
    %6 = vector.load %arg4[%c0_4, %c0_5, %c64] : memref<1x8x96xf32, #tpu.memory_space<vmem>>, vector<1x8x32xf32>
    %7 = vector.shape_cast %6 : vector<1x8x32xf32> to vector<8x32xf32>
    %8 = arith.truncf %7 : vector<8x32xf32> to vector<8x32xbf16>
    %c0_6 = arith.constant 0 : index
    %c0_7 = arith.constant 0 : index
    %c0_8 = arith.constant 0 : index
    %9 = vector.load %arg5[%c0_6, %c0_7, %c0_8] : memref<1x8x8xf32, #tpu.memory_space<vmem>>, vector<1x8x8xf32>
    %10 = vector.shape_cast %9 : vector<1x8x8xf32> to vector<8x8xf32>
    %cst = arith.constant 1.000000e+00 : f32
    %11 = vector.broadcast %cst : f32 to vector<8x8xf32>
    %12 = arith.subf %10, %11 : vector<8x8xf32>
    %cst_9 = arith.constant 1.000000e+09 : f32
    %13 = vector.broadcast %cst_9 : f32 to vector<8x8xf32>
    %14 = arith.mulf %12, %13 : vector<8x8xf32>
    %15 = vector.extract_strided_slice %2 {offsets = [0, 0], sizes = [8, 8], strides = [1, 1]} : vector<8x32xbf16> to vector<8x8xbf16>
    %16 = vector.extract_strided_slice %5 {offsets = [0, 0], sizes = [8, 8], strides = [1, 1]} : vector<8x32xbf16> to vector<8x8xbf16>
    %cst_10 = arith.constant dense<0.000000e+00> : vector<8x8xf32>
    %17 = tpu.matmul %15, %16, %cst_10 {dimension_numbers = #tpu.dot_dimension_numbers<[1], [1], [0], [0], [0, 0, 1, 0], [], []>} : vector<8x8xbf16>, vector<8x8xbf16>, vector<8x8xf32> -> vector<8x8xf32>
    %cst_11 = arith.constant 0.353553385 : f32
    %18 = vector.broadcast %cst_11 : f32 to vector<8x8xf32>
    %19 = arith.mulf %17, %18 : vector<8x8xf32>
    %20 = arith.addf %19, %14 : vector<8x8xf32>
    %cst_12 = arith.constant dense<0xFF800000> : vector<8xf32>
    %21 = vector.multi_reduction <maximumf>, %20, %cst_12 [1] : vector<8x8xf32> to vector<8xf32>
    %22 = vector.shape_cast %21 : vector<8xf32> to vector<8x1xf32>
    %23 = vector.broadcast %22 : vector<8x1xf32> to vector<8x8xf32>
    %24 = arith.subf %20, %23 : vector<8x8xf32>
    %25 = math.exp %24 : vector<8x8xf32>
    %cst_13 = arith.constant dense<0.000000e+00> : vector<8xf32>
    %26 = vector.multi_reduction <add>, %25, %cst_13 [1] : vector<8x8xf32> to vector<8xf32>
    %27 = vector.shape_cast %26 : vector<8xf32> to vector<8x1xf32>
    %28 = tpu.reciprocal %27 {approx = true} : vector<8x1xf32> -> vector<8x1xf32>
    %29 = vector.broadcast %28 : vector<8x1xf32> to vector<8x8xf32>
    %30 = arith.mulf %25, %29 : vector<8x8xf32>
    %31 = arith.truncf %30 : vector<8x8xf32> to vector<8x8xbf16>
    %32 = vector.extract_strided_slice %8 {offsets = [0, 0], sizes = [8, 8], strides = [1, 1]} : vector<8x32xbf16> to vector<8x8xbf16>
    %cst_14 = arith.constant dense<0.000000e+00> : vector<8x8xf32>
    %33 = tpu.matmul %31, %32, %cst_14 {dimension_numbers = #tpu.dot_dimension_numbers<[1], [0], [0], [1], [0, 0, 1, 1], [], []>} : vector<8x8xbf16>, vector<8x8xbf16>, vector<8x8xf32> -> vector<8x8xf32>
    %c0_15 = arith.constant 0 : index
    %c0_16 = arith.constant 0 : index
    %c0_17 = arith.constant 0 : index
    %34 = vector.load %arg6[%c0_15, %c0_16, %c0_17] : memref<1x8x32xf32, #tpu.memory_space<vmem>>, vector<1x8x8xf32>
    %35 = vector.shape_cast %34 : vector<1x8x8xf32> to vector<8x8xf32>
    %36 = vector.shape_cast %33 : vector<8x8xf32> to vector<1x8x8xf32>
    tpu.vector_store %arg6[%c0_15, %c0_16, %c0_17], %36 {strides = array<i32>} : memref<1x8x32xf32, #tpu.memory_space<vmem>>, vector<1x8x8xf32>,
    %37 = vector.extract_strided_slice %2 {offsets = [0, 8], sizes = [8, 8], strides = [1, 1]} : vector<8x32xbf16> to vector<8x8xbf16>
    %38 = vector.extract_strided_slice %5 {offsets = [0, 8], sizes = [8, 8], strides = [1, 1]} : vector<8x32xbf16> to vector<8x8xbf16>
    %cst_18 = arith.constant dense<0.000000e+00> : vector<8x8xf32>
    %39 = tpu.matmul %37, %38, %cst_18 {dimension_numbers = #tpu.dot_dimension_numbers<[1], [1], [0], [0], [0, 0, 1, 0], [], []>} : vector<8x8xbf16>, vector<8x8xbf16>, vector<8x8xf32> -> vector<8x8xf32>
    %cst_19 = arith.constant 0.353553385 : f32
    %40 = vector.broadcast %cst_19 : f32 to vector<8x8xf32>
    %41 = arith.mulf %39, %40 : vector<8x8xf32>
    %42 = arith.addf %41, %14 : vector<8x8xf32>
    %cst_20 = arith.constant dense<0xFF800000> : vector<8xf32>
    %43 = vector.multi_reduction <maximumf>, %42, %cst_20 [1] : vector<8x8xf32> to vector<8xf32>
    %44 = vector.shape_cast %43 : vector<8xf32> to vector<8x1xf32>
    %45 = vector.broadcast %44 : vector<8x1xf32> to vector<8x8xf32>
    %46 = arith.subf %42, %45 : vector<8x8xf32>
    %47 = math.exp %46 : vector<8x8xf32>
    %cst_21 = arith.constant dense<0.000000e+00> : vector<8xf32>
    %48 = vector.multi_reduction <add>, %47, %cst_21 [1] : vector<8x8xf32> to vector<8xf32>
    %49 = vector.shape_cast %48 : vector<8xf32> to vector<8x1xf32>
    %50 = tpu.reciprocal %49 {approx = true} : vector<8x1xf32> -> vector<8x1xf32>
    %51 = vector.broadcast %50 : vector<8x1xf32> to vector<8x8xf32>
    %52 = arith.mulf %47, %51 : vector<8x8xf32>
    %53 = arith.truncf %52 : vector<8x8xf32> to vector<8x8xbf16>
    %54 = vector.extract_strided_slice %8 {offsets = [0, 8], sizes = [8, 8], strides = [1, 1]} : vector<8x32xbf16> to vector<8x8xbf16>
    %cst_22 = arith.constant dense<0.000000e+00> : vector<8x8xf32>
    %55 = tpu.matmul %53, %54, %cst_22 {dimension_numbers = #tpu.dot_dimension_numbers<[1], [0], [0], [1], [0, 0, 1, 1], [], []>} : vector<8x8xbf16>, vector<8x8xbf16>, vector<8x8xf32> -> vector<8x8xf32>
    %c0_23 = arith.constant 0 : index
    %c0_24 = arith.constant 0 : index
    %c8 = arith.constant 8 : index
    %56 = vector.load %arg6[%c0_23, %c0_24, %c8] : memref<1x8x32xf32, #tpu.memory_space<vmem>>, vector<1x8x8xf32>
    %57 = vector.shape_cast %56 : vector<1x8x8xf32> to vector<8x8xf32>
    %58 = vector.shape_cast %55 : vector<8x8xf32> to vector<1x8x8xf32>
    tpu.vector_store %arg6[%c0_23, %c0_24, %c8], %58 {strides = array<i32>} : memref<1x8x32xf32, #tpu.memory_space<vmem>>, vector<1x8x8xf32>,
    %59 = vector.extract_strided_slice %2 {offsets = [0, 16], sizes = [8, 8], strides = [1, 1]} : vector<8x32xbf16> to vector<8x8xbf16>
    %60 = vector.extract_strided_slice %5 {offsets = [0, 16], sizes = [8, 8], strides = [1, 1]} : vector<8x32xbf16> to vector<8x8xbf16>
    %cst_25 = arith.constant dense<0.000000e+00> : vector<8x8xf32>
    %61 = tpu.matmul %59, %60, %cst_25 {dimension_numbers = #tpu.dot_dimension_numbers<[1], [1], [0], [0], [0, 0, 1, 0], [], []>} : vector<8x8xbf16>, vector<8x8xbf16>, vector<8x8xf32> -> vector<8x8xf32>
    %cst_26 = arith.constant 0.353553385 : f32
    %62 = vector.broadcast %cst_26 : f32 to vector<8x8xf32>
    %63 = arith.mulf %61, %62 : vector<8x8xf32>
    %64 = arith.addf %63, %14 : vector<8x8xf32>
    %cst_27 = arith.constant dense<0xFF800000> : vector<8xf32>
    %65 = vector.multi_reduction <maximumf>, %64, %cst_27 [1] : vector<8x8xf32> to vector<8xf32>
    %66 = vector.shape_cast %65 : vector<8xf32> to vector<8x1xf32>
    %67 = vector.broadcast %66 : vector<8x1xf32> to vector<8x8xf32>
    %68 = arith.subf %64, %67 : vector<8x8xf32>
    %69 = math.exp %68 : vector<8x8xf32>
    %cst_28 = arith.constant dense<0.000000e+00> : vector<8xf32>
    %70 = vector.multi_reduction <add>, %69, %cst_28 [1] : vector<8x8xf32> to vector<8xf32>
    %71 = vector.shape_cast %70 : vector<8xf32> to vector<8x1xf32>
    %72 = tpu.reciprocal %71 {approx = true} : vector<8x1xf32> -> vector<8x1xf32>
    %73 = vector.broadcast %72 : vector<8x1xf32> to vector<8x8xf32>
    %74 = arith.mulf %69, %73 : vector<8x8xf32>
    %75 = arith.truncf %74 : vector<8x8xf32> to vector<8x8xbf16>
    %76 = vector.extract_strided_slice %8 {offsets = [0, 16], sizes = [8, 8], strides = [1, 1]} : vector<8x32xbf16> to vector<8x8xbf16>
    %cst_29 = arith.constant dense<0.000000e+00> : vector<8x8xf32>
    %77 = tpu.matmul %75, %76, %cst_29 {dimension_numbers = #tpu.dot_dimension_numbers<[1], [0], [0], [1], [0, 0, 1, 1], [], []>} : vector<8x8xbf16>, vector<8x8xbf16>, vector<8x8xf32> -> vector<8x8xf32>
    %c0_30 = arith.constant 0 : index
    %c0_31 = arith.constant 0 : index
    %c16 = arith.constant 16 : index
    %78 = vector.load %arg6[%c0_30, %c0_31, %c16] : memref<1x8x32xf32, #tpu.memory_space<vmem>>, vector<1x8x8xf32>
    %79 = vector.shape_cast %78 : vector<1x8x8xf32> to vector<8x8xf32>
    %80 = vector.shape_cast %77 : vector<8x8xf32> to vector<1x8x8xf32>
    tpu.vector_store %arg6[%c0_30, %c0_31, %c16], %80 {strides = array<i32>} : memref<1x8x32xf32, #tpu.memory_space<vmem>>, vector<1x8x8xf32>,
    %81 = vector.extract_strided_slice %2 {offsets = [0, 24], sizes = [8, 8], strides = [1, 1]} : vector<8x32xbf16> to vector<8x8xbf16>
    %82 = vector.extract_strided_slice %5 {offsets = [0, 24], sizes = [8, 8], strides = [1, 1]} : vector<8x32xbf16> to vector<8x8xbf16>
    %cst_32 = arith.constant dense<0.000000e+00> : vector<8x8xf32>
    %83 = tpu.matmul %81, %82, %cst_32 {dimension_numbers = #tpu.dot_dimension_numbers<[1], [1], [0], [0], [0, 0, 1, 0], [], []>} : vector<8x8xbf16>, vector<8x8xbf16>, vector<8x8xf32> -> vector<8x8xf32>
    %cst_33 = arith.constant 0.353553385 : f32
    %84 = vector.broadcast %cst_33 : f32 to vector<8x8xf32>
    %85 = arith.mulf %83, %84 : vector<8x8xf32>
    %86 = arith.addf %85, %14 : vector<8x8xf32>
    %cst_34 = arith.constant dense<0xFF800000> : vector<8xf32>
    %87 = vector.multi_reduction <maximumf>, %86, %cst_34 [1] : vector<8x8xf32> to vector<8xf32>
    %88 = vector.shape_cast %87 : vector<8xf32> to vector<8x1xf32>
    %89 = vector.broadcast %88 : vector<8x1xf32> to vector<8x8xf32>
    %90 = arith.subf %86, %89 : vector<8x8xf32>
    %91 = math.exp %90 : vector<8x8xf32>
    %cst_35 = arith.constant dense<0.000000e+00> : vector<8xf32>
    %92 = vector.multi_reduction <add>, %91, %cst_35 [1] : vector<8x8xf32> to vector<8xf32>
    %93 = vector.shape_cast %92 : vector<8xf32> to vector<8x1xf32>
    %94 = tpu.reciprocal %93 {approx = true} : vector<8x1xf32> -> vector<8x1xf32>
    %95 = vector.broadcast %94 : vector<8x1xf32> to vector<8x8xf32>
    %96 = arith.mulf %91, %95 : vector<8x8xf32>
    %97 = arith.truncf %96 : vector<8x8xf32> to vector<8x8xbf16>
    %98 = vector.extract_strided_slice %8 {offsets = [0, 24], sizes = [8, 8], strides = [1, 1]} : vector<8x32xbf16> to vector<8x8xbf16>
    %cst_36 = arith.constant dense<0.000000e+00> : vector<8x8xf32>
    %99 = tpu.matmul %97, %98, %cst_36 {dimension_numbers = #tpu.dot_dimension_numbers<[1], [0], [0], [1], [0, 0, 1, 1], [], []>} : vector<8x8xbf16>, vector<8x8xbf16>, vector<8x8xf32> -> vector<8x8xf32>
    %c0_37 = arith.constant 0 : index
    %c0_38 = arith.constant 0 : index
    %c24 = arith.constant 24 : index
    %100 = vector.load %arg6[%c0_37, %c0_38, %c24] : memref<1x8x32xf32, #tpu.memory_space<vmem>>, vector<1x8x8xf32>
    %101 = vector.shape_cast %100 : vector<1x8x8xf32> to vector<8x8xf32>
    %102 = vector.shape_cast %99 : vector<8x8xf32> to vector<1x8x8xf32>
    tpu.vector_store %arg6[%c0_37, %c0_38, %c24], %102 {strides = array<i32>} : memref<1x8x32xf32, #tpu.memory_space<vmem>>, vector<1x8x8xf32>,
    return
  }
  func.func @transform_0(%arg0: i32, %arg1: i32) -> (i32, i32, i32) {
    %c0_i32 = arith.constant 0 : i32
    %c0_i32_0 = arith.constant 0 : i32
    return %arg0, %arg1, %c0_i32 : i32, i32, i32
  }
  func.func @transform_1(%arg0: i32, %arg1: i32) -> (i32, i32, i32) {
    %c0_i32 = arith.constant 0 : i32
    %c0_i32_0 = arith.constant 0 : i32
    %c0_i32_1 = arith.constant 0 : i32
    return %arg0, %c0_i32, %c0_i32_0 : i32, i32, i32
  }
  func.func @transform_2(%arg0: i32, %arg1: i32) -> (i32, i32, i32) {
    %c0_i32 = arith.constant 0 : i32
    %c0_i32_0 = arith.constant 0 : i32
    %c0_i32_1 = arith.constant 0 : i32
    return %arg0, %c0_i32, %c0_i32_0 : i32, i32, i32
  }
  func.func @transform_3(%arg0: i32, %arg1: i32) -> (i32, i32, i32) {
    %c0_i32 = arith.constant 0 : i32
    %c0_i32_0 = arith.constant 0 : i32
    return %arg0, %arg1, %c0_i32 : i32, i32, i32
  }
  func.func @transform_4(%arg0: i32, %arg1: i32) -> (i32, i32, i32) {
    %c0_i32 = arith.constant 0 : i32
    %c0_i32_0 = arith.constant 0 : i32
    return %arg0, %arg1, %c0_i32 : i32, i32, i32
  }
}

module attributes {stable_mosaic.version = 11 : i64} {
  func.func @_ln_matmul_kernel(%arg0: i32, %arg1: i32, %arg2: memref<16x32xf32, #tpu.memory_space<vmem>>, %arg3: memref<1x32xf32, #tpu.memory_space<vmem>>, %arg4: memref<1x32xf32, #tpu.memory_space<vmem>>, %arg5: memref<32x32xbf16, #tpu.memory_space<vmem>>, %arg6: memref<1x32xf32, #tpu.memory_space<vmem>>, %arg7: memref<16x32xf32, #tpu.memory_space<vmem>>, %arg8: memref<16x32xbf16, #tpu.memory_space<vmem>>) attributes {dimension_semantics = [#tpu.dimension_semantics<parallel>, #tpu.dimension_semantics<arbitrary>], iteration_bounds = array<i64: 1, 1>, scalar_prefetch = 0 : i64, scratch_operands = 1 : i64, tpu.core_type = #tpu.core_type<tc>, window_params = [{transform_indices = @transform_0, window_bounds = array<i64: 16, 32>}, {pipeline_mode = #tpu.pipeline_mode<synchronous>, transform_indices = @transform_1, window_bounds = array<i64: 1, 32>}, {pipeline_mode = #tpu.pipeline_mode<synchronous>, transform_indices = @transform_2, window_bounds = array<i64: 1, 32>}, {transform_indices = @transform_3, window_bounds = array<i64: 32, 32>}, {transform_indices = @transform_4, window_bounds = array<i64: 1, 32>}, {transform_indices = @transform_5, window_bounds = array<i64: 16, 32>}]} {
    %c0_i32 = arith.constant 0 : i32
    %0 = arith.cmpi eq, %arg1, %c0_i32 : i32
    %1 = arith.extui %0 : i1 to i32
    %c0_i32_0 = arith.constant 0 : i32
    %2 = arith.cmpi ne, %1, %c0_i32_0 : i32
    scf.if %2 {
      %c0_8 = arith.constant 0 : index
      %c0_9 = arith.constant 0 : index
      %10 = vector.load %arg2[%c0_8, %c0_9] : memref<16x32xf32, #tpu.memory_space<vmem>>, vector<16x32xf32>
      %cst_10 = arith.constant dense<0.000000e+00> : vector<16xf32>
      %11 = vector.multi_reduction <add>, %10, %cst_10 [1] : vector<16x32xf32> to vector<16xf32>
      %12 = vector.shape_cast %11 : vector<16xf32> to vector<16x1xf32>
      %cst_11 = arith.constant 3.200000e+01 : f32
      %13 = vector.broadcast %cst_11 : f32 to vector<16x1xf32>
      %14 = arith.divf %12, %13 : vector<16x1xf32>
      %15 = vector.broadcast %14 : vector<16x1xf32> to vector<16x32xf32>
      %16 = arith.subf %10, %15 : vector<16x32xf32>
      %17 = arith.mulf %16, %16 : vector<16x32xf32>
      %cst_12 = arith.constant dense<0.000000e+00> : vector<16xf32>
      %18 = vector.multi_reduction <add>, %17, %cst_12 [1] : vector<16x32xf32> to vector<16xf32>
      %19 = vector.shape_cast %18 : vector<16xf32> to vector<16x1xf32>
      %cst_13 = arith.constant 3.200000e+01 : f32
      %20 = vector.broadcast %cst_13 : f32 to vector<16x1xf32>
      %21 = arith.divf %19, %20 : vector<16x1xf32>
      %22 = vector.broadcast %14 : vector<16x1xf32> to vector<16x32xf32>
      %23 = arith.subf %10, %22 : vector<16x32xf32>
      %cst_14 = arith.constant 9.99999997E-7 : f32
      %24 = vector.broadcast %cst_14 : f32 to vector<16x1xf32>
      %25 = arith.addf %21, %24 : vector<16x1xf32>
      %26 = math.rsqrt %25 : vector<16x1xf32>
      %27 = vector.broadcast %26 : vector<16x1xf32> to vector<16x32xf32>
      %28 = arith.mulf %23, %27 : vector<16x32xf32>
      %c0_15 = arith.constant 0 : index
      %c0_16 = arith.constant 0 : index
      %29 = vector.load %arg3[%c0_15, %c0_16] : memref<1x32xf32, #tpu.memory_space<vmem>>, vector<1x32xf32>
      %30 = vector.broadcast %29 : vector<1x32xf32> to vector<16x32xf32>
      %31 = arith.mulf %28, %30 : vector<16x32xf32>
      %c0_17 = arith.constant 0 : index
      %c0_18 = arith.constant 0 : index
      %32 = vector.load %arg4[%c0_17, %c0_18] : memref<1x32xf32, #tpu.memory_space<vmem>>, vector<1x32xf32>
      %33 = vector.broadcast %32 : vector<1x32xf32> to vector<16x32xf32>
      %34 = arith.addf %31, %33 : vector<16x32xf32>
      %35 = arith.truncf %34 : vector<16x32xf32> to vector<16x32xbf16>
      %c0_19 = arith.constant 0 : index
      %c0_20 = arith.constant 0 : index
      %36 = vector.load %arg8[%c0_19, %c0_20] : memref<16x32xbf16, #tpu.memory_space<vmem>>, vector<16x32xbf16>
      tpu.vector_store %arg8[%c0_19, %c0_20], %35 {strides = array<i32>} : memref<16x32xbf16, #tpu.memory_space<vmem>>, vector<16x32xbf16>,
    } else {
    }
    %c0 = arith.constant 0 : index
    %c0_1 = arith.constant 0 : index
    %3 = vector.load %arg8[%c0, %c0_1] : memref<16x32xbf16, #tpu.memory_space<vmem>>, vector<16x32xbf16>
    %c0_2 = arith.constant 0 : index
    %c0_3 = arith.constant 0 : index
    %4 = vector.load %arg5[%c0_2, %c0_3] : memref<32x32xbf16, #tpu.memory_space<vmem>>, vector<32x32xbf16>
    %cst = arith.constant dense<0.000000e+00> : vector<16x32xf32>
    %5 = tpu.matmul %3, %4, %cst {dimension_numbers = #tpu.dot_dimension_numbers<[1], [0], [0], [1], [0, 0, 1, 1], [], []>} : vector<16x32xbf16>, vector<32x32xbf16>, vector<16x32xf32> -> vector<16x32xf32>
    %c0_4 = arith.constant 0 : index
    %c0_5 = arith.constant 0 : index
    %6 = vector.load %arg6[%c0_4, %c0_5] : memref<1x32xf32, #tpu.memory_space<vmem>>, vector<1x32xf32>
    %7 = vector.broadcast %6 : vector<1x32xf32> to vector<16x32xf32>
    %8 = arith.addf %5, %7 : vector<16x32xf32>
    %c0_6 = arith.constant 0 : index
    %c0_7 = arith.constant 0 : index
    %9 = vector.load %arg7[%c0_6, %c0_7] : memref<16x32xf32, #tpu.memory_space<vmem>>, vector<16x32xf32>
    tpu.vector_store %arg7[%c0_6, %c0_7], %8 {strides = array<i32>} : memref<16x32xf32, #tpu.memory_space<vmem>>, vector<16x32xf32>,
    return
  }
  func.func @transform_0(%arg0: i32, %arg1: i32) -> (i32, i32) {
    %c0_i32 = arith.constant 0 : i32
    %c0_i32_0 = arith.constant 0 : i32
    return %arg0, %c0_i32 : i32, i32
  }
  func.func @transform_1(%arg0: i32, %arg1: i32) -> (i32, i32) {
    %c0_i32 = arith.constant 0 : i32
    %c0_i32_0 = arith.constant 0 : i32
    %c0_i32_1 = arith.constant 0 : i32
    return %c0_i32, %c0_i32_0 : i32, i32
  }
  func.func @transform_2(%arg0: i32, %arg1: i32) -> (i32, i32) {
    %c0_i32 = arith.constant 0 : i32
    %c0_i32_0 = arith.constant 0 : i32
    %c0_i32_1 = arith.constant 0 : i32
    return %c0_i32, %c0_i32_0 : i32, i32
  }
  func.func @transform_3(%arg0: i32, %arg1: i32) -> (i32, i32) {
    %c0_i32 = arith.constant 0 : i32
    %c0_i32_0 = arith.constant 0 : i32
    return %c0_i32, %arg1 : i32, i32
  }
  func.func @transform_4(%arg0: i32, %arg1: i32) -> (i32, i32) {
    %c0_i32 = arith.constant 0 : i32
    %c0_i32_0 = arith.constant 0 : i32
    return %c0_i32, %arg1 : i32, i32
  }
  func.func @transform_5(%arg0: i32, %arg1: i32) -> (i32, i32) {
    %c0_i32 = arith.constant 0 : i32
    return %arg0, %arg1 : i32, i32
  }
}

module attributes {stable_mosaic.version = 11 : i64} {
  func.func @_ln_matmul_kernel(%arg0: i32, %arg1: i32, %arg2: memref<16x32xf32, #tpu.memory_space<vmem>>, %arg3: memref<1x32xf32, #tpu.memory_space<vmem>>, %arg4: memref<1x32xf32, #tpu.memory_space<vmem>>, %arg5: memref<32x96xbf16, #tpu.memory_space<vmem>>, %arg6: memref<1x96xf32, #tpu.memory_space<vmem>>, %arg7: memref<16x96xf32, #tpu.memory_space<vmem>>, %arg8: memref<16x32xbf16, #tpu.memory_space<vmem>>) attributes {dimension_semantics = [#tpu.dimension_semantics<parallel>, #tpu.dimension_semantics<arbitrary>], iteration_bounds = array<i64: 1, 1>, scalar_prefetch = 0 : i64, scratch_operands = 1 : i64, tpu.core_type = #tpu.core_type<tc>, window_params = [{transform_indices = @transform_0, window_bounds = array<i64: 16, 32>}, {pipeline_mode = #tpu.pipeline_mode<synchronous>, transform_indices = @transform_1, window_bounds = array<i64: 1, 32>}, {pipeline_mode = #tpu.pipeline_mode<synchronous>, transform_indices = @transform_2, window_bounds = array<i64: 1, 32>}, {transform_indices = @transform_3, window_bounds = array<i64: 32, 96>}, {transform_indices = @transform_4, window_bounds = array<i64: 1, 96>}, {transform_indices = @transform_5, window_bounds = array<i64: 16, 96>}]} {
    %c0_i32 = arith.constant 0 : i32
    %0 = arith.cmpi eq, %arg1, %c0_i32 : i32
    %1 = arith.extui %0 : i1 to i32
    %c0_i32_0 = arith.constant 0 : i32
    %2 = arith.cmpi ne, %1, %c0_i32_0 : i32
    scf.if %2 {
      %c0_8 = arith.constant 0 : index
      %c0_9 = arith.constant 0 : index
      %10 = vector.load %arg2[%c0_8, %c0_9] : memref<16x32xf32, #tpu.memory_space<vmem>>, vector<16x32xf32>
      %cst_10 = arith.constant dense<0.000000e+00> : vector<16xf32>
      %11 = vector.multi_reduction <add>, %10, %cst_10 [1] : vector<16x32xf32> to vector<16xf32>
      %12 = vector.shape_cast %11 : vector<16xf32> to vector<16x1xf32>
      %cst_11 = arith.constant 3.200000e+01 : f32
      %13 = vector.broadcast %cst_11 : f32 to vector<16x1xf32>
      %14 = arith.divf %12, %13 : vector<16x1xf32>
      %15 = vector.broadcast %14 : vector<16x1xf32> to vector<16x32xf32>
      %16 = arith.subf %10, %15 : vector<16x32xf32>
      %17 = arith.mulf %16, %16 : vector<16x32xf32>
      %cst_12 = arith.constant dense<0.000000e+00> : vector<16xf32>
      %18 = vector.multi_reduction <add>, %17, %cst_12 [1] : vector<16x32xf32> to vector<16xf32>
      %19 = vector.shape_cast %18 : vector<16xf32> to vector<16x1xf32>
      %cst_13 = arith.constant 3.200000e+01 : f32
      %20 = vector.broadcast %cst_13 : f32 to vector<16x1xf32>
      %21 = arith.divf %19, %20 : vector<16x1xf32>
      %22 = vector.broadcast %14 : vector<16x1xf32> to vector<16x32xf32>
      %23 = arith.subf %10, %22 : vector<16x32xf32>
      %cst_14 = arith.constant 9.99999997E-7 : f32
      %24 = vector.broadcast %cst_14 : f32 to vector<16x1xf32>
      %25 = arith.addf %21, %24 : vector<16x1xf32>
      %26 = math.rsqrt %25 : vector<16x1xf32>
      %27 = vector.broadcast %26 : vector<16x1xf32> to vector<16x32xf32>
      %28 = arith.mulf %23, %27 : vector<16x32xf32>
      %c0_15 = arith.constant 0 : index
      %c0_16 = arith.constant 0 : index
      %29 = vector.load %arg3[%c0_15, %c0_16] : memref<1x32xf32, #tpu.memory_space<vmem>>, vector<1x32xf32>
      %30 = vector.broadcast %29 : vector<1x32xf32> to vector<16x32xf32>
      %31 = arith.mulf %28, %30 : vector<16x32xf32>
      %c0_17 = arith.constant 0 : index
      %c0_18 = arith.constant 0 : index
      %32 = vector.load %arg4[%c0_17, %c0_18] : memref<1x32xf32, #tpu.memory_space<vmem>>, vector<1x32xf32>
      %33 = vector.broadcast %32 : vector<1x32xf32> to vector<16x32xf32>
      %34 = arith.addf %31, %33 : vector<16x32xf32>
      %35 = arith.truncf %34 : vector<16x32xf32> to vector<16x32xbf16>
      %c0_19 = arith.constant 0 : index
      %c0_20 = arith.constant 0 : index
      %36 = vector.load %arg8[%c0_19, %c0_20] : memref<16x32xbf16, #tpu.memory_space<vmem>>, vector<16x32xbf16>
      tpu.vector_store %arg8[%c0_19, %c0_20], %35 {strides = array<i32>} : memref<16x32xbf16, #tpu.memory_space<vmem>>, vector<16x32xbf16>,
    } else {
    }
    %c0 = arith.constant 0 : index
    %c0_1 = arith.constant 0 : index
    %3 = vector.load %arg8[%c0, %c0_1] : memref<16x32xbf16, #tpu.memory_space<vmem>>, vector<16x32xbf16>
    %c0_2 = arith.constant 0 : index
    %c0_3 = arith.constant 0 : index
    %4 = vector.load %arg5[%c0_2, %c0_3] : memref<32x96xbf16, #tpu.memory_space<vmem>>, vector<32x96xbf16>
    %cst = arith.constant dense<0.000000e+00> : vector<16x96xf32>
    %5 = tpu.matmul %3, %4, %cst {dimension_numbers = #tpu.dot_dimension_numbers<[1], [0], [0], [1], [0, 0, 1, 1], [], []>} : vector<16x32xbf16>, vector<32x96xbf16>, vector<16x96xf32> -> vector<16x96xf32>
    %c0_4 = arith.constant 0 : index
    %c0_5 = arith.constant 0 : index
    %6 = vector.load %arg6[%c0_4, %c0_5] : memref<1x96xf32, #tpu.memory_space<vmem>>, vector<1x96xf32>
    %7 = vector.broadcast %6 : vector<1x96xf32> to vector<16x96xf32>
    %8 = arith.addf %5, %7 : vector<16x96xf32>
    %c0_6 = arith.constant 0 : index
    %c0_7 = arith.constant 0 : index
    %9 = vector.load %arg7[%c0_6, %c0_7] : memref<16x96xf32, #tpu.memory_space<vmem>>, vector<16x96xf32>
    tpu.vector_store %arg7[%c0_6, %c0_7], %8 {strides = array<i32>} : memref<16x96xf32, #tpu.memory_space<vmem>>, vector<16x96xf32>,
    return
  }
  func.func @transform_0(%arg0: i32, %arg1: i32) -> (i32, i32) {
    %c0_i32 = arith.constant 0 : i32
    %c0_i32_0 = arith.constant 0 : i32
    return %arg0, %c0_i32 : i32, i32
  }
  func.func @transform_1(%arg0: i32, %arg1: i32) -> (i32, i32) {
    %c0_i32 = arith.constant 0 : i32
    %c0_i32_0 = arith.constant 0 : i32
    %c0_i32_1 = arith.constant 0 : i32
    return %c0_i32, %c0_i32_0 : i32, i32
  }
  func.func @transform_2(%arg0: i32, %arg1: i32) -> (i32, i32) {
    %c0_i32 = arith.constant 0 : i32
    %c0_i32_0 = arith.constant 0 : i32
    %c0_i32_1 = arith.constant 0 : i32
    return %c0_i32, %c0_i32_0 : i32, i32
  }
  func.func @transform_3(%arg0: i32, %arg1: i32) -> (i32, i32) {
    %c0_i32 = arith.constant 0 : i32
    %c0_i32_0 = arith.constant 0 : i32
    return %c0_i32, %arg1 : i32, i32
  }
  func.func @transform_4(%arg0: i32, %arg1: i32) -> (i32, i32) {
    %c0_i32 = arith.constant 0 : i32
    %c0_i32_0 = arith.constant 0 : i32
    return %c0_i32, %arg1 : i32, i32
  }
  func.func @transform_5(%arg0: i32, %arg1: i32) -> (i32, i32) {
    %c0_i32 = arith.constant 0 : i32
    return %arg0, %arg1 : i32, i32
  }
}

module attributes {stable_mosaic.version = 11 : i64} {
  func.func @_ln_matmul_kernel(%arg0: i32, %arg1: i32, %arg2: memref<16x32xf32, #tpu.memory_space<vmem>>, %arg3: memref<1x32xf32, #tpu.memory_space<vmem>>, %arg4: memref<1x32xf32, #tpu.memory_space<vmem>>, %arg5: memref<32x64xbf16, #tpu.memory_space<vmem>>, %arg6: memref<1x64xf32, #tpu.memory_space<vmem>>, %arg7: memref<16x64xf32, #tpu.memory_space<vmem>>, %arg8: memref<16x32xbf16, #tpu.memory_space<vmem>>) attributes {dimension_semantics = [#tpu.dimension_semantics<parallel>, #tpu.dimension_semantics<arbitrary>], iteration_bounds = array<i64: 1, 1>, scalar_prefetch = 0 : i64, scratch_operands = 1 : i64, tpu.core_type = #tpu.core_type<tc>, window_params = [{transform_indices = @transform_0, window_bounds = array<i64: 16, 32>}, {pipeline_mode = #tpu.pipeline_mode<synchronous>, transform_indices = @transform_1, window_bounds = array<i64: 1, 32>}, {pipeline_mode = #tpu.pipeline_mode<synchronous>, transform_indices = @transform_2, window_bounds = array<i64: 1, 32>}, {transform_indices = @transform_3, window_bounds = array<i64: 32, 64>}, {transform_indices = @transform_4, window_bounds = array<i64: 1, 64>}, {transform_indices = @transform_5, window_bounds = array<i64: 16, 64>}]} {
    %c0_i32 = arith.constant 0 : i32
    %0 = arith.cmpi eq, %arg1, %c0_i32 : i32
    %1 = arith.extui %0 : i1 to i32
    %c0_i32_0 = arith.constant 0 : i32
    %2 = arith.cmpi ne, %1, %c0_i32_0 : i32
    scf.if %2 {
      %c0_9 = arith.constant 0 : index
      %c0_10 = arith.constant 0 : index
      %12 = vector.load %arg2[%c0_9, %c0_10] : memref<16x32xf32, #tpu.memory_space<vmem>>, vector<16x32xf32>
      %cst_11 = arith.constant dense<0.000000e+00> : vector<16xf32>
      %13 = vector.multi_reduction <add>, %12, %cst_11 [1] : vector<16x32xf32> to vector<16xf32>
      %14 = vector.shape_cast %13 : vector<16xf32> to vector<16x1xf32>
      %cst_12 = arith.constant 3.200000e+01 : f32
      %15 = vector.broadcast %cst_12 : f32 to vector<16x1xf32>
      %16 = arith.divf %14, %15 : vector<16x1xf32>
      %17 = vector.broadcast %16 : vector<16x1xf32> to vector<16x32xf32>
      %18 = arith.subf %12, %17 : vector<16x32xf32>
      %19 = arith.mulf %18, %18 : vector<16x32xf32>
      %cst_13 = arith.constant dense<0.000000e+00> : vector<16xf32>
      %20 = vector.multi_reduction <add>, %19, %cst_13 [1] : vector<16x32xf32> to vector<16xf32>
      %21 = vector.shape_cast %20 : vector<16xf32> to vector<16x1xf32>
      %cst_14 = arith.constant 3.200000e+01 : f32
      %22 = vector.broadcast %cst_14 : f32 to vector<16x1xf32>
      %23 = arith.divf %21, %22 : vector<16x1xf32>
      %24 = vector.broadcast %16 : vector<16x1xf32> to vector<16x32xf32>
      %25 = arith.subf %12, %24 : vector<16x32xf32>
      %cst_15 = arith.constant 9.99999997E-7 : f32
      %26 = vector.broadcast %cst_15 : f32 to vector<16x1xf32>
      %27 = arith.addf %23, %26 : vector<16x1xf32>
      %28 = math.rsqrt %27 : vector<16x1xf32>
      %29 = vector.broadcast %28 : vector<16x1xf32> to vector<16x32xf32>
      %30 = arith.mulf %25, %29 : vector<16x32xf32>
      %c0_16 = arith.constant 0 : index
      %c0_17 = arith.constant 0 : index
      %31 = vector.load %arg3[%c0_16, %c0_17] : memref<1x32xf32, #tpu.memory_space<vmem>>, vector<1x32xf32>
      %32 = vector.broadcast %31 : vector<1x32xf32> to vector<16x32xf32>
      %33 = arith.mulf %30, %32 : vector<16x32xf32>
      %c0_18 = arith.constant 0 : index
      %c0_19 = arith.constant 0 : index
      %34 = vector.load %arg4[%c0_18, %c0_19] : memref<1x32xf32, #tpu.memory_space<vmem>>, vector<1x32xf32>
      %35 = vector.broadcast %34 : vector<1x32xf32> to vector<16x32xf32>
      %36 = arith.addf %33, %35 : vector<16x32xf32>
      %37 = arith.truncf %36 : vector<16x32xf32> to vector<16x32xbf16>
      %c0_20 = arith.constant 0 : index
      %c0_21 = arith.constant 0 : index
      %38 = vector.load %arg8[%c0_20, %c0_21] : memref<16x32xbf16, #tpu.memory_space<vmem>>, vector<16x32xbf16>
      tpu.vector_store %arg8[%c0_20, %c0_21], %37 {strides = array<i32>} : memref<16x32xbf16, #tpu.memory_space<vmem>>, vector<16x32xbf16>,
    } else {
    }
    %c0 = arith.constant 0 : index
    %c0_1 = arith.constant 0 : index
    %3 = vector.load %arg8[%c0, %c0_1] : memref<16x32xbf16, #tpu.memory_space<vmem>>, vector<16x32xbf16>
    %c0_2 = arith.constant 0 : index
    %c0_3 = arith.constant 0 : index
    %4 = vector.load %arg5[%c0_2, %c0_3] : memref<32x64xbf16, #tpu.memory_space<vmem>>, vector<32x64xbf16>
    %cst = arith.constant dense<0.000000e+00> : vector<16x64xf32>
    %5 = tpu.matmul %3, %4, %cst {dimension_numbers = #tpu.dot_dimension_numbers<[1], [0], [0], [1], [0, 0, 1, 1], [], []>} : vector<16x32xbf16>, vector<32x64xbf16>, vector<16x64xf32> -> vector<16x64xf32>
    %c0_4 = arith.constant 0 : index
    %c0_5 = arith.constant 0 : index
    %6 = vector.load %arg6[%c0_4, %c0_5] : memref<1x64xf32, #tpu.memory_space<vmem>>, vector<1x64xf32>
    %7 = vector.broadcast %6 : vector<1x64xf32> to vector<16x64xf32>
    %8 = arith.addf %5, %7 : vector<16x64xf32>
    %cst_6 = arith.constant 0.000000e+00 : f32
    %9 = vector.broadcast %cst_6 : f32 to vector<16x64xf32>
    %10 = arith.maximumf %8, %9 : vector<16x64xf32>
    %c0_7 = arith.constant 0 : index
    %c0_8 = arith.constant 0 : index
    %11 = vector.load %arg7[%c0_7, %c0_8] : memref<16x64xf32, #tpu.memory_space<vmem>>, vector<16x64xf32>
    tpu.vector_store %arg7[%c0_7, %c0_8], %10 {strides = array<i32>} : memref<16x64xf32, #tpu.memory_space<vmem>>, vector<16x64xf32>,
    return
  }
  func.func @transform_0(%arg0: i32, %arg1: i32) -> (i32, i32) {
    %c0_i32 = arith.constant 0 : i32
    %c0_i32_0 = arith.constant 0 : i32
    return %arg0, %c0_i32 : i32, i32
  }
  func.func @transform_1(%arg0: i32, %arg1: i32) -> (i32, i32) {
    %c0_i32 = arith.constant 0 : i32
    %c0_i32_0 = arith.constant 0 : i32
    %c0_i32_1 = arith.constant 0 : i32
    return %c0_i32, %c0_i32_0 : i32, i32
  }
  func.func @transform_2(%arg0: i32, %arg1: i32) -> (i32, i32) {
    %c0_i32 = arith.constant 0 : i32
    %c0_i32_0 = arith.constant 0 : i32
    %c0_i32_1 = arith.constant 0 : i32
    return %c0_i32, %c0_i32_0 : i32, i32
  }
  func.func @transform_3(%arg0: i32, %arg1: i32) -> (i32, i32) {
    %c0_i32 = arith.constant 0 : i32
    %c0_i32_0 = arith.constant 0 : i32
    return %c0_i32, %arg1 : i32, i32
  }
  func.func @transform_4(%arg0: i32, %arg1: i32) -> (i32, i32) {
    %c0_i32 = arith.constant 0 : i32
    %c0_i32_0 = arith.constant 0 : i32
    return %c0_i32, %arg1 : i32, i32
  }
  func.func @transform_5(%arg0: i32, %arg1: i32) -> (i32, i32) {
    %c0_i32 = arith.constant 0 : i32
    return %arg0, %arg1 : i32, i32
  }
}

module attributes {stable_mosaic.version = 11 : i64} {
  func.func @_matmul_kernel(%arg0: i32, %arg1: i32, %arg2: i32, %arg3: memref<16x32xf32, #tpu.memory_space<vmem>>, %arg4: memref<32x64xbf16, #tpu.memory_space<vmem>>, %arg5: memref<1x64xf32, #tpu.memory_space<vmem>>, %arg6: memref<16x64xf32, #tpu.memory_space<vmem>>, %arg7: memref<16x64xf32, #tpu.memory_space<vmem>>) attributes {dimension_semantics = [#tpu.dimension_semantics<parallel>, #tpu.dimension_semantics<parallel>, #tpu.dimension_semantics<arbitrary>], iteration_bounds = array<i64: 1, 1, 1>, scalar_prefetch = 0 : i64, scratch_operands = 1 : i64, tpu.core_type = #tpu.core_type<tc>, window_params = [{transform_indices = @transform_0, window_bounds = array<i64: 16, 32>}, {transform_indices = @transform_1, window_bounds = array<i64: 32, 64>}, {transform_indices = @transform_2, window_bounds = array<i64: 1, 64>}, {transform_indices = @transform_3, window_bounds = array<i64: 16, 64>}]} {
    %c0_i32 = arith.constant 0 : i32
    %0 = arith.cmpi eq, %arg2, %c0_i32 : i32
    %1 = arith.extui %0 : i1 to i32
    %c0_i32_0 = arith.constant 0 : i32
    %2 = arith.cmpi ne, %1, %c0_i32_0 : i32
    scf.if %2 {
      %cst_10 = arith.constant 0.000000e+00 : f32
      %13 = vector.broadcast %cst_10 : f32 to vector<16x64xf32>
      %c0_11 = arith.constant 0 : index
      %c0_12 = arith.constant 0 : index
      %14 = vector.load %arg7[%c0_11, %c0_12] : memref<16x64xf32, #tpu.memory_space<vmem>>, vector<16x64xf32>
      tpu.vector_store %arg7[%c0_11, %c0_12], %13 {strides = array<i32>} : memref<16x64xf32, #tpu.memory_space<vmem>>, vector<16x64xf32>,
    } else {
    }
    %c0 = arith.constant 0 : index
    %c0_1 = arith.constant 0 : index
    %3 = vector.load %arg7[%c0, %c0_1] : memref<16x64xf32, #tpu.memory_space<vmem>>, vector<16x64xf32>
    %c0_2 = arith.constant 0 : index
    %c0_3 = arith.constant 0 : index
    %4 = vector.load %arg3[%c0_2, %c0_3] : memref<16x32xf32, #tpu.memory_space<vmem>>, vector<16x32xf32>
    %5 = arith.truncf %4 : vector<16x32xf32> to vector<16x32xbf16>
    %c0_4 = arith.constant 0 : index
    %c0_5 = arith.constant 0 : index
    %6 = vector.load %arg4[%c0_4, %c0_5] : memref<32x64xbf16, #tpu.memory_space<vmem>>, vector<32x64xbf16>
    %cst = arith.constant dense<0.000000e+00> : vector<16x64xf32>
    %7 = tpu.matmul %5, %6, %cst {dimension_numbers = #tpu.dot_dimension_numbers<[1], [0], [0], [1], [0, 0, 1, 1], [], []>} : vector<16x32xbf16>, vector<32x64xbf16>, vector<16x64xf32> -> vector<16x64xf32>
    %8 = arith.addf %3, %7 : vector<16x64xf32>
    %c0_6 = arith.constant 0 : index
    %c0_7 = arith.constant 0 : index
    %9 = vector.load %arg7[%c0_6, %c0_7] : memref<16x64xf32, #tpu.memory_space<vmem>>, vector<16x64xf32>
    tpu.vector_store %arg7[%c0_6, %c0_7], %8 {strides = array<i32>} : memref<16x64xf32, #tpu.memory_space<vmem>>, vector<16x64xf32>,
    %c0_i32_8 = arith.constant 0 : i32
    %10 = arith.cmpi eq, %arg2, %c0_i32_8 : i32
    %11 = arith.extui %10 : i1 to i32
    %c0_i32_9 = arith.constant 0 : i32
    %12 = arith.cmpi ne, %11, %c0_i32_9 : i32
    scf.if %12 {
      %c0_10 = arith.constant 0 : index
      %c0_11 = arith.constant 0 : index
      %13 = vector.load %arg7[%c0_10, %c0_11] : memref<16x64xf32, #tpu.memory_space<vmem>>, vector<16x64xf32>
      %c0_12 = arith.constant 0 : index
      %c0_13 = arith.constant 0 : index
      %14 = vector.load %arg5[%c0_12, %c0_13] : memref<1x64xf32, #tpu.memory_space<vmem>>, vector<1x64xf32>
      %15 = vector.broadcast %14 : vector<1x64xf32> to vector<16x64xf32>
      %16 = arith.addf %13, %15 : vector<16x64xf32>
      %c0_14 = arith.constant 0 : index
      %c0_15 = arith.constant 0 : index
      %17 = vector.load %arg6[%c0_14, %c0_15] : memref<16x64xf32, #tpu.memory_space<vmem>>, vector<16x64xf32>
      tpu.vector_store %arg6[%c0_14, %c0_15], %16 {strides = array<i32>} : memref<16x64xf32, #tpu.memory_space<vmem>>, vector<16x64xf32>,
    } else {
    }
    return
  }
  func.func @transform_0(%arg0: i32, %arg1: i32, %arg2: i32) -> (i32, i32) {
    %c0_i32 = arith.constant 0 : i32
    return %arg0, %arg2 : i32, i32
  }
  func.func @transform_1(%arg0: i32, %arg1: i32, %arg2: i32) -> (i32, i32) {
    %c0_i32 = arith.constant 0 : i32
    return %arg2, %arg1 : i32, i32
  }
  func.func @transform_2(%arg0: i32, %arg1: i32, %arg2: i32) -> (i32, i32) {
    %c0_i32 = arith.constant 0 : i32
    %c0_i32_0 = arith.constant 0 : i32
    return %c0_i32, %arg1 : i32, i32
  }
  func.func @transform_3(%arg0: i32, %arg1: i32, %arg2: i32) -> (i32, i32) {
    %c0_i32 = arith.constant 0 : i32
    return %arg0, %arg1 : i32, i32
  }
}

module attributes {stable_mosaic.version = 11 : i64} {
  func.func @_mha_kernel(%arg0: i32, %arg1: i32, %arg2: memref<1x8x32xf32, #tpu.memory_space<vmem>>, %arg3: memref<1x8x64xf32, #tpu.memory_space<vmem>>, %arg4: memref<1x8x64xf32, #tpu.memory_space<vmem>>, %arg5: memref<1x8x8xf32, #tpu.memory_space<vmem>>, %arg6: memref<1x8x32xf32, #tpu.memory_space<vmem>>) attributes {dimension_semantics = [#tpu.dimension_semantics<parallel>, #tpu.dimension_semantics<parallel>], iteration_bounds = array<i64: 2, 1>, scalar_prefetch = 0 : i64, scratch_operands = 0 : i64, tpu.core_type = #tpu.core_type<tc>, window_params = [{transform_indices = @transform_0, window_bounds = array<i64: 1, 8, 32>}, {transform_indices = @transform_1, window_bounds = array<i64: 1, 8, 64>}, {transform_indices = @transform_2, window_bounds = array<i64: 1, 8, 64>}, {transform_indices = @transform_3, window_bounds = array<i64: 1, 8, 8>}, {transform_indices = @transform_4, window_bounds = array<i64: 1, 8, 32>}]} {
    %c0 = arith.constant 0 : index
    %c0_0 = arith.constant 0 : index
    %c0_1 = arith.constant 0 : index
    %0 = vector.load %arg2[%c0, %c0_0, %c0_1] : memref<1x8x32xf32, #tpu.memory_space<vmem>>, vector<1x8x32xf32>
    %1 = vector.shape_cast %0 : vector<1x8x32xf32> to vector<8x32xf32>
    %2 = arith.truncf %1 : vector<8x32xf32> to vector<8x32xbf16>
    %c0_2 = arith.constant 0 : index
    %c0_3 = arith.constant 0 : index
    %c0_4 = arith.constant 0 : index
    %3 = vector.load %arg3[%c0_2, %c0_3, %c0_4] : memref<1x8x64xf32, #tpu.memory_space<vmem>>, vector<1x8x32xf32>
    %4 = vector.shape_cast %3 : vector<1x8x32xf32> to vector<8x32xf32>
    %5 = arith.truncf %4 : vector<8x32xf32> to vector<8x32xbf16>
    %c0_5 = arith.constant 0 : index
    %c0_6 = arith.constant 0 : index
    %c32 = arith.constant 32 : index
    %6 = vector.load %arg4[%c0_5, %c0_6, %c32] : memref<1x8x64xf32, #tpu.memory_space<vmem>>, vector<1x8x32xf32>
    %7 = vector.shape_cast %6 : vector<1x8x32xf32> to vector<8x32xf32>
    %8 = arith.truncf %7 : vector<8x32xf32> to vector<8x32xbf16>
    %c0_7 = arith.constant 0 : index
    %c0_8 = arith.constant 0 : index
    %c0_9 = arith.constant 0 : index
    %9 = vector.load %arg5[%c0_7, %c0_8, %c0_9] : memref<1x8x8xf32, #tpu.memory_space<vmem>>, vector<1x8x8xf32>
    %10 = vector.shape_cast %9 : vector<1x8x8xf32> to vector<8x8xf32>
    %cst = arith.constant 1.000000e+00 : f32
    %11 = vector.broadcast %cst : f32 to vector<8x8xf32>
    %12 = arith.subf %10, %11 : vector<8x8xf32>
    %cst_10 = arith.constant 1.000000e+09 : f32
    %13 = vector.broadcast %cst_10 : f32 to vector<8x8xf32>
    %14 = arith.mulf %12, %13 : vector<8x8xf32>
    %15 = vector.extract_strided_slice %2 {offsets = [0, 0], sizes = [8, 8], strides = [1, 1]} : vector<8x32xbf16> to vector<8x8xbf16>
    %16 = vector.extract_strided_slice %5 {offsets = [0, 0], sizes = [8, 8], strides = [1, 1]} : vector<8x32xbf16> to vector<8x8xbf16>
    %cst_11 = arith.constant dense<0.000000e+00> : vector<8x8xf32>
    %17 = tpu.matmul %15, %16, %cst_11 {dimension_numbers = #tpu.dot_dimension_numbers<[1], [1], [0], [0], [0, 0, 1, 0], [], []>} : vector<8x8xbf16>, vector<8x8xbf16>, vector<8x8xf32> -> vector<8x8xf32>
    %cst_12 = arith.constant 0.353553385 : f32
    %18 = vector.broadcast %cst_12 : f32 to vector<8x8xf32>
    %19 = arith.mulf %17, %18 : vector<8x8xf32>
    %20 = arith.addf %19, %14 : vector<8x8xf32>
    %cst_13 = arith.constant dense<0xFF800000> : vector<8xf32>
    %21 = vector.multi_reduction <maximumf>, %20, %cst_13 [1] : vector<8x8xf32> to vector<8xf32>
    %22 = vector.shape_cast %21 : vector<8xf32> to vector<8x1xf32>
    %23 = vector.broadcast %22 : vector<8x1xf32> to vector<8x8xf32>
    %24 = arith.subf %20, %23 : vector<8x8xf32>
    %25 = math.exp %24 : vector<8x8xf32>
    %cst_14 = arith.constant dense<0.000000e+00> : vector<8xf32>
    %26 = vector.multi_reduction <add>, %25, %cst_14 [1] : vector<8x8xf32> to vector<8xf32>
    %27 = vector.shape_cast %26 : vector<8xf32> to vector<8x1xf32>
    %28 = tpu.reciprocal %27 {approx = true} : vector<8x1xf32> -> vector<8x1xf32>
    %29 = vector.broadcast %28 : vector<8x1xf32> to vector<8x8xf32>
    %30 = arith.mulf %25, %29 : vector<8x8xf32>
    %31 = arith.truncf %30 : vector<8x8xf32> to vector<8x8xbf16>
    %32 = vector.extract_strided_slice %8 {offsets = [0, 0], sizes = [8, 8], strides = [1, 1]} : vector<8x32xbf16> to vector<8x8xbf16>
    %cst_15 = arith.constant dense<0.000000e+00> : vector<8x8xf32>
    %33 = tpu.matmul %31, %32, %cst_15 {dimension_numbers = #tpu.dot_dimension_numbers<[1], [0], [0], [1], [0, 0, 1, 1], [], []>} : vector<8x8xbf16>, vector<8x8xbf16>, vector<8x8xf32> -> vector<8x8xf32>
    %c0_16 = arith.constant 0 : index
    %c0_17 = arith.constant 0 : index
    %c0_18 = arith.constant 0 : index
    %34 = vector.load %arg6[%c0_16, %c0_17, %c0_18] : memref<1x8x32xf32, #tpu.memory_space<vmem>>, vector<1x8x8xf32>
    %35 = vector.shape_cast %34 : vector<1x8x8xf32> to vector<8x8xf32>
    %36 = vector.shape_cast %33 : vector<8x8xf32> to vector<1x8x8xf32>
    tpu.vector_store %arg6[%c0_16, %c0_17, %c0_18], %36 {strides = array<i32>} : memref<1x8x32xf32, #tpu.memory_space<vmem>>, vector<1x8x8xf32>,
    %37 = vector.extract_strided_slice %2 {offsets = [0, 8], sizes = [8, 8], strides = [1, 1]} : vector<8x32xbf16> to vector<8x8xbf16>
    %38 = vector.extract_strided_slice %5 {offsets = [0, 8], sizes = [8, 8], strides = [1, 1]} : vector<8x32xbf16> to vector<8x8xbf16>
    %cst_19 = arith.constant dense<0.000000e+00> : vector<8x8xf32>
    %39 = tpu.matmul %37, %38, %cst_19 {dimension_numbers = #tpu.dot_dimension_numbers<[1], [1], [0], [0], [0, 0, 1, 0], [], []>} : vector<8x8xbf16>, vector<8x8xbf16>, vector<8x8xf32> -> vector<8x8xf32>
    %cst_20 = arith.constant 0.353553385 : f32
    %40 = vector.broadcast %cst_20 : f32 to vector<8x8xf32>
    %41 = arith.mulf %39, %40 : vector<8x8xf32>
    %42 = arith.addf %41, %14 : vector<8x8xf32>
    %cst_21 = arith.constant dense<0xFF800000> : vector<8xf32>
    %43 = vector.multi_reduction <maximumf>, %42, %cst_21 [1] : vector<8x8xf32> to vector<8xf32>
    %44 = vector.shape_cast %43 : vector<8xf32> to vector<8x1xf32>
    %45 = vector.broadcast %44 : vector<8x1xf32> to vector<8x8xf32>
    %46 = arith.subf %42, %45 : vector<8x8xf32>
    %47 = math.exp %46 : vector<8x8xf32>
    %cst_22 = arith.constant dense<0.000000e+00> : vector<8xf32>
    %48 = vector.multi_reduction <add>, %47, %cst_22 [1] : vector<8x8xf32> to vector<8xf32>
    %49 = vector.shape_cast %48 : vector<8xf32> to vector<8x1xf32>
    %50 = tpu.reciprocal %49 {approx = true} : vector<8x1xf32> -> vector<8x1xf32>
    %51 = vector.broadcast %50 : vector<8x1xf32> to vector<8x8xf32>
    %52 = arith.mulf %47, %51 : vector<8x8xf32>
    %53 = arith.truncf %52 : vector<8x8xf32> to vector<8x8xbf16>
    %54 = vector.extract_strided_slice %8 {offsets = [0, 8], sizes = [8, 8], strides = [1, 1]} : vector<8x32xbf16> to vector<8x8xbf16>
    %cst_23 = arith.constant dense<0.000000e+00> : vector<8x8xf32>
    %55 = tpu.matmul %53, %54, %cst_23 {dimension_numbers = #tpu.dot_dimension_numbers<[1], [0], [0], [1], [0, 0, 1, 1], [], []>} : vector<8x8xbf16>, vector<8x8xbf16>, vector<8x8xf32> -> vector<8x8xf32>
    %c0_24 = arith.constant 0 : index
    %c0_25 = arith.constant 0 : index
    %c8 = arith.constant 8 : index
    %56 = vector.load %arg6[%c0_24, %c0_25, %c8] : memref<1x8x32xf32, #tpu.memory_space<vmem>>, vector<1x8x8xf32>
    %57 = vector.shape_cast %56 : vector<1x8x8xf32> to vector<8x8xf32>
    %58 = vector.shape_cast %55 : vector<8x8xf32> to vector<1x8x8xf32>
    tpu.vector_store %arg6[%c0_24, %c0_25, %c8], %58 {strides = array<i32>} : memref<1x8x32xf32, #tpu.memory_space<vmem>>, vector<1x8x8xf32>,
    %59 = vector.extract_strided_slice %2 {offsets = [0, 16], sizes = [8, 8], strides = [1, 1]} : vector<8x32xbf16> to vector<8x8xbf16>
    %60 = vector.extract_strided_slice %5 {offsets = [0, 16], sizes = [8, 8], strides = [1, 1]} : vector<8x32xbf16> to vector<8x8xbf16>
    %cst_26 = arith.constant dense<0.000000e+00> : vector<8x8xf32>
    %61 = tpu.matmul %59, %60, %cst_26 {dimension_numbers = #tpu.dot_dimension_numbers<[1], [1], [0], [0], [0, 0, 1, 0], [], []>} : vector<8x8xbf16>, vector<8x8xbf16>, vector<8x8xf32> -> vector<8x8xf32>
    %cst_27 = arith.constant 0.353553385 : f32
    %62 = vector.broadcast %cst_27 : f32 to vector<8x8xf32>
    %63 = arith.mulf %61, %62 : vector<8x8xf32>
    %64 = arith.addf %63, %14 : vector<8x8xf32>
    %cst_28 = arith.constant dense<0xFF800000> : vector<8xf32>
    %65 = vector.multi_reduction <maximumf>, %64, %cst_28 [1] : vector<8x8xf32> to vector<8xf32>
    %66 = vector.shape_cast %65 : vector<8xf32> to vector<8x1xf32>
    %67 = vector.broadcast %66 : vector<8x1xf32> to vector<8x8xf32>
    %68 = arith.subf %64, %67 : vector<8x8xf32>
    %69 = math.exp %68 : vector<8x8xf32>
    %cst_29 = arith.constant dense<0.000000e+00> : vector<8xf32>
    %70 = vector.multi_reduction <add>, %69, %cst_29 [1] : vector<8x8xf32> to vector<8xf32>
    %71 = vector.shape_cast %70 : vector<8xf32> to vector<8x1xf32>
    %72 = tpu.reciprocal %71 {approx = true} : vector<8x1xf32> -> vector<8x1xf32>
    %73 = vector.broadcast %72 : vector<8x1xf32> to vector<8x8xf32>
    %74 = arith.mulf %69, %73 : vector<8x8xf32>
    %75 = arith.truncf %74 : vector<8x8xf32> to vector<8x8xbf16>
    %76 = vector.extract_strided_slice %8 {offsets = [0, 16], sizes = [8, 8], strides = [1, 1]} : vector<8x32xbf16> to vector<8x8xbf16>
    %cst_30 = arith.constant dense<0.000000e+00> : vector<8x8xf32>
    %77 = tpu.matmul %75, %76, %cst_30 {dimension_numbers = #tpu.dot_dimension_numbers<[1], [0], [0], [1], [0, 0, 1, 1], [], []>} : vector<8x8xbf16>, vector<8x8xbf16>, vector<8x8xf32> -> vector<8x8xf32>
    %c0_31 = arith.constant 0 : index
    %c0_32 = arith.constant 0 : index
    %c16 = arith.constant 16 : index
    %78 = vector.load %arg6[%c0_31, %c0_32, %c16] : memref<1x8x32xf32, #tpu.memory_space<vmem>>, vector<1x8x8xf32>
    %79 = vector.shape_cast %78 : vector<1x8x8xf32> to vector<8x8xf32>
    %80 = vector.shape_cast %77 : vector<8x8xf32> to vector<1x8x8xf32>
    tpu.vector_store %arg6[%c0_31, %c0_32, %c16], %80 {strides = array<i32>} : memref<1x8x32xf32, #tpu.memory_space<vmem>>, vector<1x8x8xf32>,
    %81 = vector.extract_strided_slice %2 {offsets = [0, 24], sizes = [8, 8], strides = [1, 1]} : vector<8x32xbf16> to vector<8x8xbf16>
    %82 = vector.extract_strided_slice %5 {offsets = [0, 24], sizes = [8, 8], strides = [1, 1]} : vector<8x32xbf16> to vector<8x8xbf16>
    %cst_33 = arith.constant dense<0.000000e+00> : vector<8x8xf32>
    %83 = tpu.matmul %81, %82, %cst_33 {dimension_numbers = #tpu.dot_dimension_numbers<[1], [1], [0], [0], [0, 0, 1, 0], [], []>} : vector<8x8xbf16>, vector<8x8xbf16>, vector<8x8xf32> -> vector<8x8xf32>
    %cst_34 = arith.constant 0.353553385 : f32
    %84 = vector.broadcast %cst_34 : f32 to vector<8x8xf32>
    %85 = arith.mulf %83, %84 : vector<8x8xf32>
    %86 = arith.addf %85, %14 : vector<8x8xf32>
    %cst_35 = arith.constant dense<0xFF800000> : vector<8xf32>
    %87 = vector.multi_reduction <maximumf>, %86, %cst_35 [1] : vector<8x8xf32> to vector<8xf32>
    %88 = vector.shape_cast %87 : vector<8xf32> to vector<8x1xf32>
    %89 = vector.broadcast %88 : vector<8x1xf32> to vector<8x8xf32>
    %90 = arith.subf %86, %89 : vector<8x8xf32>
    %91 = math.exp %90 : vector<8x8xf32>
    %cst_36 = arith.constant dense<0.000000e+00> : vector<8xf32>
    %92 = vector.multi_reduction <add>, %91, %cst_36 [1] : vector<8x8xf32> to vector<8xf32>
    %93 = vector.shape_cast %92 : vector<8xf32> to vector<8x1xf32>
    %94 = tpu.reciprocal %93 {approx = true} : vector<8x1xf32> -> vector<8x1xf32>
    %95 = vector.broadcast %94 : vector<8x1xf32> to vector<8x8xf32>
    %96 = arith.mulf %91, %95 : vector<8x8xf32>
    %97 = arith.truncf %96 : vector<8x8xf32> to vector<8x8xbf16>
    %98 = vector.extract_strided_slice %8 {offsets = [0, 24], sizes = [8, 8], strides = [1, 1]} : vector<8x32xbf16> to vector<8x8xbf16>
    %cst_37 = arith.constant dense<0.000000e+00> : vector<8x8xf32>
    %99 = tpu.matmul %97, %98, %cst_37 {dimension_numbers = #tpu.dot_dimension_numbers<[1], [0], [0], [1], [0, 0, 1, 1], [], []>} : vector<8x8xbf16>, vector<8x8xbf16>, vector<8x8xf32> -> vector<8x8xf32>
    %c0_38 = arith.constant 0 : index
    %c0_39 = arith.constant 0 : index
    %c24 = arith.constant 24 : index
    %100 = vector.load %arg6[%c0_38, %c0_39, %c24] : memref<1x8x32xf32, #tpu.memory_space<vmem>>, vector<1x8x8xf32>
    %101 = vector.shape_cast %100 : vector<1x8x8xf32> to vector<8x8xf32>
    %102 = vector.shape_cast %99 : vector<8x8xf32> to vector<1x8x8xf32>
    tpu.vector_store %arg6[%c0_38, %c0_39, %c24], %102 {strides = array<i32>} : memref<1x8x32xf32, #tpu.memory_space<vmem>>, vector<1x8x8xf32>,
    return
  }
  func.func @transform_0(%arg0: i32, %arg1: i32) -> (i32, i32, i32) {
    %c0_i32 = arith.constant 0 : i32
    %c0_i32_0 = arith.constant 0 : i32
    return %arg0, %arg1, %c0_i32 : i32, i32, i32
  }
  func.func @transform_1(%arg0: i32, %arg1: i32) -> (i32, i32, i32) {
    %c0_i32 = arith.constant 0 : i32
    %c0_i32_0 = arith.constant 0 : i32
    %c0_i32_1 = arith.constant 0 : i32
    return %arg0, %c0_i32, %c0_i32_0 : i32, i32, i32
  }
  func.func @transform_2(%arg0: i32, %arg1: i32) -> (i32, i32, i32) {
    %c0_i32 = arith.constant 0 : i32
    %c0_i32_0 = arith.constant 0 : i32
    %c0_i32_1 = arith.constant 0 : i32
    return %arg0, %c0_i32, %c0_i32_0 : i32, i32, i32
  }
  func.func @transform_3(%arg0: i32, %arg1: i32) -> (i32, i32, i32) {
    %c0_i32 = arith.constant 0 : i32
    %c0_i32_0 = arith.constant 0 : i32
    return %arg0, %arg1, %c0_i32 : i32, i32, i32
  }
  func.func @transform_4(%arg0: i32, %arg1: i32) -> (i32, i32, i32) {
    %c0_i32 = arith.constant 0 : i32
    %c0_i32_0 = arith.constant 0 : i32
    return %arg0, %arg1, %c0_i32 : i32, i32, i32
  }
}

module attributes {stable_mosaic.version = 11 : i64} {
  func.func @_matmul_kernel(%arg0: i32, %arg1: i32, %arg2: i32, %arg3: memref<16x64xf32, #tpu.memory_space<vmem>>, %arg4: memref<64x32xbf16, #tpu.memory_space<vmem>>, %arg5: memref<1x32xf32, #tpu.memory_space<vmem>>, %arg6: memref<16x32xf32, #tpu.memory_space<vmem>>, %arg7: memref<16x32xf32, #tpu.memory_space<vmem>>, %arg8: memref<16x32xf32, #tpu.memory_space<vmem>>) attributes {dimension_semantics = [#tpu.dimension_semantics<parallel>, #tpu.dimension_semantics<parallel>, #tpu.dimension_semantics<arbitrary>], iteration_bounds = array<i64: 1, 1, 1>, scalar_prefetch = 0 : i64, scratch_operands = 1 : i64, tpu.core_type = #tpu.core_type<tc>, window_params = [{transform_indices = @transform_0, window_bounds = array<i64: 16, 64>}, {transform_indices = @transform_1, window_bounds = array<i64: 64, 32>}, {transform_indices = @transform_2, window_bounds = array<i64: 1, 32>}, {transform_indices = @transform_3, window_bounds = array<i64: 16, 32>}, {transform_indices = @transform_4, window_bounds = array<i64: 16, 32>}]} {
    %c0_i32 = arith.constant 0 : i32
    %0 = arith.cmpi eq, %arg2, %c0_i32 : i32
    %1 = arith.extui %0 : i1 to i32
    %c0_i32_0 = arith.constant 0 : i32
    %2 = arith.cmpi ne, %1, %c0_i32_0 : i32
    scf.if %2 {
      %cst_10 = arith.constant 0.000000e+00 : f32
      %13 = vector.broadcast %cst_10 : f32 to vector<16x32xf32>
      %c0_11 = arith.constant 0 : index
      %c0_12 = arith.constant 0 : index
      %14 = vector.load %arg8[%c0_11, %c0_12] : memref<16x32xf32, #tpu.memory_space<vmem>>, vector<16x32xf32>
      tpu.vector_store %arg8[%c0_11, %c0_12], %13 {strides = array<i32>} : memref<16x32xf32, #tpu.memory_space<vmem>>, vector<16x32xf32>,
    } else {
    }
    %c0 = arith.constant 0 : index
    %c0_1 = arith.constant 0 : index
    %3 = vector.load %arg8[%c0, %c0_1] : memref<16x32xf32, #tpu.memory_space<vmem>>, vector<16x32xf32>
    %c0_2 = arith.constant 0 : index
    %c0_3 = arith.constant 0 : index
    %4 = vector.load %arg3[%c0_2, %c0_3] : memref<16x64xf32, #tpu.memory_space<vmem>>, vector<16x64xf32>
    %5 = arith.truncf %4 : vector<16x64xf32> to vector<16x64xbf16>
    %c0_4 = arith.constant 0 : index
    %c0_5 = arith.constant 0 : index
    %6 = vector.load %arg4[%c0_4, %c0_5] : memref<64x32xbf16, #tpu.memory_space<vmem>>, vector<64x32xbf16>
    %cst = arith.constant dense<0.000000e+00> : vector<16x32xf32>
    %7 = tpu.matmul %5, %6, %cst {dimension_numbers = #tpu.dot_dimension_numbers<[1], [0], [0], [1], [0, 0, 1, 1], [], []>} : vector<16x64xbf16>, vector<64x32xbf16>, vector<16x32xf32> -> vector<16x32xf32>
    %8 = arith.addf %3, %7 : vector<16x32xf32>
    %c0_6 = arith.constant 0 : index
    %c0_7 = arith.constant 0 : index
    %9 = vector.load %arg8[%c0_6, %c0_7] : memref<16x32xf32, #tpu.memory_space<vmem>>, vector<16x32xf32>
    tpu.vector_store %arg8[%c0_6, %c0_7], %8 {strides = array<i32>} : memref<16x32xf32, #tpu.memory_space<vmem>>, vector<16x32xf32>,
    %c0_i32_8 = arith.constant 0 : i32
    %10 = arith.cmpi eq, %arg2, %c0_i32_8 : i32
    %11 = arith.extui %10 : i1 to i32
    %c0_i32_9 = arith.constant 0 : i32
    %12 = arith.cmpi ne, %11, %c0_i32_9 : i32
    scf.if %12 {
      %c0_10 = arith.constant 0 : index
      %c0_11 = arith.constant 0 : index
      %13 = vector.load %arg8[%c0_10, %c0_11] : memref<16x32xf32, #tpu.memory_space<vmem>>, vector<16x32xf32>
      %c0_12 = arith.constant 0 : index
      %c0_13 = arith.constant 0 : index
      %14 = vector.load %arg5[%c0_12, %c0_13] : memref<1x32xf32, #tpu.memory_space<vmem>>, vector<1x32xf32>
      %15 = vector.broadcast %14 : vector<1x32xf32> to vector<16x32xf32>
      %16 = arith.addf %13, %15 : vector<16x32xf32>
      %c0_14 = arith.constant 0 : index
      %c0_15 = arith.constant 0 : index
      %17 = vector.load %arg6[%c0_14, %c0_15] : memref<16x32xf32, #tpu.memory_space<vmem>>, vector<16x32xf32>
      %18 = arith.addf %16, %17 : vector<16x32xf32>
      %c0_16 = arith.constant 0 : index
      %c0_17 = arith.constant 0 : index
      %19 = vector.load %arg7[%c0_16, %c0_17] : memref<16x32xf32, #tpu.memory_space<vmem>>, vector<16x32xf32>
      tpu.vector_store %arg7[%c0_16, %c0_17], %18 {strides = array<i32>} : memref<16x32xf32, #tpu.memory_space<vmem>>, vector<16x32xf32>,
    } else {
    }
    return
  }
  func.func @transform_0(%arg0: i32, %arg1: i32, %arg2: i32) -> (i32, i32) {
    %c0_i32 = arith.constant 0 : i32
    return %arg0, %arg2 : i32, i32
  }
  func.func @transform_1(%arg0: i32, %arg1: i32, %arg2: i32) -> (i32, i32) {
    %c0_i32 = arith.constant 0 : i32
    return %arg2, %arg1 : i32, i32
  }
  func.func @transform_2(%arg0: i32, %arg1: i32, %arg2: i32) -> (i32, i32) {
    %c0_i32 = arith.constant 0 : i32
    %c0_i32_0 = arith.constant 0 : i32
    return %c0_i32, %arg1 : i32, i32
  }
  func.func @transform_3(%arg0: i32, %arg1: i32, %arg2: i32) -> (i32, i32) {
    %c0_i32 = arith.constant 0 : i32
    return %arg0, %arg1 : i32, i32
  }
  func.func @transform_4(%arg0: i32, %arg1: i32, %arg2: i32) -> (i32, i32) {
    %c0_i32 = arith.constant 0 : i32
    return %arg0, %arg1 : i32, i32
  }
}

module attributes {stable_mosaic.version = 11 : i64} {
  func.func @_layernorm_kernel(%arg0: i32, %arg1: memref<16x32xf32, #tpu.memory_space<vmem>>, %arg2: memref<1x32xf32, #tpu.memory_space<vmem>>, %arg3: memref<1x32xf32, #tpu.memory_space<vmem>>, %arg4: memref<16x32xf32, #tpu.memory_space<vmem>>) attributes {dimension_semantics = [#tpu.dimension_semantics<parallel>], iteration_bounds = array<i64: 1>, scalar_prefetch = 0 : i64, scratch_operands = 0 : i64, tpu.core_type = #tpu.core_type<tc>, window_params = [{transform_indices = @transform_0, window_bounds = array<i64: 16, 32>}, {pipeline_mode = #tpu.pipeline_mode<synchronous>, transform_indices = @transform_1, window_bounds = array<i64: 1, 32>}, {pipeline_mode = #tpu.pipeline_mode<synchronous>, transform_indices = @transform_2, window_bounds = array<i64: 1, 32>}, {transform_indices = @transform_3, window_bounds = array<i64: 16, 32>}]} {
    %c0 = arith.constant 0 : index
    %c0_0 = arith.constant 0 : index
    %0 = vector.load %arg1[%c0, %c0_0] : memref<16x32xf32, #tpu.memory_space<vmem>>, vector<16x32xf32>
    %cst = arith.constant dense<0.000000e+00> : vector<16xf32>
    %1 = vector.multi_reduction <add>, %0, %cst [1] : vector<16x32xf32> to vector<16xf32>
    %2 = vector.shape_cast %1 : vector<16xf32> to vector<16x1xf32>
    %cst_1 = arith.constant 3.200000e+01 : f32
    %3 = vector.broadcast %cst_1 : f32 to vector<16x1xf32>
    %4 = arith.divf %2, %3 : vector<16x1xf32>
    %5 = vector.broadcast %4 : vector<16x1xf32> to vector<16x32xf32>
    %6 = arith.subf %0, %5 : vector<16x32xf32>
    %7 = arith.mulf %6, %6 : vector<16x32xf32>
    %cst_2 = arith.constant dense<0.000000e+00> : vector<16xf32>
    %8 = vector.multi_reduction <add>, %7, %cst_2 [1] : vector<16x32xf32> to vector<16xf32>
    %9 = vector.shape_cast %8 : vector<16xf32> to vector<16x1xf32>
    %cst_3 = arith.constant 3.200000e+01 : f32
    %10 = vector.broadcast %cst_3 : f32 to vector<16x1xf32>
    %11 = arith.divf %9, %10 : vector<16x1xf32>
    %cst_4 = arith.constant 9.99999997E-7 : f32
    %12 = vector.broadcast %cst_4 : f32 to vector<16x1xf32>
    %13 = arith.addf %11, %12 : vector<16x1xf32>
    %14 = math.rsqrt %13 : vector<16x1xf32>
    %15 = vector.broadcast %4 : vector<16x1xf32> to vector<16x32xf32>
    %16 = arith.subf %0, %15 : vector<16x32xf32>
    %17 = vector.broadcast %14 : vector<16x1xf32> to vector<16x32xf32>
    %18 = arith.mulf %16, %17 : vector<16x32xf32>
    %c0_5 = arith.constant 0 : index
    %c0_6 = arith.constant 0 : index
    %19 = vector.load %arg2[%c0_5, %c0_6] : memref<1x32xf32, #tpu.memory_space<vmem>>, vector<1x32xf32>
    %20 = vector.broadcast %19 : vector<1x32xf32> to vector<16x32xf32>
    %21 = arith.mulf %18, %20 : vector<16x32xf32>
    %c0_7 = arith.constant 0 : index
    %c0_8 = arith.constant 0 : index
    %22 = vector.load %arg3[%c0_7, %c0_8] : memref<1x32xf32, #tpu.memory_space<vmem>>, vector<1x32xf32>
    %23 = vector.broadcast %22 : vector<1x32xf32> to vector<16x32xf32>
    %24 = arith.addf %21, %23 : vector<16x32xf32>
    %c0_9 = arith.constant 0 : index
    %c0_10 = arith.constant 0 : index
    %25 = vector.load %arg4[%c0_9, %c0_10] : memref<16x32xf32, #tpu.memory_space<vmem>>, vector<16x32xf32>
    tpu.vector_store %arg4[%c0_9, %c0_10], %24 {strides = array<i32>} : memref<16x32xf32, #tpu.memory_space<vmem>>, vector<16x32xf32>,
    return
  }
  func.func @transform_0(%arg0: i32) -> (i32, i32) {
    %c0_i32 = arith.constant 0 : i32
    %c0_i32_0 = arith.constant 0 : i32
    return %arg0, %c0_i32 : i32, i32
  }
  func.func @transform_1(%arg0: i32) -> (i32, i32) {
    %c0_i32 = arith.constant 0 : i32
    %c0_i32_0 = arith.constant 0 : i32
    %c0_i32_1 = arith.constant 0 : i32
    return %c0_i32, %c0_i32_0 : i32, i32
  }
  func.func @transform_2(%arg0: i32) -> (i32, i32) {
    %c0_i32 = arith.constant 0 : i32
    %c0_i32_0 = arith.constant 0 : i32
    %c0_i32_1 = arith.constant 0 : i32
    return %c0_i32, %c0_i32_0 : i32, i32
  }
  func.func @transform_3(%arg0: i32) -> (i32, i32) {
    %c0_i32 = arith.constant 0 : i32
    %c0_i32_0 = arith.constant 0 : i32
    return %arg0, %c0_i32 : i32, i32
  }
}

</mosaic_0001>

<llo_original>
// kernel: decoder_forward.20
$region0: #{decoder_forward.20}
  #allocation0 [shape = 'u32[]', space=smem, size = 0x4, offset = 0x4, fixed_abs, tag = 'smem constant byte address 0x4 - core index']
  #allocation1 [shape = 'u32[144,128]{1,0:T(1,128)}', space=vmem, size = 0x12000, scoped, tag = 'internal scratch']
  %s0 = inlined_call_operand.hbm [shape: f32[2,8,96], index: 0, kind: input, shape index: {}, may-alias: {0,1,2}]
  %s1 = inlined_call_operand.hbm [shape: f32[2,8,96], index: 1, kind: input, shape index: {}, may-alias: {0,1,2}]
  %s2 = inlined_call_operand.hbm [shape: f32[2,8,96], index: 2, kind: input, shape index: {}, may-alias: {0,1,2}]
  %s3 = inlined_call_operand.hbm [shape: f32[2,8,8], index: 3, kind: input, shape index: {}]
  %s4 = inlined_call_operand.hbm [shape: f32[2,8,32], index: 4, kind: output, shape index: {}]
  %s5 = sld [smem:[#allocation0]]
  $region65: #{decoder_forward.20} parent=0
    _
  %s7 = ssub.s32 1, %s5
  %s8 = scalar_select 0, %s7, %s5
  $region1: #{decoder_forward.20} parent=0
    #allocation2 [shape = 'u8[8192]{0}', space=vmem, size = 0x2000, scoped, tag = 'input window, operand 0']
    #allocation3 [shape = 's32[2]{0}', space=sflag, size = 0x8, scoped, tag = 'scoped memory for decoder_forward.20']
    #allocation4 [shape = 's32[2]{0}', space=sflag, size = 0x8, scoped, tag = 'scoped memory for decoder_forward.20']
    #allocation5 [shape = 'u8[8192]{0}', space=vmem, size = 0x2000, scoped, tag = 'input window, operand 1']
    #allocation6 [shape = 's32[2]{0}', space=sflag, size = 0x8, scoped, tag = 'scoped memory for decoder_forward.20']
    #allocation7 [shape = 'u8[8192]{0}', space=vmem, size = 0x2000, scoped, tag = 'input window, operand 2']
    #allocation8 [shape = 'u8[8192]{0}', space=vmem, size = 0x2000, scoped, tag = 'input window, operand 3']
    #allocation9 [shape = 's32[2]{0}', space=sflag, size = 0x8, scoped, tag = 'scoped memory for decoder_forward.20']
    #allocation10 [shape = 'u8[8192]{0}', space=vmem, size = 0x2000, scoped, tag = 'output window, operand 0']
    %9 = vsyncpa [#allocation3], 0
    %s10 = scalar_lea.sflag [#allocation3], 1
    %11 = vsyncpa %s10, 0
    %12 = vsyncpa [#allocation6], 0
    %s13 = scalar_lea.sflag [#allocation6], 1
    %14 = vsyncpa %s13, 0
    %15 = vsyncpa [#allocation9], 0
    %s16 = scalar_lea.sflag [#allocation9], 1
    %17 = vsyncpa %s16, 0
    %18 = vsyncpa [#allocation4], 0
    %s19 = scalar_lea.sflag [#allocation4], 1
    %20 = vsyncpa %s19, 0
    loop: start=0, step=1, limit=4
    $region2: #{decoder_forward.20} parent=1 // loop_pre_header
      _
    $region3: #{decoder_forward.20} parent=1 // loop_header
      %s22 = sphi 0, %s26
      %p23 = scmp.ge.s32.totalorder %s22, 4
      %s29 = sphi 0, %s41
      %s30 = sphi 0, %s37
      %s31 = sphi 0, %s29
      %s32 = sphi 0, %s30
      %s33 = sphi 0, %s31
      %s34 = sphi 0, %s32
      %s46 = sphi 0, %s48
      %s49 = sphi 0, %s46
      %s50 = sphi 0, %s49
      %s66 = sphi 0, %s50
      %s72 = sphi 0, %s74
      %s75 = sphi 0, %s72
      %s76 = sphi 0, %s75
      %s92 = sphi 0, %s76
      %s98 = sphi 0, %s100
      %s101 = sphi 0, %s98
      %s102 = sphi 0, %s101
      %s118 = sphi 0, %s102
      %s126 = sphi 0, %s128
      %s129 = sphi 0, %s126
      %s130 = sphi 0, %s129
      %s146 = sphi 0, %s130
      %s154 = sphi 0, %s156
      %s157 = sphi 0, %s154
      %s158 = sphi 0, %s157
      %s174 = sphi 0, %s158
    $region4: #{decoder_forward.20} parent=1 // loop_header_branch
      %25 = sbr.rel (%p23) target = $region8
    $region5: #{decoder_forward.20} parent=1 // loop_body
      %s27 = ssub.s32 %s22, 1
      %s28 = ssub.s32 %s22, 2
      %s35 = sadd.s32 1, %s30
      %p36 = scmp.ge.s32.totalorder %s35, 1
      %s37 = scalar_select %p36, 0, %s35
      %s38 = sadd.s32 1, %s29
      %s39 = scalar_select %p36, %s38, %s29
      %p40 = scmp.ge.s32.totalorder %s39, 2
      %s41 = scalar_select %p40, 0, %s39
      %s42 = ssub.s32 %s29, %s41
      %s43 = ssub.s32 %s30, %s37
      %s44 = sor.u32 %s42, %s43
      %p45 = scmp.eq.s32.totalorder %s44, 0
      %s47 = sadd.s32 %s46, 1
      %s48 = scalar_select %p45, %s46, %s47
      %p51 = pneg %p45
      %p52 = scmp.eq.s32.totalorder %s22, 1
      %p53 = por %p51, %p52
      %p54 = scmp.ne.s32.totalorder %s46, %s49
      %p55 = scmp.eq.s32.totalorder %s22, 0
      %p56 = por %p54, %p55
      %p57 = scmp.ne.s32.totalorder %s46, %s49
      %p58 = scmp.eq.s32.totalorder %s27, 1
      %p59 = por %p57, %p58
      %p60 = scmp.ne.s32.totalorder %s49, %s50
      %p61 = scmp.eq.s32.totalorder %s27, 0
      %p62 = por %p60, %p61
      %p63 = scmp.ne.s32.totalorder %s49, %s50
      %p64 = scmp.eq.s32.totalorder %s28, 1
      %p65 = por %p63, %p64
      %p67 = scmp.ne.s32.totalorder %s50, %s66
      %p68 = scmp.eq.s32.totalorder %s28, 0
      %p69 = por %p67, %p68
      %s70 = ssub.s32 %s29, %s41
      %p71 = scmp.eq.s32.totalorder %s70, 0
      %s73 = sadd.s32 %s72, 1
      %s74 = scalar_select %p71, %s72, %s73
      %p77 = pneg %p71
      %p78 = scmp.eq.s32.totalorder %s22, 1
      %p79 = por %p77, %p78
      %p80 = scmp.ne.s32.totalorder %s72, %s75
      %p81 = scmp.eq.s32.totalorder %s22, 0
      %p82 = por %p80, %p81
      %p83 = scmp.ne.s32.totalorder %s72, %s75
      %p84 = scmp.eq.s32.totalorder %s27, 1
      %p85 = por %p83, %p84
      %p86 = scmp.ne.s32.totalorder %s75, %s76
      %p87 = scmp.eq.s32.totalorder %s27, 0
      %p88 = por %p86, %p87
      %p89 = scmp.ne.s32.totalorder %s75, %s76
      %p90 = scmp.eq.s32.totalorder %s28, 1
      %p91 = por %p89, %p90
      %p93 = scmp.ne.s32.totalorder %s76, %s92
      %p94 = scmp.eq.s32.totalorder %s28, 0
      %p95 = por %p93, %p94
      %s96 = ssub.s32 %s29, %s41
      %p97 = scmp.eq.s32.totalorder %s96, 0
      %s99 = sadd.s32 %s98, 1
      %s100 = scalar_select %p97, %s98, %s99
      %p103 = pneg %p97
      %p104 = scmp.eq.s32.totalorder %s22, 1
      %p105 = por %p103, %p104
      %p106 = scmp.ne.s32.totalorder %s98, %s101
      %p107 = scmp.eq.s32.totalorder %s22, 0
      %p108 = por %p106, %p107
      %p109 = scmp.ne.s32.totalorder %s98, %s101
      %p110 = scmp.eq.s32.totalorder %s27, 1
      %p111 = por %p109, %p110
      %p112 = scmp.ne.s32.totalorder %s101, %s102
      %p113 = scmp.eq.s32.totalorder %s27, 0
      %p114 = por %p112, %p113
      %p115 = scmp.ne.s32.totalorder %s101, %s102
      %p116 = scmp.eq.s32.totalorder %s28, 1
      %p117 = por %p115, %p116
      %p119 = scmp.ne.s32.totalorder %s102, %s118
      %p120 = scmp.eq.s32.totalorder %s28, 0
      %p121 = por %p119, %p120
      %s122 = ssub.s32 %s29, %s41
      %s123 = ssub.s32 %s30, %s37
      %s124 = sor.u32 %s122, %s123
      %p125 = scmp.eq.s32.totalorder %s124, 0
      %s127 = sadd.s32 %s126, 1
      %s128 = scalar_select %p125, %s126, %s127
      %p131 = pneg %p125
      %p132 = scmp.eq.s32.totalorder %s22, 1
      %p133 = por %p131, %p132
      %p134 = scmp.ne.s32.totalorder %s126, %s129
      %p135 = scmp.eq.s32.totalorder %s22, 0
      %p136 = por %p134, %p135
      %p137 = scmp.ne.s32.totalorder %s126, %s129
      %p138 = scmp.eq.s32.totalorder %s27, 1
      %p139 = por %p137, %p138
      %p140 = scmp.ne.s32.totalorder %s129, %s130
      %p141 = scmp.eq.s32.totalorder %s27, 0
      %p142 = por %p140, %p141
      %p143 = scmp.ne.s32.totalorder %s129, %s130
      %p144 = scmp.eq.s32.totalorder %s28, 1
      %p145 = por %p143, %p144
      %p147 = scmp.ne.s32.totalorder %s130, %s146
      %p148 = scmp.eq.s32.totalorder %s28, 0
      %p149 = por %p147, %p148
      %s150 = ssub.s32 %s29, %s41
      %s151 = ssub.s32 %s30, %s37
      %s152 = sor.u32 %s150, %s151
      %p153 = scmp.eq.s32.totalorder %s152, 0
      %s155 = sadd.s32 %s154, 1
      %s156 = scalar_select %p153, %s154, %s155
      %p159 = pneg %p153
      %p160 = scmp.eq.s32.totalorder %s22, 1
      %p161 = por %p159, %p160
      %p162 = scmp.ne.s32.totalorder %s154, %s157
      %p163 = scmp.eq.s32.totalorder %s22, 0
      %p164 = por %p162, %p163
      %p165 = scmp.ne.s32.totalorder %s154, %s157
      %p166 = scmp.eq.s32.totalorder %s27, 1
      %p167 = por %p165, %p166
      %p168 = scmp.ne.s32.totalorder %s157, %s158
      %p169 = scmp.eq.s32.totalorder %s27, 0
      %p170 = por %p168, %p169
      %p171 = scmp.ne.s32.totalorder %s157, %s158
      %p172 = scmp.eq.s32.totalorder %s28, 1
      %p173 = por %p171, %p172
      %p175 = scmp.ne.s32.totalorder %s158, %s174
      %p176 = scmp.eq.s32.totalorder %s28, 0
      %p177 = por %p175, %p176
      %p178 = scmp.le.s32.totalorder 1, %s22
      %p179 = scmp.lt.s32.totalorder %s22, 3
      %p180 = pnand %p178, %p179
      %p181 = pneg %p180
      // Predicated region
      $region9: #{decoder_forward.20} parent=5 // pred_check
        _
      $region10: #{decoder_forward.20} parent=5 // pred_check_branch
        %183 = sbr.rel (%p180) target = $region12
      $region11: #{decoder_forward.20} parent=5 // pred_region
        %s184 = ssub.s32 %s22, 1
      $region12: #{decoder_forward.20} parent=5 // pred_fallthru
        _
      %p185 = scmp.lt.s32.totalorder %s22, 2
      // Predicated region
      $region13: #{decoder_forward.20} parent=5 // pred_check
        %p186 = pneg %p185
      $region14: #{decoder_forward.20} parent=5 // pred_check_branch
        %188 = sbr.rel (%p186) target = $region16
      $region15: #{decoder_forward.20} parent=5 // pred_region
        // Predicated region
        $region17: #{decoder_forward.20} parent=15 // pred_check
          %p189 = pneg %p56
        $region18: #{decoder_forward.20} parent=15 // pred_check_branch
          %191 = sbr.rel (%p189) target = $region20
        $region19: #{decoder_forward.20} parent=15 // pred_region
          %s192 = sand.u32 %s46, 1
          %s193 = scalar_lea.sflag [#allocation3], %s192
          %s194 = sand.u32 %s46, 1
          %s195 = smul.addr %s194, 8
          %s196 = scalar_lea.vmem [#allocation2], %s195
          %s198 = ssub.s32 128, 128
          %199 = vsyncadd %s193, %s198
          %s200 = sadd.s32 %s30, %s29
          %s201 = smul.addr %s200, 128
          %s202 = scalar_lea.hbm %s0, %s201
          %s204 = sshll.u32 %s196, 4
          %s205 = int_to_ptr.vmem [resolvable:$true] %s204
          %207 = dma.hbm_to_vmem [thread:$0]  %s202, 128, %s205, %s193
        $region20: #{decoder_forward.20} parent=15 // pred_fallthru
          _
        // Predicated region
        $region21: #{decoder_forward.20} parent=15 // pred_check
          %p208 = pneg %p82
        $region22: #{decoder_forward.20} parent=15 // pred_check_branch
          %210 = sbr.rel (%p208) target = $region24
        $region23: #{decoder_forward.20} parent=15 // pred_region
          %s211 = sand.u32 %s22, 1
          %s212 = scalar_lea.sflag [#allocation6], %s211
          %s213 = sand.u32 %s72, 1
          %s214 = smul.addr %s213, 8
          %s215 = scalar_lea.vmem [#allocation5], %s214
          %s217 = ssub.s32 128, 128
          %218 = vsyncadd %s212, %s217
          %s219 = smul.addr %s29, 128
          %s220 = scalar_lea.hbm %s1, %s219
          %s222 = sshll.u32 %s215, 4
          %s223 = int_to_ptr.vmem [resolvable:$true] %s222
          %225 = dma.hbm_to_vmem [thread:$0]  %s220, 128, %s223, %s212
        $region24: #{decoder_forward.20} parent=15 // pred_fallthru
          _
        // Predicated region
        $region25: #{decoder_forward.20} parent=15 // pred_check
          %p226 = pneg %p108
        $region26: #{decoder_forward.20} parent=15 // pred_check_branch
          %228 = sbr.rel (%p226) target = $region28
        $region27: #{decoder_forward.20} parent=15 // pred_region
          %s229 = sand.u32 %s22, 1
          %s230 = scalar_lea.sflag [#allocation6], %s229
          %s231 = sand.u32 %s98, 1
          %s232 = smul.addr %s231, 8
          %s233 = scalar_lea.vmem [#allocation7], %s232
          %s235 = ssub.s32 128, 128
          %236 = vsyncadd %s230, %s235
          %s237 = smul.addr %s29, 128
          %s238 = scalar_lea.hbm %s2, %s237
          %s240 = sshll.u32 %s233, 4
          %s241 = int_to_ptr.vmem [resolvable:$true] %s240
          %243 = dma.hbm_to_vmem [thread:$0]  %s238, 128, %s241, %s230
        $region28: #{decoder_forward.20} parent=15 // pred_fallthru
          _
        // Predicated region
        $region29: #{decoder_forward.20} parent=15 // pred_check
          %p244 = pneg %p136
        $region30: #{decoder_forward.20} parent=15 // pred_check_branch
          %246 = sbr.rel (%p244) target = $region32
        $region31: #{decoder_forward.20} parent=15 // pred_region
          %s247 = sand.u32 %s126, 1
          %s248 = scalar_lea.sflag [#allocation9], %s247
          %s249 = sand.u32 %s126, 1
          %s250 = smul.addr %s249, 8
          %s251 = scalar_lea.vmem [#allocation8], %s250
          %s253 = ssub.s32 128, 128
          %254 = vsyncadd %s248, %s253
          %s255 = sadd.s32 %s30, %s29
          %s256 = smul.addr %s255, 128
          %s257 = scalar_lea.hbm %s3, %s256
          %s259 = sshll.u32 %s251, 4
          %s260 = int_to_ptr.vmem [resolvable:$true] %s259
          %262 = dma.hbm_to_vmem [thread:$0]  %s257, 128, %s260, %s248
        $region32: #{decoder_forward.20} parent=15 // pred_fallthru
          _
      $region16: #{decoder_forward.20} parent=5 // pred_fallthru
        _
      %p263 = scmp.le.s32.totalorder 1, %s22
      %p264 = scmp.lt.s32.totalorder %s22, 3
      %p265 = pnand %p263, %p264
      %p266 = pneg %p265
      // Predicated region
      $region33: #{decoder_forward.20} parent=5 // pred_check
        _
      $region34: #{decoder_forward.20} parent=5 // pred_check_branch
        %268 = sbr.rel (%p265) target = $region36
      $region35: #{decoder_forward.20} parent=5 // pred_region
        %s269 = ssub.s32 %s22, 1
        %s270 = sand.u32 %s49, 1
        %s271 = scalar_lea.sflag [#allocation3], %s270
        %s272 = sand.u32 %s49, 1
        %s273 = smul.addr %s272, 8
        %s274 = scalar_lea.vmem [#allocation2], %s273
        // Predicated region
        $region37: #{decoder_forward.20} parent=35 // pred_check
          %p275 = pneg %p62
        $region38: #{decoder_forward.20} parent=35 // pred_check_branch
          %277 = sbr.rel (%p275) target = $region40
        $region39: #{decoder_forward.20} parent=35 // pred_region
          %278 = dma.done %s271, 128
        $region40: #{decoder_forward.20} parent=35 // pred_fallthru
          _
        %s279 = sand.u32 %s27, 1
        %s280 = scalar_lea.sflag [#allocation6], %s279
        %s281 = sand.u32 %s75, 1
        %s282 = smul.addr %s281, 8
        %s283 = scalar_lea.vmem [#allocation5], %s282
        // Predicated region
        $region41: #{decoder_forward.20} parent=35 // pred_check
          %p284 = pneg %p88
        $region42: #{decoder_forward.20} parent=35 // pred_check_branch
          %286 = sbr.rel (%p284) target = $region44
        $region43: #{decoder_forward.20} parent=35 // pred_region
          %287 = dma.done %s280, 128
        $region44: #{decoder_forward.20} parent=35 // pred_fallthru
          _
        %s288 = sand.u32 %s27, 1
        %s289 = scalar_lea.sflag [#allocation6], %s288
        %s290 = sand.u32 %s101, 1
        %s291 = smul.addr %s290, 8
        %s292 = scalar_lea.vmem [#allocation7], %s291
        // Predicated region
        $region45: #{decoder_forward.20} parent=35 // pred_check
          %p293 = pneg %p114
        $region46: #{decoder_forward.20} parent=35 // pred_check_branch
          %295 = sbr.rel (%p293) target = $region48
        $region47: #{decoder_forward.20} parent=35 // pred_region
          %296 = dma.done %s289, 128
        $region48: #{decoder_forward.20} parent=35 // pred_fallthru
          _
        %s297 = sand.u32 %s129, 1
        %s298 = scalar_lea.sflag [#allocation9], %s297
        %s299 = sand.u32 %s129, 1
        %s300 = smul.addr %s299, 8
        %s301 = scalar_lea.vmem [#allocation8], %s300
        // Predicated region
        $region49: #{decoder_forward.20} parent=35 // pred_check
          %p302 = pneg %p142
        $region50: #{decoder_forward.20} parent=35 // pred_check_branch
          %304 = sbr.rel (%p302) target = $region52
        $region51: #{decoder_forward.20} parent=35 // pred_region
          %305 = dma.done %s298, 128
        $region52: #{decoder_forward.20} parent=35 // pred_fallthru
          _
        %s306 = sand.u32 %s49, 1
        %s307 = scalar_lea.sflag [#allocation3], %s306
        %s308 = sand.u32 %s49, 1
        %s309 = smul.addr %s308, 8
        %s310 = scalar_lea.vmem [#allocation2], %s309
        %p311 = pneg %p62
        %p312 = pneg %p59
        %s313 = sand.u32 %s27, 1
        %s314 = scalar_lea.sflag [#allocation6], %s313
        %s315 = sand.u32 %s75, 1
        %s316 = smul.addr %s315, 8
        %s317 = scalar_lea.vmem [#allocation5], %s316
        %p318 = pneg %p88
        %p319 = pneg %p85
        %s320 = sand.u32 %s27, 1
        %s321 = scalar_lea.sflag [#allocation6], %s320
        %s322 = sand.u32 %s101, 1
        %s323 = smul.addr %s322, 8
        %s324 = scalar_lea.vmem [#allocation7], %s323
        %p325 = pneg %p114
        %p326 = pneg %p111
        %s327 = sand.u32 %s129, 1
        %s328 = scalar_lea.sflag [#allocation9], %s327
        %s329 = sand.u32 %s129, 1
        %s330 = smul.addr %s329, 8
        %s331 = scalar_lea.vmem [#allocation8], %s330
        %p332 = pneg %p142
        %p333 = pneg %p139
        %p334 = pneg %p170
        %p335 = pneg %p167
        %s336 = sand.u32 %s157, 1
        %s337 = scalar_lea.sflag [#allocation4], %s336
        %s338 = sand.u32 %s157, 1
        %s339 = smul.addr %s338, 8
        %s340 = scalar_lea.vmem [#allocation10], %s339
        %v342 = vld [vmem:[%s274] sm:$0xff]
        %v343 = vpack.c.bf16 %v342, %v342
        %v344 = vld [vmem:[%s283] sm:$0xff]
        %v345 = vpack.c.bf16 %v344, %v344
        %v346 = vld [vmem:[%s292] sm:$0xff]
        %v347 = vpack.c.bf16 %v346, %v346
        %v348 = vld [vmem:[%s301] sm:$0xff]
        %v349 = vsub.f32 %v348, 1.0
        %v350 = vmul.f32 %v349, 1e+09
        %352 = vrot.lane.b32.xlu0 %v345, 96
        %v353 = vpop.permute.xlu0 %352
        %vm354 = vcmask 64512
        %v356 = vsel %vm354, %v343, 0
        %v359 = vsel %vm354, %v353, 0
        %361 = vmatprep.subr.bf16.mxu0 0
        %362 = vmatpush1.bf16.xpose.msra.mxu0 %v359
        %363 = vmatprep.subr.bf16.mxu0 0
        %364 = vmatpush1.bf16.xpose.msra.mxu0 0
        %365 = vmatprep.subr.bf16.mxu0 0
        %366 = vmatpush1.bf16.xpose.msra.mxu0 0
        %367 = vmatprep.subr.bf16.mxu0 0
        %368 = vmatpush1.bf16.xpose.msra.mxu0 0
        %369 = vmatprep.subr.bf16.mxu0 0
        %370 = vmatpush1.bf16.xpose.msra.mxu0 0
        %371 = vmatprep.subr.bf16.mxu0 0
        %372 = vmatpush1.bf16.xpose.msra.mxu0 0
        %373 = vmatprep.subr.bf16.mxu0 0
        %374 = vmatpush1.bf16.xpose.msra.mxu0 0
        %375 = vmatprep.subr.bf16.mxu0 0
        %376 = vmatpush1.bf16.xpose.msra.mxu0 0
        %377 = vmatprep.subr.bf16.mxu0 0
        %378 = vmatpush1.bf16.xpose.msra.mxu0 0
        %379 = vmatprep.subr.bf16.mxu0 0
        %380 = vmatpush1.bf16.xpose.msra.mxu0 0
        %381 = vmatprep.subr.bf16.mxu0 0
        %382 = vmatpush1.bf16.xpose.msra.mxu0 0
        %383 = vmatprep.subr.bf16.mxu0 0
        %384 = vmatpush1.bf16.xpose.msra.mxu0 0
        %385 = vmatprep.subr.bf16.mxu0 0
        %386 = vmatpush1.bf16.xpose.msra.mxu0 0
        %387 = vmatprep.subr.bf16.mxu0 0
        %388 = vmatpush1.bf16.xpose.msra.mxu0 0
        %389 = vmatprep.subr.bf16.mxu0 0
        %390 = vmatpush1.bf16.xpose.msra.mxu0 0
        %391 = vmatprep.subr.bf16.mxu0 0
        %392 = vmatpush1.bf16.xpose.msra.mxu0 0
        %393 = vmatprep.mubr.bf16.mxu0 0
        %394 = vmatmul.mubr.bf16.gmra.mrb[0].mxu0 %v356
        %v395 = vpop.f32.mrb[0].mxu0
        %v396 = vadd.f32 0.0, %v395
        %v397 = vpop.f32.mrb[0].mxu0
        %v398 = vpop.f32.mrb[0].mxu0
        %v399 = vpop.f32.mrb[0].mxu0
        %400 = vdwg.mxu0
        %v401 = vmul.f32 %v396, 0.35355338
        %v402 = vadd.f32 %v401, %v350
        %v403 = vsel %vm354, %v402, -inf
        %404 = vmax.xlane.f32.xlu0 %v403
        %v405 = vpop.xlane.xlu0 %404
        %v406 = vsub.f32 %v402, %v405
        %v407 = vmul.f32 %v406, 1.442695
        %v408 = vpow.pop %v407
        %v409 = vsel %vm354, %v408, 0.0
        %410 = vadd.xlane.f32.xlu0 %v409
        %v411 = vpop.xlane.xlu0 %410
        %v412 = vrcp.pop %v411
        %v413 = vmul.f32 %v408, %v412
        %v414 = vpack.c.bf16 %v413, %v413
        %416 = vrot.lane.b32.xlu0 %v347, 64
        %v417 = vpop.permute.xlu0 %416
        %v419 = vsel %vm354, %v414, 0
        %vm421 = vcmask 1043456
        %v423 = vsel %vm421, %v417, 0
        %425 = vmatprep.subr.bf16.mxu0 0
        %426 = vmatpush1.bf16.msra.mxu0 %v423
        %427 = vmatprep.subr.bf16.mxu0 0
        %428 = vmatpush1.bf16.msra.mxu0 0
        %429 = vmatprep.subr.bf16.mxu0 0
        %430 = vmatpush1.bf16.msra.mxu0 0
        %431 = vmatprep.subr.bf16.mxu0 0
        %432 = vmatpush1.bf16.msra.mxu0 0
        %433 = vmatprep.subr.bf16.mxu0 0
        %434 = vmatpush1.bf16.msra.mxu0 0
        %435 = vmatprep.subr.bf16.mxu0 0
        %436 = vmatpush1.bf16.msra.mxu0 0
        %437 = vmatprep.subr.bf16.mxu0 0
        %438 = vmatpush1.bf16.msra.mxu0 0
        %439 = vmatprep.subr.bf16.mxu0 0
        %440 = vmatpush1.bf16.msra.mxu0 0
        %441 = vmatprep.subr.bf16.mxu0 0
        %442 = vmatpush1.bf16.msra.mxu0 0
        %443 = vmatprep.subr.bf16.mxu0 0
        %444 = vmatpush1.bf16.msra.mxu0 0
        %445 = vmatprep.subr.bf16.mxu0 0
        %446 = vmatpush1.bf16.msra.mxu0 0
        %447 = vmatprep.subr.bf16.mxu0 0
        %448 = vmatpush1.bf16.msra.mxu0 0
        %449 = vmatprep.subr.bf16.mxu0 0
        %450 = vmatpush1.bf16.msra.mxu0 0
        %451 = vmatprep.subr.bf16.mxu0 0
        %452 = vmatpush1.bf16.msra.mxu0 0
        %453 = vmatprep.subr.bf16.mxu0 0
        %454 = vmatpush1.bf16.msra.mxu0 0
        %455 = vmatprep.subr.bf16.mxu0 0
        %456 = vmatpush1.bf16.msra.mxu0 0
        %457 = vmatprep.mubr.bf16.mxu0 0
        %458 = vmatmul.mubr.bf16.gmra.mrb[0].mxu0 %v419
        %v459 = vpop.f32.mrb[0].mxu0
        %v460 = vadd.f32 0.0, %v459
        %v461 = vpop.f32.mrb[0].mxu0
        %v462 = vpop.f32.mrb[0].mxu0
        %v463 = vpop.f32.mrb[0].mxu0
        %464 = vdwg.mxu0
        %465 = vst.msk [vmem:[%s340] sm:$0xff] %vm354, %v460
        %467 = vrot.lane.b32.xlu0 %v343, 120
        %v468 = vpop.permute.xlu0 %467
        %469 = vrot.lane.b32.xlu0 %v345, 88
        %v470 = vpop.permute.xlu0 %469
        %v472 = vsel %vm354, %v468, 0
        %v475 = vsel %vm354, %v470, 0
        %477 = vmatprep.subr.bf16.mxu0 0
        %478 = vmatpush1.bf16.xpose.msra.mxu0 %v475
        %479 = vmatprep.subr.bf16.mxu0 0
        %480 = vmatpush1.bf16.xpose.msra.mxu0 0
        %481 = vmatprep.subr.bf16.mxu0 0
        %482 = vmatpush1.bf16.xpose.msra.mxu0 0
        %483 = vmatprep.subr.bf16.mxu0 0
        %484 = vmatpush1.bf16.xpose.msra.mxu0 0
        %485 = vmatprep.subr.bf16.mxu0 0
        %486 = vmatpush1.bf16.xpose.msra.mxu0 0
        %487 = vmatprep.subr.bf16.mxu0 0
        %488 = vmatpush1.bf16.xpose.msra.mxu0 0
        %489 = vmatprep.subr.bf16.mxu0 0
        %490 = vmatpush1.bf16.xpose.msra.mxu0 0
        %491 = vmatprep.subr.bf16.mxu0 0
        %492 = vmatpush1.bf16.xpose.msra.mxu0 0
        %493 = vmatprep.subr.bf16.mxu0 0
        %494 = vmatpush1.bf16.xpose.msra.mxu0 0
        %495 = vmatprep.subr.bf16.mxu0 0
        %496 = vmatpush1.bf16.xpose.msra.mxu0 0
        %497 = vmatprep.subr.bf16.mxu0 0
        %498 = vmatpush1.bf16.xpose.msra.mxu0 0
        %499 = vmatprep.subr.bf16.mxu0 0
        %500 = vmatpush1.bf16.xpose.msra.mxu0 0
        %501 = vmatprep.subr.bf16.mxu0 0
        %502 = vmatpush1.bf16.xpose.msra.mxu0 0
        %503 = vmatprep.subr.bf16.mxu0 0
        %504 = vmatpush1.bf16.xpose.msra.mxu0 0
        %505 = vmatprep.subr.bf16.mxu0 0
        %506 = vmatpush1.bf16.xpose.msra.mxu0 0
        %507 = vmatprep.subr.bf16.mxu0 0
        %508 = vmatpush1.bf16.xpose.msra.mxu0 0
        %509 = vmatprep.mubr.bf16.mxu0 0
        %510 = vmatmul.mubr.bf16.gmra.mrb[0].mxu0 %v472
        %v511 = vpop.f32.mrb[0].mxu0
        %v512 = vadd.f32 0.0, %v511
        %v513 = vpop.f32.mrb[0].mxu0
        %v514 = vpop.f32.mrb[0].mxu0
        %v515 = vpop.f32.mrb[0].mxu0
        %516 = vdwg.mxu0
        %v517 = vmul.f32 %v512, 0.35355338
        %v518 = vadd.f32 %v517, %v350
        %v519 = vsel %vm354, %v518, -inf
        %520 = vmax.xlane.f32.xlu0 %v519
        %v521 = vpop.xlane.xlu0 %520
        %v522 = vsub.f32 %v518, %v521
        %v523 = vmul.f32 %v522, 1.442695
        %v524 = vpow.pop %v523
        %v525 = vsel %vm354, %v524, 0.0
        %526 = vadd.xlane.f32.xlu0 %v525
        %v527 = vpop.xlane.xlu0 %526
        %v528 = vrcp.pop %v527
        %v529 = vmul.f32 %v524, %v528
        %v530 = vpack.c.bf16 %v529, %v529
        %531 = vrot.lane.b32.xlu0 %v347, 56
        %v532 = vpop.permute.xlu0 %531
        %v534 = vsel %vm354, %v530, 0
        %v537 = vsel %vm421, %v532, 0
        %539 = vmatprep.subr.bf16.mxu0 0
        %540 = vmatpush1.bf16.msra.mxu0 %v537
        %541 = vmatprep.subr.bf16.mxu0 0
        %542 = vmatpush1.bf16.msra.mxu0 0
        %543 = vmatprep.subr.bf16.mxu0 0
        %544 = vmatpush1.bf16.msra.mxu0 0
        %545 = vmatprep.subr.bf16.mxu0 0
        %546 = vmatpush1.bf16.msra.mxu0 0
        %547 = vmatprep.subr.bf16.mxu0 0
        %548 = vmatpush1.bf16.msra.mxu0 0
        %549 = vmatprep.subr.bf16.mxu0 0
        %550 = vmatpush1.bf16.msra.mxu0 0
        %551 = vmatprep.subr.bf16.mxu0 0
        %552 = vmatpush1.bf16.msra.mxu0 0
        %553 = vmatprep.subr.bf16.mxu0 0
        %554 = vmatpush1.bf16.msra.mxu0 0
        %555 = vmatprep.subr.bf16.mxu0 0
        %556 = vmatpush1.bf16.msra.mxu0 0
        %557 = vmatprep.subr.bf16.mxu0 0
        %558 = vmatpush1.bf16.msra.mxu0 0
        %559 = vmatprep.subr.bf16.mxu0 0
        %560 = vmatpush1.bf16.msra.mxu0 0
        %561 = vmatprep.subr.bf16.mxu0 0
        %562 = vmatpush1.bf16.msra.mxu0 0
        %563 = vmatprep.subr.bf16.mxu0 0
        %564 = vmatpush1.bf16.msra.mxu0 0
        %565 = vmatprep.subr.bf16.mxu0 0
        %566 = vmatpush1.bf16.msra.mxu0 0
        %567 = vmatprep.subr.bf16.mxu0 0
        %568 = vmatpush1.bf16.msra.mxu0 0
        %569 = vmatprep.subr.bf16.mxu0 0
        %570 = vmatpush1.bf16.msra.mxu0 0
        %571 = vmatprep.mubr.bf16.mxu0 0
        %572 = vmatmul.mubr.bf16.gmra.mrb[0].mxu0 %v534
        %v573 = vpop.f32.mrb[0].mxu0
        %v574 = vadd.f32 0.0, %v573
        %v575 = vpop.f32.mrb[0].mxu0
        %v576 = vpop.f32.mrb[0].mxu0
        %v577 = vpop.f32.mrb[0].mxu0
        %578 = vdwg.mxu0
        %580 = vrot.lane.b32.xlu0 %v574, 8
        %v581 = vpop.permute.xlu0 %580
        %vm583 = vcmask 130112
        %584 = vst.msk [vmem:[%s340] sm:$0xff] %vm583, %v581
        %585 = vrot.lane.b32.xlu0 %v343, 112
        %v586 = vpop.permute.xlu0 %585
        %587 = vrot.lane.b32.xlu0 %v345, 80
        %v588 = vpop.permute.xlu0 %587
        %v590 = vsel %vm354, %v586, 0
        %v593 = vsel %vm354, %v588, 0
        %595 = vmatprep.subr.bf16.mxu0 0
        %596 = vmatpush1.bf16.xpose.msra.mxu0 %v593
        %597 = vmatprep.subr.bf16.mxu0 0
        %598 = vmatpush1.bf16.xpose.msra.mxu0 0
        %599 = vmatprep.subr.bf16.mxu0 0
        %600 = vmatpush1.bf16.xpose.msra.mxu0 0
        %601 = vmatprep.subr.bf16.mxu0 0
        %602 = vmatpush1.bf16.xpose.msra.mxu0 0
        %603 = vmatprep.subr.bf16.mxu0 0
        %604 = vmatpush1.bf16.xpose.msra.mxu0 0
        %605 = vmatprep.subr.bf16.mxu0 0
        %606 = vmatpush1.bf16.xpose.msra.mxu0 0
        %607 = vmatprep.subr.bf16.mxu0 0
        %608 = vmatpush1.bf16.xpose.msra.mxu0 0
        %609 = vmatprep.subr.bf16.mxu0 0
        %610 = vmatpush1.bf16.xpose.msra.mxu0 0
        %611 = vmatprep.subr.bf16.mxu0 0
        %612 = vmatpush1.bf16.xpose.msra.mxu0 0
        %613 = vmatprep.subr.bf16.mxu0 0
        %614 = vmatpush1.bf16.xpose.msra.mxu0 0
        %615 = vmatprep.subr.bf16.mxu0 0
        %616 = vmatpush1.bf16.xpose.msra.mxu0 0
        %617 = vmatprep.subr.bf16.mxu0 0
        %618 = vmatpush1.bf16.xpose.msra.mxu0 0
        %619 = vmatprep.subr.bf16.mxu0 0
        %620 = vmatpush1.bf16.xpose.msra.mxu0 0
        %621 = vmatprep.subr.bf16.mxu0 0
        %622 = vmatpush1.bf16.xpose.msra.mxu0 0
        %623 = vmatprep.subr.bf16.mxu0 0
        %624 = vmatpush1.bf16.xpose.msra.mxu0 0
        %625 = vmatprep.subr.bf16.mxu0 0
        %626 = vmatpush1.bf16.xpose.msra.mxu0 0
        %627 = vmatprep.mubr.bf16.mxu0 0
        %628 = vmatmul.mubr.bf16.gmra.mrb[0].mxu0 %v590
        %v629 = vpop.f32.mrb[0].mxu0
        %v630 = vadd.f32 0.0, %v629
        %v631 = vpop.f32.mrb[0].mxu0
        %v632 = vpop.f32.mrb[0].mxu0
        %v633 = vpop.f32.mrb[0].mxu0
        %634 = vdwg.mxu0
        %v635 = vmul.f32 %v630, 0.35355338
        %v636 = vadd.f32 %v635, %v350
        %v637 = vsel %vm354, %v636, -inf
        %638 = vmax.xlane.f32.xlu0 %v637
        %v639 = vpop.xlane.xlu0 %638
        %v640 = vsub.f32 %v636, %v639
        %v641 = vmul.f32 %v640, 1.442695
        %v642 = vpow.pop %v641
        %v643 = vsel %vm354, %v642, 0.0
        %644 = vadd.xlane.f32.xlu0 %v643
        %v645 = vpop.xlane.xlu0 %644
        %v646 = vrcp.pop %v645
        %v647 = vmul.f32 %v642, %v646
        %v648 = vpack.c.bf16 %v647, %v647
        %649 = vrot.lane.b32.xlu0 %v347, 48
        %v650 = vpop.permute.xlu0 %649
        %v652 = vsel %vm354, %v648, 0
        %v655 = vsel %vm421, %v650, 0
        %657 = vmatprep.subr.bf16.mxu0 0
        %658 = vmatpush1.bf16.msra.mxu0 %v655
        %659 = vmatprep.subr.bf16.mxu0 0
        %660 = vmatpush1.bf16.msra.mxu0 0
        %661 = vmatprep.subr.bf16.mxu0 0
        %662 = vmatpush1.bf16.msra.mxu0 0
        %663 = vmatprep.subr.bf16.mxu0 0
        %664 = vmatpush1.bf16.msra.mxu0 0
        %665 = vmatprep.subr.bf16.mxu0 0
        %666 = vmatpush1.bf16.msra.mxu0 0
        %667 = vmatprep.subr.bf16.mxu0 0
        %668 = vmatpush1.bf16.msra.mxu0 0
        %669 = vmatprep.subr.bf16.mxu0 0
        %670 = vmatpush1.bf16.msra.mxu0 0
        %671 = vmatprep.subr.bf16.mxu0 0
        %672 = vmatpush1.bf16.msra.mxu0 0
        %673 = vmatprep.subr.bf16.mxu0 0
        %674 = vmatpush1.bf16.msra.mxu0 0
        %675 = vmatprep.subr.bf16.mxu0 0
        %676 = vmatpush1.bf16.msra.mxu0 0
        %677 = vmatprep.subr.bf16.mxu0 0
        %678 = vmatpush1.bf16.msra.mxu0 0
        %679 = vmatprep.subr.bf16.mxu0 0
        %680 = vmatpush1.bf16.msra.mxu0 0
        %681 = vmatprep.subr.bf16.mxu0 0
        %682 = vmatpush1.bf16.msra.mxu0 0
        %683 = vmatprep.subr.bf16.mxu0 0
        %684 = vmatpush1.bf16.msra.mxu0 0
        %685 = vmatprep.subr.bf16.mxu0 0
        %686 = vmatpush1.bf16.msra.mxu0 0
        %687 = vmatprep.subr.bf16.mxu0 0
        %688 = vmatpush1.bf16.msra.mxu0 0
        %689 = vmatprep.mubr.bf16.mxu0 0
        %690 = vmatmul.mubr.bf16.gmra.mrb[0].mxu0 %v652
        %v691 = vpop.f32.mrb[0].mxu0
        %v692 = vadd.f32 0.0, %v691
        %v693 = vpop.f32.mrb[0].mxu0
        %v694 = vpop.f32.mrb[0].mxu0
        %v695 = vpop.f32.mrb[0].mxu0
        %696 = vdwg.mxu0
        %698 = vrot.lane.b32.xlu0 %v692, 16
        %v699 = vpop.permute.xlu0 %698
        %vm701 = vcmask 195712
        %702 = vst.msk [vmem:[%s340] sm:$0xff] %vm701, %v699
        %703 = vrot.lane.b32.xlu0 %v343, 104
        %v704 = vpop.permute.xlu0 %703
        %705 = vrot.lane.b32.xlu0 %v345, 72
        %v706 = vpop.permute.xlu0 %705
        %v708 = vsel %vm354, %v704, 0
        %v711 = vsel %vm354, %v706, 0
        %713 = vmatprep.subr.bf16.mxu0 0
        %714 = vmatpush1.bf16.xpose.msra.mxu0 %v711
        %715 = vmatprep.subr.bf16.mxu0 0
        %716 = vmatpush1.bf16.xpose.msra.mxu0 0
        %717 = vmatprep.subr.bf16.mxu0 0
        %718 = vmatpush1.bf16.xpose.msra.mxu0 0
        %719 = vmatprep.subr.bf16.mxu0 0
        %720 = vmatpush1.bf16.xpose.msra.mxu0 0
        %721 = vmatprep.subr.bf16.mxu0 0
        %722 = vmatpush1.bf16.xpose.msra.mxu0 0
        %723 = vmatprep.subr.bf16.mxu0 0
        %724 = vmatpush1.bf16.xpose.msra.mxu0 0
        %725 = vmatprep.subr.bf16.mxu0 0
        %726 = vmatpush1.bf16.xpose.msra.mxu0 0
        %727 = vmatprep.subr.bf16.mxu0 0
        %728 = vmatpush1.bf16.xpose.msra.mxu0 0
        %729 = vmatprep.subr.bf16.mxu0 0
        %730 = vmatpush1.bf16.xpose.msra.mxu0 0
        %731 = vmatprep.subr.bf16.mxu0 0
        %732 = vmatpush1.bf16.xpose.msra.mxu0 0
        %733 = vmatprep.subr.bf16.mxu0 0
        %734 = vmatpush1.bf16.xpose.msra.mxu0 0
        %735 = vmatprep.subr.bf16.mxu0 0
        %736 = vmatpush1.bf16.xpose.msra.mxu0 0
        %737 = vmatprep.subr.bf16.mxu0 0
        %738 = vmatpush1.bf16.xpose.msra.mxu0 0
        %739 = vmatprep.subr.bf16.mxu0 0
        %740 = vmatpush1.bf16.xpose.msra.mxu0 0
        %741 = vmatprep.subr.bf16.mxu0 0
        %742 = vmatpush1.bf16.xpose.msra.mxu0 0
        %743 = vmatprep.subr.bf16.mxu0 0
        %744 = vmatpush1.bf16.xpose.msra.mxu0 0
        %745 = vmatprep.mubr.bf16.mxu0 0
        %746 = vmatmul.mubr.bf16.gmra.mrb[0].mxu0 %v708
        %v747 = vpop.f32.mrb[0].mxu0
        %v748 = vadd.f32 0.0, %v747
        %v749 = vpop.f32.mrb[0].mxu0
        %v750 = vpop.f32.mrb[0].mxu0
        %v751 = vpop.f32.mrb[0].mxu0
        %752 = vdwg.mxu0
        %v753 = vmul.f32 %v748, 0.35355338
        %v754 = vadd.f32 %v753, %v350
        %v755 = vsel %vm354, %v754, -inf
        %756 = vmax.xlane.f32.xlu0 %v755
        %v757 = vpop.xlane.xlu0 %756
        %v758 = vsub.f32 %v754, %v757
        %v759 = vmul.f32 %v758, 1.442695
        %v760 = vpow.pop %v759
        %v761 = vsel %vm354, %v760, 0.0
        %762 = vadd.xlane.f32.xlu0 %v761
        %v763 = vpop.xlane.xlu0 %762
        %v764 = vrcp.pop %v763
        %v765 = vmul.f32 %v760, %v764
        %v766 = vpack.c.bf16 %v765, %v765
        %767 = vrot.lane.b32.xlu0 %v347, 40
        %v768 = vpop.permute.xlu0 %767
        %v770 = vsel %vm354, %v766, 0
        %v773 = vsel %vm421, %v768, 0
        %775 = vmatprep.subr.bf16.mxu0 0
        %776 = vmatpush1.bf16.msra.mxu0 %v773
        %777 = vmatprep.subr.bf16.mxu0 0
        %778 = vmatpush1.bf16.msra.mxu0 0
        %779 = vmatprep.subr.bf16.mxu0 0
        %780 = vmatpush1.bf16.msra.mxu0 0
        %781 = vmatprep.subr.bf16.mxu0 0
        %782 = vmatpush1.bf16.msra.mxu0 0
        %783 = vmatprep.subr.bf16.mxu0 0
        %784 = vmatpush1.bf16.msra.mxu0 0
        %785 = vmatprep.subr.bf16.mxu0 0
        %786 = vmatpush1.bf16.msra.mxu0 0
        %787 = vmatprep.subr.bf16.mxu0 0
        %788 = vmatpush1.bf16.msra.mxu0 0
        %789 = vmatprep.subr.bf16.mxu0 0
        %790 = vmatpush1.bf16.msra.mxu0 0
        %791 = vmatprep.subr.bf16.mxu0 0
        %792 = vmatpush1.bf16.msra.mxu0 0
        %793 = vmatprep.subr.bf16.mxu0 0
        %794 = vmatpush1.bf16.msra.mxu0 0
        %795 = vmatprep.subr.bf16.mxu0 0
        %796 = vmatpush1.bf16.msra.mxu0 0
        %797 = vmatprep.subr.bf16.mxu0 0
        %798 = vmatpush1.bf16.msra.mxu0 0
        %799 = vmatprep.subr.bf16.mxu0 0
        %800 = vmatpush1.bf16.msra.mxu0 0
        %801 = vmatprep.subr.bf16.mxu0 0
        %802 = vmatpush1.bf16.msra.mxu0 0
        %803 = vmatprep.subr.bf16.mxu0 0
        %804 = vmatpush1.bf16.msra.mxu0 0
        %805 = vmatprep.subr.bf16.mxu0 0
        %806 = vmatpush1.bf16.msra.mxu0 0
        %807 = vmatprep.mubr.bf16.mxu0 0
        %808 = vmatmul.mubr.bf16.gmra.mrb[0].mxu0 %v770
        %v809 = vpop.f32.mrb[0].mxu0
        %v810 = vadd.f32 0.0, %v809
        %v811 = vpop.f32.mrb[0].mxu0
        %v812 = vpop.f32.mrb[0].mxu0
        %v813 = vpop.f32.mrb[0].mxu0
        %814 = vdwg.mxu0
        %816 = vrot.lane.b32.xlu0 %v810, 24
        %v817 = vpop.permute.xlu0 %816
        %vm819 = vcmask 261312
        %820 = vst.msk [vmem:[%s340] sm:$0xff] %vm819, %v817
        %s821 = sand.u32 %s157, 1
        %s822 = scalar_lea.sflag [#allocation4], %s821
        %s823 = sand.u32 %s157, 1
        %s824 = smul.addr %s823, 8
        %s825 = scalar_lea.vmem [#allocation10], %s824
        // Predicated region
        $region53: #{decoder_forward.20} parent=35 // pred_check
          %p826 = pneg %p167
        $region54: #{decoder_forward.20} parent=35 // pred_check_branch
          %828 = sbr.rel (%p826) target = $region56
        $region55: #{decoder_forward.20} parent=35 // pred_region
          %s830 = ssub.s32 128, 128
          %831 = vsyncadd %s822, %s830
          %s832 = sadd.s32 %s32, %s31
          %s833 = smul.addr %s832, 128
          %s834 = scalar_lea.hbm %s4, %s833
          %s836 = sshll.u32 %s825, 4
          %s837 = int_to_ptr.vmem [resolvable:$true] %s836
          %839 = dma.vmem_to_hbm [thread:$0]  %s837, 128, %s834, %s822
        $region56: #{decoder_forward.20} parent=35 // pred_fallthru
          _
      $region36: #{decoder_forward.20} parent=5 // pred_fallthru
        _
      %p840 = scmp.le.s32.totalorder 2, %s22
      // Predicated region
      $region57: #{decoder_forward.20} parent=5 // pred_check
        %p841 = pneg %p840
      $region58: #{decoder_forward.20} parent=5 // pred_check_branch
        %843 = sbr.rel (%p841) target = $region60
      $region59: #{decoder_forward.20} parent=5 // pred_region
        %s844 = ssub.s32 %s22, 2
        // Predicated region
        $region61: #{decoder_forward.20} parent=59 // pred_check
          %p845 = pneg %p173
        $region62: #{decoder_forward.20} parent=59 // pred_check_branch
          %847 = sbr.rel (%p845) target = $region64
        $region63: #{decoder_forward.20} parent=59 // pred_region
          %s848 = sand.u32 %s158, 1
          %s849 = scalar_lea.sflag [#allocation4], %s848
          %s850 = sand.u32 %s158, 1
          %s851 = smul.addr %s850, 8
          %s852 = scalar_lea.vmem [#allocation10], %s851
          %853 = dma.done %s849, 128
        $region64: #{decoder_forward.20} parent=59 // pred_fallthru
          _
      $region60: #{decoder_forward.20} parent=5 // pred_fallthru
        _
    $region6: #{decoder_forward.20} parent=1 // loop_footer
      %s26 = sadd.s32 1, %s22
    $region7: #{decoder_forward.20} parent=1 // loop_footer_branch
      %21 = sbr.rel target = $region3
    $region8: #{decoder_forward.20} parent=1 // loop_exit
      _
    %854 = vsyncpa [#allocation3], 1
    %s855 = scalar_lea.sflag [#allocation3], 1
    %856 = vsyncpa %s855, 1
    %857 = vsyncpa [#allocation6], 1
    %s858 = scalar_lea.sflag [#allocation6], 1
    %859 = vsyncpa %s858, 1
    %860 = vsyncpa [#allocation9], 1
    %s861 = scalar_lea.sflag [#allocation9], 1
    %862 = vsyncpa %s861, 1
    %863 = vsyncpa [#allocation4], 1
    %s864 = scalar_lea.sflag [#allocation4], 1
    %865 = vsyncpa %s864, 1

// kernel: decoder_forward.21
$region0: #{decoder_forward.21}
  #allocation0 [shape = 'u32[]', space=smem, size = 0x4, offset = 0x4, fixed_abs, tag = 'smem constant byte address 0x4 - core index']
  #allocation1 [shape = 'u32[144,128]{1,0:T(1,128)}', space=vmem, size = 0x12000, scoped, tag = 'internal scratch']
  #allocation2 [shape = 'f32[16,32]{1,0:T(8,128)}', space=vmem, size = 0x2000, scoped, tag = 'scratch operand']
  %s0 = inlined_call_operand.hbm [shape: f32[16,32], index: 0, kind: input, shape index: {}]
  %s1 = inlined_call_operand.hbm [shape: bf16[32,32], index: 1, kind: input, shape index: {}]
  %s2 = inlined_call_operand.hbm [shape: f32[1,32], index: 2, kind: input, shape index: {}]
  %s3 = inlined_call_operand.hbm [shape: f32[16,32], index: 3, kind: input, shape index: {}]
  %s4 = inlined_call_operand.hbm [shape: f32[16,32], index: 4, kind: output, shape index: {}]
  %s5 = sld [smem:[#allocation0]]
  $region50: #{decoder_forward.21} parent=0
    _
  %s7 = ssub.s32 1, %s5
  %s8 = scalar_select 0, %s7, %s5
  $region1: #{decoder_forward.21} parent=0
    #allocation3 [shape = 'u8[8192]{0}', space=vmem, size = 0x2000, scoped, tag = 'input window, operand 0, single buffered']
    #allocation4 [shape = 's32[1]{0}', space=sflag, size = 0x4, scoped, tag = 'scoped memory for decoder_forward.21']
    #allocation5 [shape = 's32[1]{0}', space=sflag, size = 0x4, scoped, tag = 'scoped memory for decoder_forward.21']
    #allocation6 [shape = 'u8[8192]{0}', space=vmem, size = 0x2000, scoped, tag = 'input window, operand 1, single buffered']
    #allocation7 [shape = 's32[1]{0}', space=sflag, size = 0x4, scoped, tag = 'scoped memory for decoder_forward.21']
    #allocation8 [shape = 'u8[512]{0}', space=vmem, size = 0x400, scoped, tag = 'input window, operand 2, single buffered']
    #allocation9 [shape = 'u8[8192]{0}', space=vmem, size = 0x2000, scoped, tag = 'input window, operand 3, single buffered']
    #allocation10 [shape = 's32[1]{0}', space=sflag, size = 0x4, scoped, tag = 'scoped memory for decoder_forward.21']
    #allocation11 [shape = 'u8[8192]{0}', space=vmem, size = 0x2000, scoped, tag = 'output window, operand 0, single buffered']
    %9 = vsyncpa [#allocation4], 0
    %10 = vsyncpa [#allocation7], 0
    %11 = vsyncpa [#allocation10], 0
    %12 = vsyncpa [#allocation5], 0
    // Predicated region
    $region2: #{decoder_forward.21} parent=1 // pred_check
      _
    $region3: #{decoder_forward.21} parent=1 // pred_check_branch
      %14 = sbr.rel (0) target = $region5
    $region4: #{decoder_forward.21} parent=1 // pred_region
      %s16 = ssub.s32 256, 256
      %17 = vsyncadd [#allocation4], %s16
      %s18 = sshll.u32 [#allocation3], 4
      %s19 = int_to_ptr.vmem [resolvable:$true] %s18
      %24 = dma.hbm_to_vmem [thread:$0]  %s0, 256, %s19, [#allocation4], 128, 128, 8
    $region5: #{decoder_forward.21} parent=1 // pred_fallthru
      _
    // Predicated region
    $region6: #{decoder_forward.21} parent=1 // pred_check
      _
    $region7: #{decoder_forward.21} parent=1 // pred_check_branch
      %26 = sbr.rel (0) target = $region9
    $region8: #{decoder_forward.21} parent=1 // pred_region
      %s28 = ssub.s32 256, 256
      %29 = vsyncadd [#allocation7], %s28
      %s30 = sshll.u32 [#allocation6], 4
      %s31 = int_to_ptr.vmem [resolvable:$true] %s30
      %36 = dma.hbm_to_vmem [thread:$0]  %s1, 256, %s31, [#allocation7], 64, 64, 4
    $region9: #{decoder_forward.21} parent=1 // pred_fallthru
      _
    // Predicated region
    $region10: #{decoder_forward.21} parent=1 // pred_check
      _
    $region11: #{decoder_forward.21} parent=1 // pred_check_branch
      %38 = sbr.rel (0) target = $region13
    $region12: #{decoder_forward.21} parent=1 // pred_region
      %s40 = ssub.s32 16, 16
      %41 = vsyncadd [#allocation7], %s40
      %s43 = sshll.u32 [#allocation8], 4
      %s44 = int_to_ptr.vmem [resolvable:$true] %s43
      %46 = dma.hbm_to_vmem [thread:$0]  %s2, 16, %s44, [#allocation7]
    $region13: #{decoder_forward.21} parent=1 // pred_fallthru
      _
    // Predicated region
    $region14: #{decoder_forward.21} parent=1 // pred_check
      _
    $region15: #{decoder_forward.21} parent=1 // pred_check_branch
      %48 = sbr.rel (0) target = $region17
    $region16: #{decoder_forward.21} parent=1 // pred_region
      %s50 = ssub.s32 256, 256
      %51 = vsyncadd [#allocation10], %s50
      %s52 = sshll.u32 [#allocation9], 4
      %s53 = int_to_ptr.vmem [resolvable:$true] %s52
      %58 = dma.hbm_to_vmem [thread:$0]  %s3, 256, %s53, [#allocation10], 128, 128, 8
    $region17: #{decoder_forward.21} parent=1 // pred_fallthru
      _
    // Predicated region
    $region18: #{decoder_forward.21} parent=1 // pred_check
      _
    $region19: #{decoder_forward.21} parent=1 // pred_check_branch
      %60 = sbr.rel (0) target = $region21
    $region20: #{decoder_forward.21} parent=1 // pred_region
      %61 = dma.done [#allocation4], 256
    $region21: #{decoder_forward.21} parent=1 // pred_fallthru
      _
    // Predicated region
    $region22: #{decoder_forward.21} parent=1 // pred_check
      _
    $region23: #{decoder_forward.21} parent=1 // pred_check_branch
      %63 = sbr.rel (0) target = $region25
    $region24: #{decoder_forward.21} parent=1 // pred_region
      %64 = dma.done [#allocation7], 256
    $region25: #{decoder_forward.21} parent=1 // pred_fallthru
      _
    // Predicated region
    $region26: #{decoder_forward.21} parent=1 // pred_check
      _
    $region27: #{decoder_forward.21} parent=1 // pred_check_branch
      %66 = sbr.rel (0) target = $region29
    $region28: #{decoder_forward.21} parent=1 // pred_region
      %67 = dma.done [#allocation7], 16
    $region29: #{decoder_forward.21} parent=1 // pred_fallthru
      _
    // Predicated region
    $region30: #{decoder_forward.21} parent=1 // pred_check
      _
    $region31: #{decoder_forward.21} parent=1 // pred_check_branch
      %69 = sbr.rel (0) target = $region33
    $region32: #{decoder_forward.21} parent=1 // pred_region
      %70 = dma.done [#allocation10], 256
    $region33: #{decoder_forward.21} parent=1 // pred_fallthru
      _
    %p72 = scmp.eq.s32.totalorder 0, 0
    // Predicated region
    $region34: #{decoder_forward.21} parent=1 // pred_check
      %p73 = pneg %p72
    $region35: #{decoder_forward.21} parent=1 // pred_check_branch
      %75 = sbr.rel (%p73) target = $region37
    $region36: #{decoder_forward.21} parent=1 // pred_region
      %vm76 = vcmask 261120
      %77 = vst.msk [vmem:[#allocation2] sm:$0xff] %vm76, 0.0
      %78 = vst.msk [vmem:[#allocation2 + $0x8] sm:$0xff] %vm76, 0.0
    $region37: #{decoder_forward.21} parent=1 // pred_fallthru
      _
    %v79 = vld [vmem:[#allocation2] sm:$0xff]
    %v80 = vld [vmem:[#allocation2 + $0x8] sm:$0xff]
    %v81 = vld [vmem:[#allocation3] sm:$0xff]
    %v82 = vld [vmem:[#allocation3 + $0x8] sm:$0xff]
    %v83 = vpack.c.bf16 %v82, %v81
    %v84 = vld [vmem:[#allocation6] sm:$0xf]
    %v85 = vld [vmem:[#allocation6 + $0x4] sm:$0xf]
    %v86 = vld [vmem:[#allocation6 + $0x8] sm:$0xf]
    %v87 = vld [vmem:[#allocation6 + $0xc] sm:$0xf]
    %v92 = vunpack.c.l.b16 %v84
    %v93 = vunpack.c.l.b16 %v85
    %v94 = vunpack.c.l.b16 %v86
    %v95 = vunpack.c.l.b16 %v87
    %v96 = vpack.c.b16 %v93, %v92
    %v97 = vpack.c.b16 %v95, %v94
    %vm100 = vcmask 261120
    %v102 = vsel %vm100, %v83, 0
    %104 = vmatprep.subr.bf16.mxu0 0
    %105 = vmatpush1.bf16.msra.mxu0 %v96
    %106 = vmatprep.subr.bf16.mxu0 0
    %107 = vmatpush1.bf16.msra.mxu0 %v97
    %108 = vmatprep.subr.bf16.mxu0 0
    %109 = vmatpush1.bf16.msra.mxu0 0
    %110 = vmatprep.subr.bf16.mxu0 0
    %111 = vmatpush1.bf16.msra.mxu0 0
    %112 = vmatprep.subr.bf16.mxu0 0
    %113 = vmatpush1.bf16.msra.mxu0 0
    %114 = vmatprep.subr.bf16.mxu0 0
    %115 = vmatpush1.bf16.msra.mxu0 0
    %116 = vmatprep.subr.bf16.mxu0 0
    %117 = vmatpush1.bf16.msra.mxu0 0
    %118 = vmatprep.subr.bf16.mxu0 0
    %119 = vmatpush1.bf16.msra.mxu0 0
    %120 = vmatprep.subr.bf16.mxu0 0
    %121 = vmatpush1.bf16.msra.mxu0 0
    %122 = vmatprep.subr.bf16.mxu0 0
    %123 = vmatpush1.bf16.msra.mxu0 0
    %124 = vmatprep.subr.bf16.mxu0 0
    %125 = vmatpush1.bf16.msra.mxu0 0
    %126 = vmatprep.subr.bf16.mxu0 0
    %127 = vmatpush1.bf16.msra.mxu0 0
    %128 = vmatprep.subr.bf16.mxu0 0
    %129 = vmatpush1.bf16.msra.mxu0 0
    %130 = vmatprep.subr.bf16.mxu0 0
    %131 = vmatpush1.bf16.msra.mxu0 0
    %132 = vmatprep.subr.bf16.mxu0 0
    %133 = vmatpush1.bf16.msra.mxu0 0
    %134 = vmatprep.subr.bf16.mxu0 0
    %135 = vmatpush1.bf16.msra.mxu0 0
    %136 = vmatprep.mubr.bf16.mxu0 0
    %137 = vmatmul.mubr.bf16.gmra.mrb[0].mxu0 %v102
    %v138 = vpop.f32.mrb[0].mxu0
    %v139 = vadd.f32 0.0, %v138
    %v140 = vpop.f32.mrb[0].mxu0
    %v141 = vpop.f32.mrb[0].mxu0
    %v142 = vadd.f32 0.0, %v141
    %v143 = vpop.f32.mrb[0].mxu0
    %144 = vdwg.mxu0
    %v145 = vadd.f32 %v79, %v139
    %v146 = vadd.f32 %v80, %v142
    %147 = vst.msk [vmem:[#allocation2] sm:$0xff] %vm100, %v145
    %148 = vst.msk [vmem:[#allocation2 + $0x8] sm:$0xff] %vm100, %v146
    // Predicated region
    $region38: #{decoder_forward.21} parent=1 // pred_check
      %p149 = pneg %p72
    $region39: #{decoder_forward.21} parent=1 // pred_check_branch
      %151 = sbr.rel (%p149) target = $region41
    $region40: #{decoder_forward.21} parent=1 // pred_region
      %v152 = vld [vmem:[#allocation2] sm:$0xff]
      %v153 = vld [vmem:[#allocation2 + $0x8] sm:$0xff]
      %v154 = vld [vmem:[#allocation8] sm:$0x1]
      %v156 = vlaneseq
      %v157 = vshrl.u32 %v156, 7
      %v158 = vsub.s32 0, %v157
      %v159 = vrot.slane %v154, %v158
      %v161 = vadd.f32 %v152, %v159
      %v162 = vadd.f32 %v153, %v159
      %v163 = vld [vmem:[#allocation9] sm:$0xff]
      %v164 = vld [vmem:[#allocation9 + $0x8] sm:$0xff]
      %v165 = vadd.f32 %v161, %v163
      %v166 = vadd.f32 %v162, %v164
      %167 = vst.msk [vmem:[#allocation11] sm:$0xff] %vm100, %v165
      %168 = vst.msk [vmem:[#allocation11 + $0x8] sm:$0xff] %vm100, %v166
    $region41: #{decoder_forward.21} parent=1 // pred_fallthru
      _
    // Predicated region
    $region42: #{decoder_forward.21} parent=1 // pred_check
      _
    $region43: #{decoder_forward.21} parent=1 // pred_check_branch
      %170 = sbr.rel (0) target = $region45
    $region44: #{decoder_forward.21} parent=1 // pred_region
      %s172 = ssub.s32 256, 256
      %173 = vsyncadd [#allocation5], %s172
      %s174 = sshll.u32 [#allocation11], 4
      %s175 = int_to_ptr.vmem [resolvable:$true] %s174
      %180 = dma.vmem_to_hbm [thread:$0]  %s175, 256, %s4, [#allocation5], 128, 128, 8
    $region45: #{decoder_forward.21} parent=1 // pred_fallthru
      _
    // Predicated region
    $region46: #{decoder_forward.21} parent=1 // pred_check
      _
    $region47: #{decoder_forward.21} parent=1 // pred_check_branch
      %182 = sbr.rel (0) target = $region49
    $region48: #{decoder_forward.21} parent=1 // pred_region
      %183 = dma.done [#allocation5], 256
    $region49: #{decoder_forward.21} parent=1 // pred_fallthru
      _
    %184 = vsyncpa [#allocation4], 1
    %185 = vsyncpa [#allocation7], 1
    %186 = vsyncpa [#allocation10], 1
    %187 = vsyncpa [#allocation5], 1

// kernel: decoder_forward.19
$region0: #{decoder_forward.19}
  #allocation0 [shape = 'u32[]', space=smem, size = 0x4, offset = 0x4, fixed_abs, tag = 'smem constant byte address 0x4 - core index']
  #allocation1 [shape = 'u32[144,128]{1,0:T(1,128)}', space=vmem, size = 0x12000, scoped, tag = 'internal scratch']
  #allocation2 [shape = 'bf16[16,32]{1,0:T(16,128)(2,1)}', space=vmem, size = 0x1000, scoped, tag = 'scratch operand']
  %s0 = inlined_call_operand.hbm [shape: f32[16,32], index: 0, kind: input, shape index: {}]
  %s1 = inlined_call_operand.hbm [shape: f32[1,32], index: 1, kind: input, shape index: {}]
  %s2 = inlined_call_operand.hbm [shape: f32[1,32], index: 2, kind: input, shape index: {}]
  %s3 = inlined_call_operand.hbm [shape: bf16[32,96], index: 3, kind: input, shape index: {}]
  %s4 = inlined_call_operand.hbm [shape: f32[1,96], index: 4, kind: input, shape index: {}]
  %s5 = inlined_call_operand.hbm [shape: f32[16,96], index: 5, kind: output, shape index: {}]
  %s6 = sld [smem:[#allocation0]]
  $region54: #{decoder_forward.19} parent=0
    _
  %s8 = ssub.s32 1, %s6
  %s9 = scalar_select 0, %s8, %s6
  $region1: #{decoder_forward.19} parent=0
    #allocation3 [shape = 'u8[8192]{0}', space=vmem, size = 0x2000, scoped, tag = 'input window, operand 0, single buffered']
    #allocation4 [shape = 's32[1]{0}', space=sflag, size = 0x4, scoped, tag = 'scoped memory for decoder_forward.19']
    #allocation5 [shape = 's32[1]{0}', space=sflag, size = 0x4, scoped, tag = 'scoped memory for decoder_forward.19']
    #allocation6 [shape = 'u8[512]{0}', space=vmem, size = 0x400, scoped, tag = 'input window, operand 1, single buffered']
    #allocation7 [shape = 's32[1]{0}', space=sflag, size = 0x4, scoped, tag = 'scoped memory for decoder_forward.19']
    #allocation8 [shape = 'u8[512]{0}', space=vmem, size = 0x400, scoped, tag = 'input window, operand 2, single buffered']
    #allocation9 [shape = 'u8[8192]{0}', space=vmem, size = 0x2000, scoped, tag = 'input window, operand 3, single buffered']
    #allocation10 [shape = 's32[1]{0}', space=sflag, size = 0x4, scoped, tag = 'scoped memory for decoder_forward.19']
    #allocation11 [shape = 'u8[512]{0}', space=vmem, size = 0x400, scoped, tag = 'input window, operand 4, single buffered']
    #allocation12 [shape = 'u8[8192]{0}', space=vmem, size = 0x2000, scoped, tag = 'output window, operand 0, single buffered']
    %10 = vsyncpa [#allocation4], 0
    %11 = vsyncpa [#allocation7], 0
    %12 = vsyncpa [#allocation10], 0
    %13 = vsyncpa [#allocation5], 0
    // Predicated region
    $region2: #{decoder_forward.19} parent=1 // pred_check
      _
    $region3: #{decoder_forward.19} parent=1 // pred_check_branch
      %15 = sbr.rel (0) target = $region5
    $region4: #{decoder_forward.19} parent=1 // pred_region
      %s17 = ssub.s32 256, 256
      %18 = vsyncadd [#allocation4], %s17
      %s19 = sshll.u32 [#allocation3], 4
      %s20 = int_to_ptr.vmem [resolvable:$true] %s19
      %25 = dma.hbm_to_vmem [thread:$0]  %s0, 256, %s20, [#allocation4], 128, 128, 8
    $region5: #{decoder_forward.19} parent=1 // pred_fallthru
      _
    // Predicated region
    $region6: #{decoder_forward.19} parent=1 // pred_check
      _
    $region7: #{decoder_forward.19} parent=1 // pred_check_branch
      %27 = sbr.rel (0) target = $region9
    $region8: #{decoder_forward.19} parent=1 // pred_region
      %s29 = ssub.s32 16, 16
      %30 = vsyncadd [#allocation7], %s29
      %s32 = sshll.u32 [#allocation6], 4
      %s33 = int_to_ptr.vmem [resolvable:$true] %s32
      %35 = dma.hbm_to_vmem [thread:$0]  %s1, 16, %s33, [#allocation7]
    $region9: #{decoder_forward.19} parent=1 // pred_fallthru
      _
    // Predicated region
    $region10: #{decoder_forward.19} parent=1 // pred_check
      _
    $region11: #{decoder_forward.19} parent=1 // pred_check_branch
      %37 = sbr.rel (0) target = $region13
    $region12: #{decoder_forward.19} parent=1 // pred_region
      %s39 = ssub.s32 16, 16
      %40 = vsyncadd [#allocation7], %s39
      %s42 = sshll.u32 [#allocation8], 4
      %s43 = int_to_ptr.vmem [resolvable:$true] %s42
      %45 = dma.hbm_to_vmem [thread:$0]  %s2, 16, %s43, [#allocation7]
    $region13: #{decoder_forward.19} parent=1 // pred_fallthru
      _
    // Predicated region
    $region14: #{decoder_forward.19} parent=1 // pred_check
      _
    $region15: #{decoder_forward.19} parent=1 // pred_check_branch
      %47 = sbr.rel (0) target = $region17
    $region16: #{decoder_forward.19} parent=1 // pred_region
      %s49 = ssub.s32 256, 256
      %50 = vsyncadd [#allocation10], %s49
      %s51 = sshll.u32 [#allocation9], 4
      %s52 = int_to_ptr.vmem [resolvable:$true] %s51
      %57 = dma.hbm_to_vmem [thread:$0]  %s3, 256, %s52, [#allocation10], 64, 64, 4
    $region17: #{decoder_forward.19} parent=1 // pred_fallthru
      _
    // Predicated region
    $region18: #{decoder_forward.19} parent=1 // pred_check
      _
    $region19: #{decoder_forward.19} parent=1 // pred_check_branch
      %59 = sbr.rel (0) target = $region21
    $region20: #{decoder_forward.19} parent=1 // pred_region
      %s61 = ssub.s32 16, 16
      %62 = vsyncadd [#allocation10], %s61
      %s64 = sshll.u32 [#allocation11], 4
      %s65 = int_to_ptr.vmem [resolvable:$true] %s64
      %67 = dma.hbm_to_vmem [thread:$0]  %s4, 16, %s65, [#allocation10]
    $region21: #{decoder_forward.19} parent=1 // pred_fallthru
      _
    // Predicated region
    $region22: #{decoder_forward.19} parent=1 // pred_check
      _
    $region23: #{decoder_forward.19} parent=1 // pred_check_branch
      %69 = sbr.rel (0) target = $region25
    $region24: #{decoder_forward.19} parent=1 // pred_region
      %70 = dma.done [#allocation4], 256
    $region25: #{decoder_forward.19} parent=1 // pred_fallthru
      _
    // Predicated region
    $region26: #{decoder_forward.19} parent=1 // pred_check
      _
    $region27: #{decoder_forward.19} parent=1 // pred_check_branch
      %72 = sbr.rel (0) target = $region29
    $region28: #{decoder_forward.19} parent=1 // pred_region
      %73 = dma.done [#allocation7], 16
    $region29: #{decoder_forward.19} parent=1 // pred_fallthru
      _
    // Predicated region
    $region30: #{decoder_forward.19} parent=1 // pred_check
      _
    $region31: #{decoder_forward.19} parent=1 // pred_check_branch
      %75 = sbr.rel (0) target = $region33
    $region32: #{decoder_forward.19} parent=1 // pred_region
      %76 = dma.done [#allocation7], 16
    $region33: #{decoder_forward.19} parent=1 // pred_fallthru
      _
    // Predicated region
    $region34: #{decoder_forward.19} parent=1 // pred_check
      _
    $region35: #{decoder_forward.19} parent=1 // pred_check_branch
      %78 = sbr.rel (0) target = $region37
    $region36: #{decoder_forward.19} parent=1 // pred_region
      %79 = dma.done [#allocation10], 256
    $region37: #{decoder_forward.19} parent=1 // pred_fallthru
      _
    // Predicated region
    $region38: #{decoder_forward.19} parent=1 // pred_check
      _
    $region39: #{decoder_forward.19} parent=1 // pred_check_branch
      %81 = sbr.rel (0) target = $region41
    $region40: #{decoder_forward.19} parent=1 // pred_region
      %82 = dma.done [#allocation10], 16
    $region41: #{decoder_forward.19} parent=1 // pred_fallthru
      _
    %p84 = scmp.eq.s32.totalorder 0, 0
    // Predicated region
    $region42: #{decoder_forward.19} parent=1 // pred_check
      %p85 = pneg %p84
    $region43: #{decoder_forward.19} parent=1 // pred_check_branch
      %87 = sbr.rel (%p85) target = $region45
    $region44: #{decoder_forward.19} parent=1 // pred_region
      %v88 = vld [vmem:[#allocation3] sm:$0xff]
      %v89 = vld [vmem:[#allocation3 + $0x8] sm:$0xff]
      %vm90 = vcmask 261120
      %v91 = vsel %vm90, %v88, 0.0
      %92 = vadd.xlane.f32.xlu0 %v91
      %v93 = vpop.xlane.xlu0 %92
      %v94 = vsel %vm90, %v89, 0.0
      %95 = vadd.xlane.f32.xlu0 %v94
      %v96 = vpop.xlane.xlu0 %95
      %v97 = vrcp.pop 32.0
      %v98 = vmul.f32 %v93, %v97
      %v99 = vmul.f32 %v96, %v97
      %v100 = vsub.f32 %v88, %v98
      %v101 = vsub.f32 %v89, %v99
      %v102 = vmul.f32 %v100, %v100
      %v103 = vmul.f32 %v101, %v101
      %v104 = vsel %vm90, %v102, 0.0
      %105 = vadd.xlane.f32.xlu0 %v104
      %v106 = vpop.xlane.xlu0 %105
      %v107 = vsel %vm90, %v103, 0.0
      %108 = vadd.xlane.f32.xlu0 %v107
      %v109 = vpop.xlane.xlu0 %108
      %v110 = vmul.f32 %v106, %v97
      %v111 = vmul.f32 %v109, %v97
      %v112 = vadd.f32 %v110, 1e-06
      %v113 = vadd.f32 %v111, 1e-06
      %v114 = vrsqrt.pop %v112
      %v115 = vrsqrt.pop %v113
      %v116 = vmul.f32 %v100, %v114
      %v117 = vmul.f32 %v101, %v115
      %v118 = vld [vmem:[#allocation6] sm:$0x1]
      %v120 = vlaneseq
      %v121 = vshrl.u32 %v120, 7
      %v122 = vsub.s32 0, %v121
      %v123 = vrot.slane %v118, %v122
      %v125 = vmul.f32 %v116, %v123
      %v126 = vmul.f32 %v117, %v123
      %v127 = vld [vmem:[#allocation8] sm:$0x1]
      %v129 = vlaneseq
      %v130 = vshrl.u32 %v129, 7
      %v131 = vsub.s32 0, %v130
      %v132 = vrot.slane %v127, %v131
      %v134 = vadd.f32 %v125, %v132
      %v135 = vadd.f32 %v126, %v132
      %v136 = vpack.c.bf16 %v135, %v134
      %137 = vst.msk [vmem:[#allocation2] sm:$0xff] %vm90, %v136
    $region45: #{decoder_forward.19} parent=1 // pred_fallthru
      _
    %v138 = vld [vmem:[#allocation2] sm:$0xff]
    %v139 = vld [vmem:[#allocation9] sm:$0xf]
    %v140 = vld [vmem:[#allocation9 + $0x4] sm:$0xf]
    %v141 = vld [vmem:[#allocation9 + $0x8] sm:$0xf]
    %v142 = vld [vmem:[#allocation9 + $0xc] sm:$0xf]
    %v143 = vld [vmem:[#allocation11] sm:$0x1]
    %v145 = vlaneseq
    %v146 = vshrl.u32 %v145, 7
    %v147 = vsub.s32 0, %v146
    %v148 = vrot.slane %v143, %v147
    %v154 = vunpack.c.l.b16 %v139
    %v155 = vunpack.c.l.b16 %v140
    %v156 = vunpack.c.l.b16 %v141
    %v157 = vunpack.c.l.b16 %v142
    %v158 = vpack.c.b16 %v155, %v154
    %v159 = vpack.c.b16 %v157, %v156
    %vm162 = vcmask 261120
    %v164 = vsel %vm162, %v138, 0
    %166 = vmatprep.subr.bf16.mxu0 0
    %167 = vmatpush1.bf16.msra.mxu0 %v158
    %168 = vmatprep.subr.bf16.mxu0 0
    %169 = vmatpush1.bf16.msra.mxu0 %v159
    %170 = vmatprep.subr.bf16.mxu0 0
    %171 = vmatpush1.bf16.msra.mxu0 0
    %172 = vmatprep.subr.bf16.mxu0 0
    %173 = vmatpush1.bf16.msra.mxu0 0
    %174 = vmatprep.subr.bf16.mxu0 0
    %175 = vmatpush1.bf16.msra.mxu0 0
    %176 = vmatprep.subr.bf16.mxu0 0
    %177 = vmatpush1.bf16.msra.mxu0 0
    %178 = vmatprep.subr.bf16.mxu0 0
    %179 = vmatpush1.bf16.msra.mxu0 0
    %180 = vmatprep.subr.bf16.mxu0 0
    %181 = vmatpush1.bf16.msra.mxu0 0
    %182 = vmatprep.subr.bf16.mxu0 0
    %183 = vmatpush1.bf16.msra.mxu0 0
    %184 = vmatprep.subr.bf16.mxu0 0
    %185 = vmatpush1.bf16.msra.mxu0 0
    %186 = vmatprep.subr.bf16.mxu0 0
    %187 = vmatpush1.bf16.msra.mxu0 0
    %188 = vmatprep.subr.bf16.mxu0 0
    %189 = vmatpush1.bf16.msra.mxu0 0
    %190 = vmatprep.subr.bf16.mxu0 0
    %191 = vmatpush1.bf16.msra.mxu0 0
    %192 = vmatprep.subr.bf16.mxu0 0
    %193 = vmatpush1.bf16.msra.mxu0 0
    %194 = vmatprep.subr.bf16.mxu0 0
    %195 = vmatpush1.bf16.msra.mxu0 0
    %196 = vmatprep.subr.bf16.mxu0 0
    %197 = vmatpush1.bf16.msra.mxu0 0
    %198 = vmatprep.mubr.bf16.mxu0 0
    %199 = vmatmul.mubr.bf16.gmra.mrb[0].mxu0 %v164
    %v200 = vpop.f32.mrb[0].mxu0
    %v201 = vadd.f32 %v148, %v200
    %v202 = vpop.f32.mrb[0].mxu0
    %v203 = vpop.f32.mrb[0].mxu0
    %v204 = vadd.f32 %v148, %v203
    %v205 = vpop.f32.mrb[0].mxu0
    %206 = vdwg.mxu0
    %vm207 = vcmask 785408
    %208 = vst.msk [vmem:[#allocation12] sm:$0xff] %vm207, %v201
    %209 = vst.msk [vmem:[#allocation12 + $0x8] sm:$0xff] %vm207, %v204
    // Predicated region
    $region46: #{decoder_forward.19} parent=1 // pred_check
      _
    $region47: #{decoder_forward.19} parent=1 // pred_check_branch
      %211 = sbr.rel (0) target = $region49
    $region48: #{decoder_forward.19} parent=1 // pred_region
      %s213 = ssub.s32 256, 256
      %214 = vsyncadd [#allocation5], %s213
      %s215 = sshll.u32 [#allocation12], 4
      %s216 = int_to_ptr.vmem [resolvable:$true] %s215
      %221 = dma.vmem_to_hbm [thread:$0]  %s216, 256, %s5, [#allocation5], 128, 128, 8
    $region49: #{decoder_forward.19} parent=1 // pred_fallthru
      _
    // Predicated region
    $region50: #{decoder_forward.19} parent=1 // pred_check
      _
    $region51: #{decoder_forward.19} parent=1 // pred_check_branch
      %223 = sbr.rel (0) target = $region53
    $region52: #{decoder_forward.19} parent=1 // pred_region
      %224 = dma.done [#allocation5], 256
    $region53: #{decoder_forward.19} parent=1 // pred_fallthru
      _
    %225 = vsyncpa [#allocation4], 1
    %226 = vsyncpa [#allocation7], 1
    %227 = vsyncpa [#allocation10], 1
    %228 = vsyncpa [#allocation5], 1

// kernel: decoder_forward.22
$region0: #{decoder_forward.22}
  #allocation0 [shape = 'u32[]', space=smem, size = 0x4, offset = 0x4, fixed_abs, tag = 'smem constant byte address 0x4 - core index']
  #allocation1 [shape = 'u32[144,128]{1,0:T(1,128)}', space=vmem, size = 0x12000, scoped, tag = 'internal scratch']
  #allocation2 [shape = 'bf16[16,32]{1,0:T(16,128)(2,1)}', space=vmem, size = 0x1000, scoped, tag = 'scratch operand']
  %s0 = inlined_call_operand.hbm [shape: f32[16,32], index: 0, kind: input, shape index: {}]
  %s1 = inlined_call_operand.hbm [shape: f32[1,32], index: 1, kind: input, shape index: {}]
  %s2 = inlined_call_operand.hbm [shape: f32[1,32], index: 2, kind: input, shape index: {}]
  %s3 = inlined_call_operand.hbm [shape: bf16[32,32], index: 3, kind: input, shape index: {}]
  %s4 = inlined_call_operand.hbm [shape: f32[1,32], index: 4, kind: input, shape index: {}]
  %s5 = inlined_call_operand.hbm [shape: f32[16,32], index: 5, kind: output, shape index: {}]
  %s6 = sld [smem:[#allocation0]]
  $region54: #{decoder_forward.22} parent=0
    _
  %s8 = ssub.s32 1, %s6
  %s9 = scalar_select 0, %s8, %s6
  $region1: #{decoder_forward.22} parent=0
    #allocation3 [shape = 'u8[8192]{0}', space=vmem, size = 0x2000, scoped, tag = 'input window, operand 0, single buffered']
    #allocation4 [shape = 's32[1]{0}', space=sflag, size = 0x4, scoped, tag = 'scoped memory for decoder_forward.22']
    #allocation5 [shape = 's32[1]{0}', space=sflag, size = 0x4, scoped, tag = 'scoped memory for decoder_forward.22']
    #allocation6 [shape = 'u8[512]{0}', space=vmem, size = 0x400, scoped, tag = 'input window, operand 1, single buffered']
    #allocation7 [shape = 's32[1]{0}', space=sflag, size = 0x4, scoped, tag = 'scoped memory for decoder_forward.22']
    #allocation8 [shape = 'u8[512]{0}', space=vmem, size = 0x400, scoped, tag = 'input window, operand 2, single buffered']
    #allocation9 [shape = 'u8[8192]{0}', space=vmem, size = 0x2000, scoped, tag = 'input window, operand 3, single buffered']
    #allocation10 [shape = 's32[1]{0}', space=sflag, size = 0x4, scoped, tag = 'scoped memory for decoder_forward.22']
    #allocation11 [shape = 'u8[512]{0}', space=vmem, size = 0x400, scoped, tag = 'input window, operand 4, single buffered']
    #allocation12 [shape = 'u8[8192]{0}', space=vmem, size = 0x2000, scoped, tag = 'output window, operand 0, single buffered']
    %10 = vsyncpa [#allocation4], 0
    %11 = vsyncpa [#allocation7], 0
    %12 = vsyncpa [#allocation10], 0
    %13 = vsyncpa [#allocation5], 0
    // Predicated region
    $region2: #{decoder_forward.22} parent=1 // pred_check
      _
    $region3: #{decoder_forward.22} parent=1 // pred_check_branch
      %15 = sbr.rel (0) target = $region5
    $region4: #{decoder_forward.22} parent=1 // pred_region
      %s17 = ssub.s32 256, 256
      %18 = vsyncadd [#allocation4], %s17
      %s19 = sshll.u32 [#allocation3], 4
      %s20 = int_to_ptr.vmem [resolvable:$true] %s19
      %25 = dma.hbm_to_vmem [thread:$0]  %s0, 256, %s20, [#allocation4], 128, 128, 8
    $region5: #{decoder_forward.22} parent=1 // pred_fallthru
      _
    // Predicated region
    $region6: #{decoder_forward.22} parent=1 // pred_check
      _
    $region7: #{decoder_forward.22} parent=1 // pred_check_branch
      %27 = sbr.rel (0) target = $region9
    $region8: #{decoder_forward.22} parent=1 // pred_region
      %s29 = ssub.s32 16, 16
      %30 = vsyncadd [#allocation7], %s29
      %s32 = sshll.u32 [#allocation6], 4
      %s33 = int_to_ptr.vmem [resolvable:$true] %s32
      %35 = dma.hbm_to_vmem [thread:$0]  %s1, 16, %s33, [#allocation7]
    $region9: #{decoder_forward.22} parent=1 // pred_fallthru
      _
    // Predicated region
    $region10: #{decoder_forward.22} parent=1 // pred_check
      _
    $region11: #{decoder_forward.22} parent=1 // pred_check_branch
      %37 = sbr.rel (0) target = $region13
    $region12: #{decoder_forward.22} parent=1 // pred_region
      %s39 = ssub.s32 16, 16
      %40 = vsyncadd [#allocation7], %s39
      %s42 = sshll.u32 [#allocation8], 4
      %s43 = int_to_ptr.vmem [resolvable:$true] %s42
      %45 = dma.hbm_to_vmem [thread:$0]  %s2, 16, %s43, [#allocation7]
    $region13: #{decoder_forward.22} parent=1 // pred_fallthru
      _
    // Predicated region
    $region14: #{decoder_forward.22} parent=1 // pred_check
      _
    $region15: #{decoder_forward.22} parent=1 // pred_check_branch
      %47 = sbr.rel (0) target = $region17
    $region16: #{decoder_forward.22} parent=1 // pred_region
      %s49 = ssub.s32 256, 256
      %50 = vsyncadd [#allocation10], %s49
      %s51 = sshll.u32 [#allocation9], 4
      %s52 = int_to_ptr.vmem [resolvable:$true] %s51
      %57 = dma.hbm_to_vmem [thread:$0]  %s3, 256, %s52, [#allocation10], 64, 64, 4
    $region17: #{decoder_forward.22} parent=1 // pred_fallthru
      _
    // Predicated region
    $region18: #{decoder_forward.22} parent=1 // pred_check
      _
    $region19: #{decoder_forward.22} parent=1 // pred_check_branch
      %59 = sbr.rel (0) target = $region21
    $region20: #{decoder_forward.22} parent=1 // pred_region
      %s61 = ssub.s32 16, 16
      %62 = vsyncadd [#allocation10], %s61
      %s64 = sshll.u32 [#allocation11], 4
      %s65 = int_to_ptr.vmem [resolvable:$true] %s64
      %67 = dma.hbm_to_vmem [thread:$0]  %s4, 16, %s65, [#allocation10]
    $region21: #{decoder_forward.22} parent=1 // pred_fallthru
      _
    // Predicated region
    $region22: #{decoder_forward.22} parent=1 // pred_check
      _
    $region23: #{decoder_forward.22} parent=1 // pred_check_branch
      %69 = sbr.rel (0) target = $region25
    $region24: #{decoder_forward.22} parent=1 // pred_region
      %70 = dma.done [#allocation4], 256
    $region25: #{decoder_forward.22} parent=1 // pred_fallthru
      _
    // Predicated region
    $region26: #{decoder_forward.22} parent=1 // pred_check
      _
    $region27: #{decoder_forward.22} parent=1 // pred_check_branch
      %72 = sbr.rel (0) target = $region29
    $region28: #{decoder_forward.22} parent=1 // pred_region
      %73 = dma.done [#allocation7], 16
    $region29: #{decoder_forward.22} parent=1 // pred_fallthru
      _
    // Predicated region
    $region30: #{decoder_forward.22} parent=1 // pred_check
      _
    $region31: #{decoder_forward.22} parent=1 // pred_check_branch
      %75 = sbr.rel (0) target = $region33
    $region32: #{decoder_forward.22} parent=1 // pred_region
      %76 = dma.done [#allocation7], 16
    $region33: #{decoder_forward.22} parent=1 // pred_fallthru
      _
    // Predicated region
    $region34: #{decoder_forward.22} parent=1 // pred_check
      _
    $region35: #{decoder_forward.22} parent=1 // pred_check_branch
      %78 = sbr.rel (0) target = $region37
    $region36: #{decoder_forward.22} parent=1 // pred_region
      %79 = dma.done [#allocation10], 256
    $region37: #{decoder_forward.22} parent=1 // pred_fallthru
      _
    // Predicated region
    $region38: #{decoder_forward.22} parent=1 // pred_check
      _
    $region39: #{decoder_forward.22} parent=1 // pred_check_branch
      %81 = sbr.rel (0) target = $region41
    $region40: #{decoder_forward.22} parent=1 // pred_region
      %82 = dma.done [#allocation10], 16
    $region41: #{decoder_forward.22} parent=1 // pred_fallthru
      _
    %p84 = scmp.eq.s32.totalorder 0, 0
    // Predicated region
    $region42: #{decoder_forward.22} parent=1 // pred_check
      %p85 = pneg %p84
    $region43: #{decoder_forward.22} parent=1 // pred_check_branch
      %87 = sbr.rel (%p85) target = $region45
    $region44: #{decoder_forward.22} parent=1 // pred_region
      %v88 = vld [vmem:[#allocation3] sm:$0xff]
      %v89 = vld [vmem:[#allocation3 + $0x8] sm:$0xff]
      %vm90 = vcmask 261120
      %v91 = vsel %vm90, %v88, 0.0
      %92 = vadd.xlane.f32.xlu0 %v91
      %v93 = vpop.xlane.xlu0 %92
      %v94 = vsel %vm90, %v89, 0.0
      %95 = vadd.xlane.f32.xlu0 %v94
      %v96 = vpop.xlane.xlu0 %95
      %v97 = vrcp.pop 32.0
      %v98 = vmul.f32 %v93, %v97
      %v99 = vmul.f32 %v96, %v97
      %v100 = vsub.f32 %v88, %v98
      %v101 = vsub.f32 %v89, %v99
      %v102 = vmul.f32 %v100, %v100
      %v103 = vmul.f32 %v101, %v101
      %v104 = vsel %vm90, %v102, 0.0
      %105 = vadd.xlane.f32.xlu0 %v104
      %v106 = vpop.xlane.xlu0 %105
      %v107 = vsel %vm90, %v103, 0.0
      %108 = vadd.xlane.f32.xlu0 %v107
      %v109 = vpop.xlane.xlu0 %108
      %v110 = vmul.f32 %v106, %v97
      %v111 = vmul.f32 %v109, %v97
      %v112 = vadd.f32 %v110, 1e-06
      %v113 = vadd.f32 %v111, 1e-06
      %v114 = vrsqrt.pop %v112
      %v115 = vrsqrt.pop %v113
      %v116 = vmul.f32 %v100, %v114
      %v117 = vmul.f32 %v101, %v115
      %v118 = vld [vmem:[#allocation6] sm:$0x1]
      %v120 = vlaneseq
      %v121 = vshrl.u32 %v120, 7
      %v122 = vsub.s32 0, %v121
      %v123 = vrot.slane %v118, %v122
      %v125 = vmul.f32 %v116, %v123
      %v126 = vmul.f32 %v117, %v123
      %v127 = vld [vmem:[#allocation8] sm:$0x1]
      %v129 = vlaneseq
      %v130 = vshrl.u32 %v129, 7
      %v131 = vsub.s32 0, %v130
      %v132 = vrot.slane %v127, %v131
      %v134 = vadd.f32 %v125, %v132
      %v135 = vadd.f32 %v126, %v132
      %v136 = vpack.c.bf16 %v135, %v134
      %137 = vst.msk [vmem:[#allocation2] sm:$0xff] %vm90, %v136
    $region45: #{decoder_forward.22} parent=1 // pred_fallthru
      _
    %v138 = vld [vmem:[#allocation2] sm:$0xff]
    %v139 = vld [vmem:[#allocation9] sm:$0xf]
    %v140 = vld [vmem:[#allocation9 + $0x4] sm:$0xf]
    %v141 = vld [vmem:[#allocation9 + $0x8] sm:$0xf]
    %v142 = vld [vmem:[#allocation9 + $0xc] sm:$0xf]
    %v143 = vld [vmem:[#allocation11] sm:$0x1]
    %v145 = vlaneseq
    %v146 = vshrl.u32 %v145, 7
    %v147 = vsub.s32 0, %v146
    %v148 = vrot.slane %v143, %v147
    %v154 = vunpack.c.l.b16 %v139
    %v155 = vunpack.c.l.b16 %v140
    %v156 = vunpack.c.l.b16 %v141
    %v157 = vunpack.c.l.b16 %v142
    %v158 = vpack.c.b16 %v155, %v154
    %v159 = vpack.c.b16 %v157, %v156
    %vm162 = vcmask 261120
    %v164 = vsel %vm162, %v138, 0
    %166 = vmatprep.subr.bf16.mxu0 0
    %167 = vmatpush1.bf16.msra.mxu0 %v158
    %168 = vmatprep.subr.bf16.mxu0 0
    %169 = vmatpush1.bf16.msra.mxu0 %v159
    %170 = vmatprep.subr.bf16.mxu0 0
    %171 = vmatpush1.bf16.msra.mxu0 0
    %172 = vmatprep.subr.bf16.mxu0 0
    %173 = vmatpush1.bf16.msra.mxu0 0
    %174 = vmatprep.subr.bf16.mxu0 0
    %175 = vmatpush1.bf16.msra.mxu0 0
    %176 = vmatprep.subr.bf16.mxu0 0
    %177 = vmatpush1.bf16.msra.mxu0 0
    %178 = vmatprep.subr.bf16.mxu0 0
    %179 = vmatpush1.bf16.msra.mxu0 0
    %180 = vmatprep.subr.bf16.mxu0 0
    %181 = vmatpush1.bf16.msra.mxu0 0
    %182 = vmatprep.subr.bf16.mxu0 0
    %183 = vmatpush1.bf16.msra.mxu0 0
    %184 = vmatprep.subr.bf16.mxu0 0
    %185 = vmatpush1.bf16.msra.mxu0 0
    %186 = vmatprep.subr.bf16.mxu0 0
    %187 = vmatpush1.bf16.msra.mxu0 0
    %188 = vmatprep.subr.bf16.mxu0 0
    %189 = vmatpush1.bf16.msra.mxu0 0
    %190 = vmatprep.subr.bf16.mxu0 0
    %191 = vmatpush1.bf16.msra.mxu0 0
    %192 = vmatprep.subr.bf16.mxu0 0
    %193 = vmatpush1.bf16.msra.mxu0 0
    %194 = vmatprep.subr.bf16.mxu0 0
    %195 = vmatpush1.bf16.msra.mxu0 0
    %196 = vmatprep.subr.bf16.mxu0 0
    %197 = vmatpush1.bf16.msra.mxu0 0
    %198 = vmatprep.mubr.bf16.mxu0 0
    %199 = vmatmul.mubr.bf16.gmra.mrb[0].mxu0 %v164
    %v200 = vpop.f32.mrb[0].mxu0
    %v201 = vadd.f32 %v148, %v200
    %v202 = vpop.f32.mrb[0].mxu0
    %v203 = vpop.f32.mrb[0].mxu0
    %v204 = vadd.f32 %v148, %v203
    %v205 = vpop.f32.mrb[0].mxu0
    %206 = vdwg.mxu0
    %207 = vst.msk [vmem:[#allocation12] sm:$0xff] %vm162, %v201
    %208 = vst.msk [vmem:[#allocation12 + $0x8] sm:$0xff] %vm162, %v204
    // Predicated region
    $region46: #{decoder_forward.22} parent=1 // pred_check
      _
    $region47: #{decoder_forward.22} parent=1 // pred_check_branch
      %210 = sbr.rel (0) target = $region49
    $region48: #{decoder_forward.22} parent=1 // pred_region
      %s212 = ssub.s32 256, 256
      %213 = vsyncadd [#allocation5], %s212
      %s214 = sshll.u32 [#allocation12], 4
      %s215 = int_to_ptr.vmem [resolvable:$true] %s214
      %220 = dma.vmem_to_hbm [thread:$0]  %s215, 256, %s5, [#allocation5], 128, 128, 8
    $region49: #{decoder_forward.22} parent=1 // pred_fallthru
      _
    // Predicated region
    $region50: #{decoder_forward.22} parent=1 // pred_check
      _
    $region51: #{decoder_forward.22} parent=1 // pred_check_branch
      %222 = sbr.rel (0) target = $region53
    $region52: #{decoder_forward.22} parent=1 // pred_region
      %223 = dma.done [#allocation5], 256
    $region53: #{decoder_forward.22} parent=1 // pred_fallthru
      _
    %224 = vsyncpa [#allocation4], 1
    %225 = vsyncpa [#allocation7], 1
    %226 = vsyncpa [#allocation10], 1
    %227 = vsyncpa [#allocation5], 1

// kernel: decoder_forward.26
$region0: #{decoder_forward.26}
  #allocation0 [shape = 'u32[]', space=smem, size = 0x4, offset = 0x4, fixed_abs, tag = 'smem constant byte address 0x4 - core index']
  #allocation1 [shape = 'u32[144,128]{1,0:T(1,128)}', space=vmem, size = 0x12000, scoped, tag = 'internal scratch']
  #allocation2 [shape = 'bf16[16,32]{1,0:T(16,128)(2,1)}', space=vmem, size = 0x1000, scoped, tag = 'scratch operand']
  %s0 = inlined_call_operand.hbm [shape: f32[16,32], index: 0, kind: input, shape index: {}]
  %s1 = inlined_call_operand.hbm [shape: f32[1,32], index: 1, kind: input, shape index: {}]
  %s2 = inlined_call_operand.hbm [shape: f32[1,32], index: 2, kind: input, shape index: {}]
  %s3 = inlined_call_operand.hbm [shape: bf16[32,64], index: 3, kind: input, shape index: {}]
  %s4 = inlined_call_operand.hbm [shape: f32[1,64], index: 4, kind: input, shape index: {}]
  %s5 = inlined_call_operand.hbm [shape: f32[16,64], index: 5, kind: output, shape index: {}]
  %s6 = sld [smem:[#allocation0]]
  $region54: #{decoder_forward.26} parent=0
    _
  %s8 = ssub.s32 1, %s6
  %s9 = scalar_select 0, %s8, %s6
  $region1: #{decoder_forward.26} parent=0
    #allocation3 [shape = 'u8[8192]{0}', space=vmem, size = 0x2000, scoped, tag = 'input window, operand 0, single buffered']
    #allocation4 [shape = 's32[1]{0}', space=sflag, size = 0x4, scoped, tag = 'scoped memory for decoder_forward.26']
    #allocation5 [shape = 's32[1]{0}', space=sflag, size = 0x4, scoped, tag = 'scoped memory for decoder_forward.26']
    #allocation6 [shape = 'u8[512]{0}', space=vmem, size = 0x400, scoped, tag = 'input window, operand 1, single buffered']
    #allocation7 [shape = 's32[1]{0}', space=sflag, size = 0x4, scoped, tag = 'scoped memory for decoder_forward.26']
    #allocation8 [shape = 'u8[512]{0}', space=vmem, size = 0x400, scoped, tag = 'input window, operand 2, single buffered']
    #allocation9 [shape = 'u8[8192]{0}', space=vmem, size = 0x2000, scoped, tag = 'input window, operand 3, single buffered']
    #allocation10 [shape = 's32[1]{0}', space=sflag, size = 0x4, scoped, tag = 'scoped memory for decoder_forward.26']
    #allocation11 [shape = 'u8[512]{0}', space=vmem, size = 0x400, scoped, tag = 'input window, operand 4, single buffered']
    #allocation12 [shape = 'u8[8192]{0}', space=vmem, size = 0x2000, scoped, tag = 'output window, operand 0, single buffered']
    %10 = vsyncpa [#allocation4], 0
    %11 = vsyncpa [#allocation7], 0
    %12 = vsyncpa [#allocation10], 0
    %13 = vsyncpa [#allocation5], 0
    // Predicated region
    $region2: #{decoder_forward.26} parent=1 // pred_check
      _
    $region3: #{decoder_forward.26} parent=1 // pred_check_branch
      %15 = sbr.rel (0) target = $region5
    $region4: #{decoder_forward.26} parent=1 // pred_region
      %s17 = ssub.s32 256, 256
      %18 = vsyncadd [#allocation4], %s17
      %s19 = sshll.u32 [#allocation3], 4
      %s20 = int_to_ptr.vmem [resolvable:$true] %s19
      %25 = dma.hbm_to_vmem [thread:$0]  %s0, 256, %s20, [#allocation4], 128, 128, 8
    $region5: #{decoder_forward.26} parent=1 // pred_fallthru
      _
    // Predicated region
    $region6: #{decoder_forward.26} parent=1 // pred_check
      _
    $region7: #{decoder_forward.26} parent=1 // pred_check_branch
      %27 = sbr.rel (0) target = $region9
    $region8: #{decoder_forward.26} parent=1 // pred_region
      %s29 = ssub.s32 16, 16
      %30 = vsyncadd [#allocation7], %s29
      %s32 = sshll.u32 [#allocation6], 4
      %s33 = int_to_ptr.vmem [resolvable:$true] %s32
      %35 = dma.hbm_to_vmem [thread:$0]  %s1, 16, %s33, [#allocation7]
    $region9: #{decoder_forward.26} parent=1 // pred_fallthru
      _
    // Predicated region
    $region10: #{decoder_forward.26} parent=1 // pred_check
      _
    $region11: #{decoder_forward.26} parent=1 // pred_check_branch
      %37 = sbr.rel (0) target = $region13
    $region12: #{decoder_forward.26} parent=1 // pred_region
      %s39 = ssub.s32 16, 16
      %40 = vsyncadd [#allocation7], %s39
      %s42 = sshll.u32 [#allocation8], 4
      %s43 = int_to_ptr.vmem [resolvable:$true] %s42
      %45 = dma.hbm_to_vmem [thread:$0]  %s2, 16, %s43, [#allocation7]
    $region13: #{decoder_forward.26} parent=1 // pred_fallthru
      _
    // Predicated region
    $region14: #{decoder_forward.26} parent=1 // pred_check
      _
    $region15: #{decoder_forward.26} parent=1 // pred_check_branch
      %47 = sbr.rel (0) target = $region17
    $region16: #{decoder_forward.26} parent=1 // pred_region
      %s49 = ssub.s32 256, 256
      %50 = vsyncadd [#allocation10], %s49
      %s51 = sshll.u32 [#allocation9], 4
      %s52 = int_to_ptr.vmem [resolvable:$true] %s51
      %57 = dma.hbm_to_vmem [thread:$0]  %s3, 256, %s52, [#allocation10], 64, 64, 4
    $region17: #{decoder_forward.26} parent=1 // pred_fallthru
      _
    // Predicated region
    $region18: #{decoder_forward.26} parent=1 // pred_check
      _
    $region19: #{decoder_forward.26} parent=1 // pred_check_branch
      %59 = sbr.rel (0) target = $region21
    $region20: #{decoder_forward.26} parent=1 // pred_region
      %s61 = ssub.s32 16, 16
      %62 = vsyncadd [#allocation10], %s61
      %s64 = sshll.u32 [#allocation11], 4
      %s65 = int_to_ptr.vmem [resolvable:$true] %s64
      %67 = dma.hbm_to_vmem [thread:$0]  %s4, 16, %s65, [#allocation10]
    $region21: #{decoder_forward.26} parent=1 // pred_fallthru
      _
    // Predicated region
    $region22: #{decoder_forward.26} parent=1 // pred_check
      _
    $region23: #{decoder_forward.26} parent=1 // pred_check_branch
      %69 = sbr.rel (0) target = $region25
    $region24: #{decoder_forward.26} parent=1 // pred_region
      %70 = dma.done [#allocation4], 256
    $region25: #{decoder_forward.26} parent=1 // pred_fallthru
      _
    // Predicated region
    $region26: #{decoder_forward.26} parent=1 // pred_check
      _
    $region27: #{decoder_forward.26} parent=1 // pred_check_branch
      %72 = sbr.rel (0) target = $region29
    $region28: #{decoder_forward.26} parent=1 // pred_region
      %73 = dma.done [#allocation7], 16
    $region29: #{decoder_forward.26} parent=1 // pred_fallthru
      _
    // Predicated region
    $region30: #{decoder_forward.26} parent=1 // pred_check
      _
    $region31: #{decoder_forward.26} parent=1 // pred_check_branch
      %75 = sbr.rel (0) target = $region33
    $region32: #{decoder_forward.26} parent=1 // pred_region
      %76 = dma.done [#allocation7], 16
    $region33: #{decoder_forward.26} parent=1 // pred_fallthru
      _
    // Predicated region
    $region34: #{decoder_forward.26} parent=1 // pred_check
      _
    $region35: #{decoder_forward.26} parent=1 // pred_check_branch
      %78 = sbr.rel (0) target = $region37
    $region36: #{decoder_forward.26} parent=1 // pred_region
      %79 = dma.done [#allocation10], 256
    $region37: #{decoder_forward.26} parent=1 // pred_fallthru
      _
    // Predicated region
    $region38: #{decoder_forward.26} parent=1 // pred_check
      _
    $region39: #{decoder_forward.26} parent=1 // pred_check_branch
      %81 = sbr.rel (0) target = $region41
    $region40: #{decoder_forward.26} parent=1 // pred_region
      %82 = dma.done [#allocation10], 16
    $region41: #{decoder_forward.26} parent=1 // pred_fallthru
      _
    %p84 = scmp.eq.s32.totalorder 0, 0
    // Predicated region
    $region42: #{decoder_forward.26} parent=1 // pred_check
      %p85 = pneg %p84
    $region43: #{decoder_forward.26} parent=1 // pred_check_branch
      %87 = sbr.rel (%p85) target = $region45
    $region44: #{decoder_forward.26} parent=1 // pred_region
      %v88 = vld [vmem:[#allocation3] sm:$0xff]
      %v89 = vld [vmem:[#allocation3 + $0x8] sm:$0xff]
      %vm90 = vcmask 261120
      %v91 = vsel %vm90, %v88, 0.0
      %92 = vadd.xlane.f32.xlu0 %v91
      %v93 = vpop.xlane.xlu0 %92
      %v94 = vsel %vm90, %v89, 0.0
      %95 = vadd.xlane.f32.xlu0 %v94
      %v96 = vpop.xlane.xlu0 %95
      %v97 = vrcp.pop 32.0
      %v98 = vmul.f32 %v93, %v97
      %v99 = vmul.f32 %v96, %v97
      %v100 = vsub.f32 %v88, %v98
      %v101 = vsub.f32 %v89, %v99
      %v102 = vmul.f32 %v100, %v100
      %v103 = vmul.f32 %v101, %v101
      %v104 = vsel %vm90, %v102, 0.0
      %105 = vadd.xlane.f32.xlu0 %v104
      %v106 = vpop.xlane.xlu0 %105
      %v107 = vsel %vm90, %v103, 0.0
      %108 = vadd.xlane.f32.xlu0 %v107
      %v109 = vpop.xlane.xlu0 %108
      %v110 = vmul.f32 %v106, %v97
      %v111 = vmul.f32 %v109, %v97
      %v112 = vadd.f32 %v110, 1e-06
      %v113 = vadd.f32 %v111, 1e-06
      %v114 = vrsqrt.pop %v112
      %v115 = vrsqrt.pop %v113
      %v116 = vmul.f32 %v100, %v114
      %v117 = vmul.f32 %v101, %v115
      %v118 = vld [vmem:[#allocation6] sm:$0x1]
      %v120 = vlaneseq
      %v121 = vshrl.u32 %v120, 7
      %v122 = vsub.s32 0, %v121
      %v123 = vrot.slane %v118, %v122
      %v125 = vmul.f32 %v116, %v123
      %v126 = vmul.f32 %v117, %v123
      %v127 = vld [vmem:[#allocation8] sm:$0x1]
      %v129 = vlaneseq
      %v130 = vshrl.u32 %v129, 7
      %v131 = vsub.s32 0, %v130
      %v132 = vrot.slane %v127, %v131
      %v134 = vadd.f32 %v125, %v132
      %v135 = vadd.f32 %v126, %v132
      %v136 = vpack.c.bf16 %v135, %v134
      %137 = vst.msk [vmem:[#allocation2] sm:$0xff] %vm90, %v136
    $region45: #{decoder_forward.26} parent=1 // pred_fallthru
      _
    %v138 = vld [vmem:[#allocation2] sm:$0xff]
    %v139 = vld [vmem:[#allocation9] sm:$0xf]
    %v140 = vld [vmem:[#allocation9 + $0x4] sm:$0xf]
    %v141 = vld [vmem:[#allocation9 + $0x8] sm:$0xf]
    %v142 = vld [vmem:[#allocation9 + $0xc] sm:$0xf]
    %v143 = vld [vmem:[#allocation11] sm:$0x1]
    %v145 = vlaneseq
    %v146 = vshrl.u32 %v145, 7
    %v147 = vsub.s32 0, %v146
    %v148 = vrot.slane %v143, %v147
    %v154 = vunpack.c.l.b16 %v139
    %v155 = vunpack.c.l.b16 %v140
    %v156 = vunpack.c.l.b16 %v141
    %v157 = vunpack.c.l.b16 %v142
    %v158 = vpack.c.b16 %v155, %v154
    %v159 = vpack.c.b16 %v157, %v156
    %vm162 = vcmask 261120
    %v164 = vsel %vm162, %v138, 0
    %166 = vmatprep.subr.bf16.mxu0 0
    %167 = vmatpush1.bf16.msra.mxu0 %v158
    %168 = vmatprep.subr.bf16.mxu0 0
    %169 = vmatpush1.bf16.msra.mxu0 %v159
    %170 = vmatprep.subr.bf16.mxu0 0
    %171 = vmatpush1.bf16.msra.mxu0 0
    %172 = vmatprep.subr.bf16.mxu0 0
    %173 = vmatpush1.bf16.msra.mxu0 0
    %174 = vmatprep.subr.bf16.mxu0 0
    %175 = vmatpush1.bf16.msra.mxu0 0
    %176 = vmatprep.subr.bf16.mxu0 0
    %177 = vmatpush1.bf16.msra.mxu0 0
    %178 = vmatprep.subr.bf16.mxu0 0
    %179 = vmatpush1.bf16.msra.mxu0 0
    %180 = vmatprep.subr.bf16.mxu0 0
    %181 = vmatpush1.bf16.msra.mxu0 0
    %182 = vmatprep.subr.bf16.mxu0 0
    %183 = vmatpush1.bf16.msra.mxu0 0
    %184 = vmatprep.subr.bf16.mxu0 0
    %185 = vmatpush1.bf16.msra.mxu0 0
    %186 = vmatprep.subr.bf16.mxu0 0
    %187 = vmatpush1.bf16.msra.mxu0 0
    %188 = vmatprep.subr.bf16.mxu0 0
    %189 = vmatpush1.bf16.msra.mxu0 0
    %190 = vmatprep.subr.bf16.mxu0 0
    %191 = vmatpush1.bf16.msra.mxu0 0
    %192 = vmatprep.subr.bf16.mxu0 0
    %193 = vmatpush1.bf16.msra.mxu0 0
    %194 = vmatprep.subr.bf16.mxu0 0
    %195 = vmatpush1.bf16.msra.mxu0 0
    %196 = vmatprep.subr.bf16.mxu0 0
    %197 = vmatpush1.bf16.msra.mxu0 0
    %198 = vmatprep.mubr.bf16.mxu0 0
    %199 = vmatmul.mubr.bf16.gmra.mrb[0].mxu0 %v164
    %v200 = vpop.f32.mrb[0].mxu0
    %v201 = vadd.f32 %v148, %v200
    %v202 = vpop.f32.mrb[0].mxu0
    %v203 = vpop.f32.mrb[0].mxu0
    %v204 = vadd.f32 %v148, %v203
    %v205 = vpop.f32.mrb[0].mxu0
    %206 = vdwg.mxu0
    %v207 = vmax.f32 %v201, 0.0
    %v208 = vmax.f32 %v204, 0.0
    %vm209 = vcmask 523264
    %210 = vst.msk [vmem:[#allocation12] sm:$0xff] %vm209, %v207
    %211 = vst.msk [vmem:[#allocation12 + $0x8] sm:$0xff] %vm209, %v208
    // Predicated region
    $region46: #{decoder_forward.26} parent=1 // pred_check
      _
    $region47: #{decoder_forward.26} parent=1 // pred_check_branch
      %213 = sbr.rel (0) target = $region49
    $region48: #{decoder_forward.26} parent=1 // pred_region
      %s215 = ssub.s32 256, 256
      %216 = vsyncadd [#allocation5], %s215
      %s217 = sshll.u32 [#allocation12], 4
      %s218 = int_to_ptr.vmem [resolvable:$true] %s217
      %223 = dma.vmem_to_hbm [thread:$0]  %s218, 256, %s5, [#allocation5], 128, 128, 8
    $region49: #{decoder_forward.26} parent=1 // pred_fallthru
      _
    // Predicated region
    $region50: #{decoder_forward.26} parent=1 // pred_check
      _
    $region51: #{decoder_forward.26} parent=1 // pred_check_branch
      %225 = sbr.rel (0) target = $region53
    $region52: #{decoder_forward.26} parent=1 // pred_region
      %226 = dma.done [#allocation5], 256
    $region53: #{decoder_forward.26} parent=1 // pred_fallthru
      _
    %227 = vsyncpa [#allocation4], 1
    %228 = vsyncpa [#allocation7], 1
    %229 = vsyncpa [#allocation10], 1
    %230 = vsyncpa [#allocation5], 1

// kernel: decoder_forward.23
$region0: #{decoder_forward.23}
  #allocation0 [shape = 'u32[]', space=smem, size = 0x4, offset = 0x4, fixed_abs, tag = 'smem constant byte address 0x4 - core index']
  #allocation1 [shape = 'u32[144,128]{1,0:T(1,128)}', space=vmem, size = 0x12000, scoped, tag = 'internal scratch']
  #allocation2 [shape = 'f32[16,64]{1,0:T(8,128)}', space=vmem, size = 0x2000, scoped, tag = 'scratch operand']
  %s0 = inlined_call_operand.hbm [shape: f32[16,32], index: 0, kind: input, shape index: {}]
  %s1 = inlined_call_operand.hbm [shape: bf16[32,64], index: 1, kind: input, shape index: {}]
  %s2 = inlined_call_operand.hbm [shape: f32[1,64], index: 2, kind: input, shape index: {}]
  %s3 = inlined_call_operand.hbm [shape: f32[16,64], index: 3, kind: output, shape index: {}]
  %s4 = sld [smem:[#allocation0]]
  $region42: #{decoder_forward.23} parent=0
    _
  %s6 = ssub.s32 1, %s4
  %s7 = scalar_select 0, %s6, %s4
  $region1: #{decoder_forward.23} parent=0
    #allocation3 [shape = 'u8[8192]{0}', space=vmem, size = 0x2000, scoped, tag = 'input window, operand 0, single buffered']
    #allocation4 [shape = 's32[1]{0}', space=sflag, size = 0x4, scoped, tag = 'scoped memory for decoder_forward.23']
    #allocation5 [shape = 's32[1]{0}', space=sflag, size = 0x4, scoped, tag = 'scoped memory for decoder_forward.23']
    #allocation6 [shape = 'u8[8192]{0}', space=vmem, size = 0x2000, scoped, tag = 'input window, operand 1, single buffered']
    #allocation7 [shape = 's32[1]{0}', space=sflag, size = 0x4, scoped, tag = 'scoped memory for decoder_forward.23']
    #allocation8 [shape = 'u8[512]{0}', space=vmem, size = 0x400, scoped, tag = 'input window, operand 2, single buffered']
    #allocation9 [shape = 'u8[8192]{0}', space=vmem, size = 0x2000, scoped, tag = 'output window, operand 0, single buffered']
    %8 = vsyncpa [#allocation4], 0
    %9 = vsyncpa [#allocation7], 0
    %10 = vsyncpa [#allocation5], 0
    // Predicated region
    $region2: #{decoder_forward.23} parent=1 // pred_check
      _
    $region3: #{decoder_forward.23} parent=1 // pred_check_branch
      %12 = sbr.rel (0) target = $region5
    $region4: #{decoder_forward.23} parent=1 // pred_region
      %s14 = ssub.s32 256, 256
      %15 = vsyncadd [#allocation4], %s14
      %s16 = sshll.u32 [#allocation3], 4
      %s17 = int_to_ptr.vmem [resolvable:$true] %s16
      %22 = dma.hbm_to_vmem [thread:$0]  %s0, 256, %s17, [#allocation4], 128, 128, 8
    $region5: #{decoder_forward.23} parent=1 // pred_fallthru
      _
    // Predicated region
    $region6: #{decoder_forward.23} parent=1 // pred_check
      _
    $region7: #{decoder_forward.23} parent=1 // pred_check_branch
      %24 = sbr.rel (0) target = $region9
    $region8: #{decoder_forward.23} parent=1 // pred_region
      %s26 = ssub.s32 256, 256
      %27 = vsyncadd [#allocation7], %s26
      %s28 = sshll.u32 [#allocation6], 4
      %s29 = int_to_ptr.vmem [resolvable:$true] %s28
      %34 = dma.hbm_to_vmem [thread:$0]  %s1, 256, %s29, [#allocation7], 64, 64, 4
    $region9: #{decoder_forward.23} parent=1 // pred_fallthru
      _
    // Predicated region
    $region10: #{decoder_forward.23} parent=1 // pred_check
      _
    $region11: #{decoder_forward.23} parent=1 // pred_check_branch
      %36 = sbr.rel (0) target = $region13
    $region12: #{decoder_forward.23} parent=1 // pred_region
      %s38 = ssub.s32 16, 16
      %39 = vsyncadd [#allocation7], %s38
      %s41 = sshll.u32 [#allocation8], 4
      %s42 = int_to_ptr.vmem [resolvable:$true] %s41
      %44 = dma.hbm_to_vmem [thread:$0]  %s2, 16, %s42, [#allocation7]
    $region13: #{decoder_forward.23} parent=1 // pred_fallthru
      _
    // Predicated region
    $region14: #{decoder_forward.23} parent=1 // pred_check
      _
    $region15: #{decoder_forward.23} parent=1 // pred_check_branch
      %46 = sbr.rel (0) target = $region17
    $region16: #{decoder_forward.23} parent=1 // pred_region
      %47 = dma.done [#allocation4], 256
    $region17: #{decoder_forward.23} parent=1 // pred_fallthru
      _
    // Predicated region
    $region18: #{decoder_forward.23} parent=1 // pred_check
      _
    $region19: #{decoder_forward.23} parent=1 // pred_check_branch
      %49 = sbr.rel (0) target = $region21
    $region20: #{decoder_forward.23} parent=1 // pred_region
      %50 = dma.done [#allocation7], 256
    $region21: #{decoder_forward.23} parent=1 // pred_fallthru
      _
    // Predicated region
    $region22: #{decoder_forward.23} parent=1 // pred_check
      _
    $region23: #{decoder_forward.23} parent=1 // pred_check_branch
      %52 = sbr.rel (0) target = $region25
    $region24: #{decoder_forward.23} parent=1 // pred_region
      %53 = dma.done [#allocation7], 16
    $region25: #{decoder_forward.23} parent=1 // pred_fallthru
      _
    %p55 = scmp.eq.s32.totalorder 0, 0
    // Predicated region
    $region26: #{decoder_forward.23} parent=1 // pred_check
      %p56 = pneg %p55
    $region27: #{decoder_forward.23} parent=1 // pred_check_branch
      %58 = sbr.rel (%p56) target = $region29
    $region28: #{decoder_forward.23} parent=1 // pred_region
      %vm59 = vcmask 523264
      %60 = vst.msk [vmem:[#allocation2] sm:$0xff] %vm59, 0.0
      %61 = vst.msk [vmem:[#allocation2 + $0x8] sm:$0xff] %vm59, 0.0
    $region29: #{decoder_forward.23} parent=1 // pred_fallthru
      _
    %v62 = vld [vmem:[#allocation2] sm:$0xff]
    %v63 = vld [vmem:[#allocation2 + $0x8] sm:$0xff]
    %v64 = vld [vmem:[#allocation3] sm:$0xff]
    %v65 = vld [vmem:[#allocation3 + $0x8] sm:$0xff]
    %v66 = vpack.c.bf16 %v65, %v64
    %v67 = vld [vmem:[#allocation6] sm:$0xf]
    %v68 = vld [vmem:[#allocation6 + $0x4] sm:$0xf]
    %v69 = vld [vmem:[#allocation6 + $0x8] sm:$0xf]
    %v70 = vld [vmem:[#allocation6 + $0xc] sm:$0xf]
    %v75 = vunpack.c.l.b16 %v67
    %v76 = vunpack.c.l.b16 %v68
    %v77 = vunpack.c.l.b16 %v69
    %v78 = vunpack.c.l.b16 %v70
    %v79 = vpack.c.b16 %v76, %v75
    %v80 = vpack.c.b16 %v78, %v77
    %vm83 = vcmask 261120
    %v85 = vsel %vm83, %v66, 0
    %87 = vmatprep.subr.bf16.mxu0 0
    %88 = vmatpush1.bf16.msra.mxu0 %v79
    %89 = vmatprep.subr.bf16.mxu0 0
    %90 = vmatpush1.bf16.msra.mxu0 %v80
    %91 = vmatprep.subr.bf16.mxu0 0
    %92 = vmatpush1.bf16.msra.mxu0 0
    %93 = vmatprep.subr.bf16.mxu0 0
    %94 = vmatpush1.bf16.msra.mxu0 0
    %95 = vmatprep.subr.bf16.mxu0 0
    %96 = vmatpush1.bf16.msra.mxu0 0
    %97 = vmatprep.subr.bf16.mxu0 0
    %98 = vmatpush1.bf16.msra.mxu0 0
    %99 = vmatprep.subr.bf16.mxu0 0
    %100 = vmatpush1.bf16.msra.mxu0 0
    %101 = vmatprep.subr.bf16.mxu0 0
    %102 = vmatpush1.bf16.msra.mxu0 0
    %103 = vmatprep.subr.bf16.mxu0 0
    %104 = vmatpush1.bf16.msra.mxu0 0
    %105 = vmatprep.subr.bf16.mxu0 0
    %106 = vmatpush1.bf16.msra.mxu0 0
    %107 = vmatprep.subr.bf16.mxu0 0
    %108 = vmatpush1.bf16.msra.mxu0 0
    %109 = vmatprep.subr.bf16.mxu0 0
    %110 = vmatpush1.bf16.msra.mxu0 0
    %111 = vmatprep.subr.bf16.mxu0 0
    %112 = vmatpush1.bf16.msra.mxu0 0
    %113 = vmatprep.subr.bf16.mxu0 0
    %114 = vmatpush1.bf16.msra.mxu0 0
    %115 = vmatprep.subr.bf16.mxu0 0
    %116 = vmatpush1.bf16.msra.mxu0 0
    %117 = vmatprep.subr.bf16.mxu0 0
    %118 = vmatpush1.bf16.msra.mxu0 0
    %119 = vmatprep.mubr.bf16.mxu0 0
    %120 = vmatmul.mubr.bf16.gmra.mrb[0].mxu0 %v85
    %v121 = vpop.f32.mrb[0].mxu0
    %v122 = vadd.f32 0.0, %v121
    %v123 = vpop.f32.mrb[0].mxu0
    %v124 = vpop.f32.mrb[0].mxu0
    %v125 = vadd.f32 0.0, %v124
    %v126 = vpop.f32.mrb[0].mxu0
    %127 = vdwg.mxu0
    %v128 = vadd.f32 %v62, %v122
    %v129 = vadd.f32 %v63, %v125
    %vm130 = vcmask 523264
    %131 = vst.msk [vmem:[#allocation2] sm:$0xff] %vm130, %v128
    %132 = vst.msk [vmem:[#allocation2 + $0x8] sm:$0xff] %vm130, %v129
    // Predicated region
    $region30: #{decoder_forward.23} parent=1 // pred_check
      %p133 = pneg %p55
    $region31: #{decoder_forward.23} parent=1 // pred_check_branch
      %135 = sbr.rel (%p133) target = $region33
    $region32: #{decoder_forward.23} parent=1 // pred_region
      %v136 = vld [vmem:[#allocation2] sm:$0xff]
      %v137 = vld [vmem:[#allocation2 + $0x8] sm:$0xff]
      %v138 = vld [vmem:[#allocation8] sm:$0x1]
      %v140 = vlaneseq
      %v141 = vshrl.u32 %v140, 7
      %v142 = vsub.s32 0, %v141
      %v143 = vrot.slane %v138, %v142
      %v145 = vadd.f32 %v136, %v143
      %v146 = vadd.f32 %v137, %v143
      %147 = vst.msk [vmem:[#allocation9] sm:$0xff] %vm130, %v145
      %148 = vst.msk [vmem:[#allocation9 + $0x8] sm:$0xff] %vm130, %v146
    $region33: #{decoder_forward.23} parent=1 // pred_fallthru
      _
    // Predicated region
    $region34: #{decoder_forward.23} parent=1 // pred_check
      _
    $region35: #{decoder_forward.23} parent=1 // pred_check_branch
      %150 = sbr.rel (0) target = $region37
    $region36: #{decoder_forward.23} parent=1 // pred_region
      %s152 = ssub.s32 256, 256
      %153 = vsyncadd [#allocation5], %s152
      %s154 = sshll.u32 [#allocation9], 4
      %s155 = int_to_ptr.vmem [resolvable:$true] %s154
      %160 = dma.vmem_to_hbm [thread:$0]  %s155, 256, %s3, [#allocation5], 128, 128, 8
    $region37: #{decoder_forward.23} parent=1 // pred_fallthru
      _
    // Predicated region
    $region38: #{decoder_forward.23} parent=1 // pred_check
      _
    $region39: #{decoder_forward.23} parent=1 // pred_check_branch
      %162 = sbr.rel (0) target = $region41
    $region40: #{decoder_forward.23} parent=1 // pred_region
      %163 = dma.done [#allocation5], 256
    $region41: #{decoder_forward.23} parent=1 // pred_fallthru
      _
    %164 = vsyncpa [#allocation4], 1
    %165 = vsyncpa [#allocation7], 1
    %166 = vsyncpa [#allocation5], 1

// kernel: decoder_forward.27
$region0: #{decoder_forward.27}
  #allocation0 [shape = 'u32[]', space=smem, size = 0x4, offset = 0x4, fixed_abs, tag = 'smem constant byte address 0x4 - core index']
  #allocation1 [shape = 'u32[144,128]{1,0:T(1,128)}', space=vmem, size = 0x12000, scoped, tag = 'internal scratch']
  #allocation2 [shape = 'f32[16,32]{1,0:T(8,128)}', space=vmem, size = 0x2000, scoped, tag = 'scratch operand']
  %s0 = inlined_call_operand.hbm [shape: f32[16,64], index: 0, kind: input, shape index: {}]
  %s1 = inlined_call_operand.hbm [shape: bf16[64,32], index: 1, kind: input, shape index: {}]
  %s2 = inlined_call_operand.hbm [shape: f32[1,32], index: 2, kind: input, shape index: {}]
  %s3 = inlined_call_operand.hbm [shape: f32[16,32], index: 3, kind: input, shape index: {}]
  %s4 = inlined_call_operand.hbm [shape: f32[16,32], index: 4, kind: output, shape index: {}]
  %s5 = sld [smem:[#allocation0]]
  $region50: #{decoder_forward.27} parent=0
    _
  %s7 = ssub.s32 1, %s5
  %s8 = scalar_select 0, %s7, %s5
  $region1: #{decoder_forward.27} parent=0
    #allocation3 [shape = 'u8[8192]{0}', space=vmem, size = 0x2000, scoped, tag = 'input window, operand 0, single buffered']
    #allocation4 [shape = 's32[1]{0}', space=sflag, size = 0x4, scoped, tag = 'scoped memory for decoder_forward.27']
    #allocation5 [shape = 's32[1]{0}', space=sflag, size = 0x4, scoped, tag = 'scoped memory for decoder_forward.27']
    #allocation6 [shape = 'u8[16384]{0}', space=vmem, size = 0x4000, scoped, tag = 'input window, operand 1, single buffered']
    #allocation7 [shape = 's32[1]{0}', space=sflag, size = 0x4, scoped, tag = 'scoped memory for decoder_forward.27']
    #allocation8 [shape = 'u8[512]{0}', space=vmem, size = 0x400, scoped, tag = 'input window, operand 2, single buffered']
    #allocation9 [shape = 'u8[8192]{0}', space=vmem, size = 0x2000, scoped, tag = 'input window, operand 3, single buffered']
    #allocation10 [shape = 's32[1]{0}', space=sflag, size = 0x4, scoped, tag = 'scoped memory for decoder_forward.27']
    #allocation11 [shape = 'u8[8192]{0}', space=vmem, size = 0x2000, scoped, tag = 'output window, operand 0, single buffered']
    %9 = vsyncpa [#allocation4], 0
    %10 = vsyncpa [#allocation7], 0
    %11 = vsyncpa [#allocation10], 0
    %12 = vsyncpa [#allocation5], 0
    // Predicated region
    $region2: #{decoder_forward.27} parent=1 // pred_check
      _
    $region3: #{decoder_forward.27} parent=1 // pred_check_branch
      %14 = sbr.rel (0) target = $region5
    $region4: #{decoder_forward.27} parent=1 // pred_region
      %s16 = ssub.s32 256, 256
      %17 = vsyncadd [#allocation4], %s16
      %s18 = sshll.u32 [#allocation3], 4
      %s19 = int_to_ptr.vmem [resolvable:$true] %s18
      %24 = dma.hbm_to_vmem [thread:$0]  %s0, 256, %s19, [#allocation4], 128, 128, 8
    $region5: #{decoder_forward.27} parent=1 // pred_fallthru
      _
    // Predicated region
    $region6: #{decoder_forward.27} parent=1 // pred_check
      _
    $region7: #{decoder_forward.27} parent=1 // pred_check_branch
      %26 = sbr.rel (0) target = $region9
    $region8: #{decoder_forward.27} parent=1 // pred_region
      %s28 = ssub.s32 512, 512
      %29 = vsyncadd [#allocation7], %s28
      %s30 = sshll.u32 [#allocation6], 4
      %s31 = int_to_ptr.vmem [resolvable:$true] %s30
      %36 = dma.hbm_to_vmem [thread:$0]  %s1, 512, %s31, [#allocation7], 64, 64, 4
    $region9: #{decoder_forward.27} parent=1 // pred_fallthru
      _
    // Predicated region
    $region10: #{decoder_forward.27} parent=1 // pred_check
      _
    $region11: #{decoder_forward.27} parent=1 // pred_check_branch
      %38 = sbr.rel (0) target = $region13
    $region12: #{decoder_forward.27} parent=1 // pred_region
      %s40 = ssub.s32 16, 16
      %41 = vsyncadd [#allocation7], %s40
      %s43 = sshll.u32 [#allocation8], 4
      %s44 = int_to_ptr.vmem [resolvable:$true] %s43
      %46 = dma.hbm_to_vmem [thread:$0]  %s2, 16, %s44, [#allocation7]
    $region13: #{decoder_forward.27} parent=1 // pred_fallthru
      _
    // Predicated region
    $region14: #{decoder_forward.27} parent=1 // pred_check
      _
    $region15: #{decoder_forward.27} parent=1 // pred_check_branch
      %48 = sbr.rel (0) target = $region17
    $region16: #{decoder_forward.27} parent=1 // pred_region
      %s50 = ssub.s32 256, 256
      %51 = vsyncadd [#allocation10], %s50
      %s52 = sshll.u32 [#allocation9], 4
      %s53 = int_to_ptr.vmem [resolvable:$true] %s52
      %58 = dma.hbm_to_vmem [thread:$0]  %s3, 256, %s53, [#allocation10], 128, 128, 8
    $region17: #{decoder_forward.27} parent=1 // pred_fallthru
      _
    // Predicated region
    $region18: #{decoder_forward.27} parent=1 // pred_check
      _
    $region19: #{decoder_forward.27} parent=1 // pred_check_branch
      %60 = sbr.rel (0) target = $region21
    $region20: #{decoder_forward.27} parent=1 // pred_region
      %61 = dma.done [#allocation4], 256
    $region21: #{decoder_forward.27} parent=1 // pred_fallthru
      _
    // Predicated region
    $region22: #{decoder_forward.27} parent=1 // pred_check
      _
    $region23: #{decoder_forward.27} parent=1 // pred_check_branch
      %63 = sbr.rel (0) target = $region25
    $region24: #{decoder_forward.27} parent=1 // pred_region
      %64 = dma.done [#allocation7], 512
    $region25: #{decoder_forward.27} parent=1 // pred_fallthru
      _
    // Predicated region
    $region26: #{decoder_forward.27} parent=1 // pred_check
      _
    $region27: #{decoder_forward.27} parent=1 // pred_check_branch
      %66 = sbr.rel (0) target = $region29
    $region28: #{decoder_forward.27} parent=1 // pred_region
      %67 = dma.done [#allocation7], 16
    $region29: #{decoder_forward.27} parent=1 // pred_fallthru
      _
    // Predicated region
    $region30: #{decoder_forward.27} parent=1 // pred_check
      _
    $region31: #{decoder_forward.27} parent=1 // pred_check_branch
      %69 = sbr.rel (0) target = $region33
    $region32: #{decoder_forward.27} parent=1 // pred_region
      %70 = dma.done [#allocation10], 256
    $region33: #{decoder_forward.27} parent=1 // pred_fallthru
      _
    %p72 = scmp.eq.s32.totalorder 0, 0
    // Predicated region
    $region34: #{decoder_forward.27} parent=1 // pred_check
      %p73 = pneg %p72
    $region35: #{decoder_forward.27} parent=1 // pred_check_branch
      %75 = sbr.rel (%p73) target = $region37
    $region36: #{decoder_forward.27} parent=1 // pred_region
      %vm76 = vcmask 261120
      %77 = vst.msk [vmem:[#allocation2] sm:$0xff] %vm76, 0.0
      %78 = vst.msk [vmem:[#allocation2 + $0x8] sm:$0xff] %vm76, 0.0
    $region37: #{decoder_forward.27} parent=1 // pred_fallthru
      _
    %v79 = vld [vmem:[#allocation2] sm:$0xff]
    %v80 = vld [vmem:[#allocation2 + $0x8] sm:$0xff]
    %v81 = vld [vmem:[#allocation3] sm:$0xff]
    %v82 = vld [vmem:[#allocation3 + $0x8] sm:$0xff]
    %v83 = vpack.c.bf16 %v82, %v81
    %v84 = vld [vmem:[#allocation6] sm:$0xf]
    %v85 = vld [vmem:[#allocation6 + $0x4] sm:$0xf]
    %v86 = vld [vmem:[#allocation6 + $0x8] sm:$0xf]
    %v87 = vld [vmem:[#allocation6 + $0xc] sm:$0xf]
    %v88 = vld [vmem:[#allocation6 + $0x10] sm:$0xf]
    %v89 = vld [vmem:[#allocation6 + $0x14] sm:$0xf]
    %v90 = vld [vmem:[#allocation6 + $0x18] sm:$0xf]
    %v91 = vld [vmem:[#allocation6 + $0x1c] sm:$0xf]
    %v100 = vunpack.c.l.b16 %v84
    %v101 = vunpack.c.l.b16 %v85
    %v102 = vunpack.c.l.b16 %v86
    %v103 = vunpack.c.l.b16 %v87
    %v104 = vunpack.c.l.b16 %v88
    %v105 = vunpack.c.l.b16 %v89
    %v106 = vunpack.c.l.b16 %v90
    %v107 = vunpack.c.l.b16 %v91
    %v108 = vpack.c.b16 %v101, %v100
    %v109 = vpack.c.b16 %v103, %v102
    %v110 = vpack.c.b16 %v105, %v104
    %v111 = vpack.c.b16 %v107, %v106
    %vm116 = vcmask 523264
    %v118 = vsel %vm116, %v83, 0
    %120 = vmatprep.subr.bf16.mxu0 0
    %121 = vmatpush1.bf16.msra.mxu0 %v108
    %122 = vmatprep.subr.bf16.mxu0 0
    %123 = vmatpush1.bf16.msra.mxu0 %v109
    %124 = vmatprep.subr.bf16.mxu0 0
    %125 = vmatpush1.bf16.msra.mxu0 %v110
    %126 = vmatprep.subr.bf16.mxu0 0
    %127 = vmatpush1.bf16.msra.mxu0 %v111
    %128 = vmatprep.subr.bf16.mxu0 0
    %129 = vmatpush1.bf16.msra.mxu0 0
    %130 = vmatprep.subr.bf16.mxu0 0
    %131 = vmatpush1.bf16.msra.mxu0 0
    %132 = vmatprep.subr.bf16.mxu0 0
    %133 = vmatpush1.bf16.msra.mxu0 0
    %134 = vmatprep.subr.bf16.mxu0 0
    %135 = vmatpush1.bf16.msra.mxu0 0
    %136 = vmatprep.subr.bf16.mxu0 0
    %137 = vmatpush1.bf16.msra.mxu0 0
    %138 = vmatprep.subr.bf16.mxu0 0
    %139 = vmatpush1.bf16.msra.mxu0 0
    %140 = vmatprep.subr.bf16.mxu0 0
    %141 = vmatpush1.bf16.msra.mxu0 0
    %142 = vmatprep.subr.bf16.mxu0 0
    %143 = vmatpush1.bf16.msra.mxu0 0
    %144 = vmatprep.subr.bf16.mxu0 0
    %145 = vmatpush1.bf16.msra.mxu0 0
    %146 = vmatprep.subr.bf16.mxu0 0
    %147 = vmatpush1.bf16.msra.mxu0 0
    %148 = vmatprep.subr.bf16.mxu0 0
    %149 = vmatpush1.bf16.msra.mxu0 0
    %150 = vmatprep.subr.bf16.mxu0 0
    %151 = vmatpush1.bf16.msra.mxu0 0
    %152 = vmatprep.mubr.bf16.mxu0 0
    %153 = vmatmul.mubr.bf16.gmra.mrb[0].mxu0 %v118
    %v154 = vpop.f32.mrb[0].mxu0
    %v155 = vadd.f32 0.0, %v154
    %v156 = vpop.f32.mrb[0].mxu0
    %v157 = vpop.f32.mrb[0].mxu0
    %v158 = vadd.f32 0.0, %v157
    %v159 = vpop.f32.mrb[0].mxu0
    %160 = vdwg.mxu0
    %v161 = vadd.f32 %v79, %v155
    %v162 = vadd.f32 %v80, %v158
    %vm163 = vcmask 261120
    %164 = vst.msk [vmem:[#allocation2] sm:$0xff] %vm163, %v161
    %165 = vst.msk [vmem:[#allocation2 + $0x8] sm:$0xff] %vm163, %v162
    // Predicated region
    $region38: #{decoder_forward.27} parent=1 // pred_check
      %p166 = pneg %p72
    $region39: #{decoder_forward.27} parent=1 // pred_check_branch
      %168 = sbr.rel (%p166) target = $region41
    $region40: #{decoder_forward.27} parent=1 // pred_region
      %v169 = vld [vmem:[#allocation2] sm:$0xff]
      %v170 = vld [vmem:[#allocation2 + $0x8] sm:$0xff]
      %v171 = vld [vmem:[#allocation8] sm:$0x1]
      %v173 = vlaneseq
      %v174 = vshrl.u32 %v173, 7
      %v175 = vsub.s32 0, %v174
      %v176 = vrot.slane %v171, %v175
      %v178 = vadd.f32 %v169, %v176
      %v179 = vadd.f32 %v170, %v176
      %v180 = vld [vmem:[#allocation9] sm:$0xff]
      %v181 = vld [vmem:[#allocation9 + $0x8] sm:$0xff]
      %v182 = vadd.f32 %v178, %v180
      %v183 = vadd.f32 %v179, %v181
      %184 = vst.msk [vmem:[#allocation11] sm:$0xff] %vm163, %v182
      %185 = vst.msk [vmem:[#allocation11 + $0x8] sm:$0xff] %vm163, %v183
    $region41: #{decoder_forward.27} parent=1 // pred_fallthru
      _
    // Predicated region
    $region42: #{decoder_forward.27} parent=1 // pred_check
      _
    $region43: #{decoder_forward.27} parent=1 // pred_check_branch
      %187 = sbr.rel (0) target = $region45
    $region44: #{decoder_forward.27} parent=1 // pred_region
      %s189 = ssub.s32 256, 256
      %190 = vsyncadd [#allocation5], %s189
      %s191 = sshll.u32 [#allocation11], 4
      %s192 = int_to_ptr.vmem [resolvable:$true] %s191
      %197 = dma.vmem_to_hbm [thread:$0]  %s192, 256, %s4, [#allocation5], 128, 128, 8
    $region45: #{decoder_forward.27} parent=1 // pred_fallthru
      _
    // Predicated region
    $region46: #{decoder_forward.27} parent=1 // pred_check
      _
    $region47: #{decoder_forward.27} parent=1 // pred_check_branch
      %199 = sbr.rel (0) target = $region49
    $region48: #{decoder_forward.27} parent=1 // pred_region
      %200 = dma.done [#allocation5], 256
    $region49: #{decoder_forward.27} parent=1 // pred_fallthru
      _
    %201 = vsyncpa [#allocation4], 1
    %202 = vsyncpa [#allocation7], 1
    %203 = vsyncpa [#allocation10], 1
    %204 = vsyncpa [#allocation5], 1

// kernel: decoder_forward.24
$region0: #{decoder_forward.24}
  #allocation0 [shape = 'u32[]', space=smem, size = 0x4, offset = 0x4, fixed_abs, tag = 'smem constant byte address 0x4 - core index']
  #allocation1 [shape = 'u32[144,128]{1,0:T(1,128)}', space=vmem, size = 0x12000, scoped, tag = 'internal scratch']
  %s0 = inlined_call_operand.hbm [shape: f32[2,8,32], index: 0, kind: input, shape index: {}]
  %s1 = inlined_call_operand.hbm [shape: f32[2,8,64], index: 1, kind: input, shape index: {}, may-alias: {1,2}]
  %s2 = inlined_call_operand.hbm [shape: f32[2,8,64], index: 2, kind: input, shape index: {}, may-alias: {1,2}]
  %s3 = inlined_call_operand.hbm [shape: f32[2,8,8], index: 3, kind: input, shape index: {}]
  %s4 = inlined_call_operand.hbm [shape: f32[2,8,32], index: 4, kind: output, shape index: {}]
  %s5 = sld [smem:[#allocation0]]
  $region65: #{decoder_forward.24} parent=0
    _
  %s7 = ssub.s32 1, %s5
  %s8 = scalar_select 0, %s7, %s5
  $region1: #{decoder_forward.24} parent=0
    #allocation2 [shape = 'u8[8192]{0}', space=vmem, size = 0x2000, scoped, tag = 'input window, operand 0']
    #allocation3 [shape = 's32[2]{0}', space=sflag, size = 0x8, scoped, tag = 'scoped memory for decoder_forward.24']
    #allocation4 [shape = 's32[2]{0}', space=sflag, size = 0x8, scoped, tag = 'scoped memory for decoder_forward.24']
    #allocation5 [shape = 'u8[8192]{0}', space=vmem, size = 0x2000, scoped, tag = 'input window, operand 1']
    #allocation6 [shape = 's32[2]{0}', space=sflag, size = 0x8, scoped, tag = 'scoped memory for decoder_forward.24']
    #allocation7 [shape = 'u8[8192]{0}', space=vmem, size = 0x2000, scoped, tag = 'input window, operand 2']
    #allocation8 [shape = 'u8[8192]{0}', space=vmem, size = 0x2000, scoped, tag = 'input window, operand 3']
    #allocation9 [shape = 's32[2]{0}', space=sflag, size = 0x8, scoped, tag = 'scoped memory for decoder_forward.24']
    #allocation10 [shape = 'u8[8192]{0}', space=vmem, size = 0x2000, scoped, tag = 'output window, operand 0']
    %9 = vsyncpa [#allocation3], 0
    %s10 = scalar_lea.sflag [#allocation3], 1
    %11 = vsyncpa %s10, 0
    %12 = vsyncpa [#allocation6], 0
    %s13 = scalar_lea.sflag [#allocation6], 1
    %14 = vsyncpa %s13, 0
    %15 = vsyncpa [#allocation9], 0
    %s16 = scalar_lea.sflag [#allocation9], 1
    %17 = vsyncpa %s16, 0
    %18 = vsyncpa [#allocation4], 0
    %s19 = scalar_lea.sflag [#allocation4], 1
    %20 = vsyncpa %s19, 0
    loop: start=0, step=1, limit=4
    $region2: #{decoder_forward.24} parent=1 // loop_pre_header
      _
    $region3: #{decoder_forward.24} parent=1 // loop_header
      %s22 = sphi 0, %s26
      %p23 = scmp.ge.s32.totalorder %s22, 4
      %s29 = sphi 0, %s41
      %s30 = sphi 0, %s37
      %s31 = sphi 0, %s29
      %s32 = sphi 0, %s30
      %s33 = sphi 0, %s31
      %s34 = sphi 0, %s32
      %s46 = sphi 0, %s48
      %s49 = sphi 0, %s46
      %s50 = sphi 0, %s49
      %s66 = sphi 0, %s50
      %s72 = sphi 0, %s74
      %s75 = sphi 0, %s72
      %s76 = sphi 0, %s75
      %s92 = sphi 0, %s76
      %s98 = sphi 0, %s100
      %s101 = sphi 0, %s98
      %s102 = sphi 0, %s101
      %s118 = sphi 0, %s102
      %s126 = sphi 0, %s128
      %s129 = sphi 0, %s126
      %s130 = sphi 0, %s129
      %s146 = sphi 0, %s130
      %s154 = sphi 0, %s156
      %s157 = sphi 0, %s154
      %s158 = sphi 0, %s157
      %s174 = sphi 0, %s158
    $region4: #{decoder_forward.24} parent=1 // loop_header_branch
      %25 = sbr.rel (%p23) target = $region8
    $region5: #{decoder_forward.24} parent=1 // loop_body
      %s27 = ssub.s32 %s22, 1
      %s28 = ssub.s32 %s22, 2
      %s35 = sadd.s32 1, %s30
      %p36 = scmp.ge.s32.totalorder %s35, 1
      %s37 = scalar_select %p36, 0, %s35
      %s38 = sadd.s32 1, %s29
      %s39 = scalar_select %p36, %s38, %s29
      %p40 = scmp.ge.s32.totalorder %s39, 2
      %s41 = scalar_select %p40, 0, %s39
      %s42 = ssub.s32 %s29, %s41
      %s43 = ssub.s32 %s30, %s37
      %s44 = sor.u32 %s42, %s43
      %p45 = scmp.eq.s32.totalorder %s44, 0
      %s47 = sadd.s32 %s46, 1
      %s48 = scalar_select %p45, %s46, %s47
      %p51 = pneg %p45
      %p52 = scmp.eq.s32.totalorder %s22, 1
      %p53 = por %p51, %p52
      %p54 = scmp.ne.s32.totalorder %s46, %s49
      %p55 = scmp.eq.s32.totalorder %s22, 0
      %p56 = por %p54, %p55
      %p57 = scmp.ne.s32.totalorder %s46, %s49
      %p58 = scmp.eq.s32.totalorder %s27, 1
      %p59 = por %p57, %p58
      %p60 = scmp.ne.s32.totalorder %s49, %s50
      %p61 = scmp.eq.s32.totalorder %s27, 0
      %p62 = por %p60, %p61
      %p63 = scmp.ne.s32.totalorder %s49, %s50
      %p64 = scmp.eq.s32.totalorder %s28, 1
      %p65 = por %p63, %p64
      %p67 = scmp.ne.s32.totalorder %s50, %s66
      %p68 = scmp.eq.s32.totalorder %s28, 0
      %p69 = por %p67, %p68
      %s70 = ssub.s32 %s29, %s41
      %p71 = scmp.eq.s32.totalorder %s70, 0
      %s73 = sadd.s32 %s72, 1
      %s74 = scalar_select %p71, %s72, %s73
      %p77 = pneg %p71
      %p78 = scmp.eq.s32.totalorder %s22, 1
      %p79 = por %p77, %p78
      %p80 = scmp.ne.s32.totalorder %s72, %s75
      %p81 = scmp.eq.s32.totalorder %s22, 0
      %p82 = por %p80, %p81
      %p83 = scmp.ne.s32.totalorder %s72, %s75
      %p84 = scmp.eq.s32.totalorder %s27, 1
      %p85 = por %p83, %p84
      %p86 = scmp.ne.s32.totalorder %s75, %s76
      %p87 = scmp.eq.s32.totalorder %s27, 0
      %p88 = por %p86, %p87
      %p89 = scmp.ne.s32.totalorder %s75, %s76
      %p90 = scmp.eq.s32.totalorder %s28, 1
      %p91 = por %p89, %p90
      %p93 = scmp.ne.s32.totalorder %s76, %s92
      %p94 = scmp.eq.s32.totalorder %s28, 0
      %p95 = por %p93, %p94
      %s96 = ssub.s32 %s29, %s41
      %p97 = scmp.eq.s32.totalorder %s96, 0
      %s99 = sadd.s32 %s98, 1
      %s100 = scalar_select %p97, %s98, %s99
      %p103 = pneg %p97
      %p104 = scmp.eq.s32.totalorder %s22, 1
      %p105 = por %p103, %p104
      %p106 = scmp.ne.s32.totalorder %s98, %s101
      %p107 = scmp.eq.s32.totalorder %s22, 0
      %p108 = por %p106, %p107
      %p109 = scmp.ne.s32.totalorder %s98, %s101
      %p110 = scmp.eq.s32.totalorder %s27, 1
      %p111 = por %p109, %p110
      %p112 = scmp.ne.s32.totalorder %s101, %s102
      %p113 = scmp.eq.s32.totalorder %s27, 0
      %p114 = por %p112, %p113
      %p115 = scmp.ne.s32.totalorder %s101, %s102
      %p116 = scmp.eq.s32.totalorder %s28, 1
      %p117 = por %p115, %p116
      %p119 = scmp.ne.s32.totalorder %s102, %s118
      %p120 = scmp.eq.s32.totalorder %s28, 0
      %p121 = por %p119, %p120
      %s122 = ssub.s32 %s29, %s41
      %s123 = ssub.s32 %s30, %s37
      %s124 = sor.u32 %s122, %s123
      %p125 = scmp.eq.s32.totalorder %s124, 0
      %s127 = sadd.s32 %s126, 1
      %s128 = scalar_select %p125, %s126, %s127
      %p131 = pneg %p125
      %p132 = scmp.eq.s32.totalorder %s22, 1
      %p133 = por %p131, %p132
      %p134 = scmp.ne.s32.totalorder %s126, %s129
      %p135 = scmp.eq.s32.totalorder %s22, 0
      %p136 = por %p134, %p135
      %p137 = scmp.ne.s32.totalorder %s126, %s129
      %p138 = scmp.eq.s32.totalorder %s27, 1
      %p139 = por %p137, %p138
      %p140 = scmp.ne.s32.totalorder %s129, %s130
      %p141 = scmp.eq.s32.totalorder %s27, 0
      %p142 = por %p140, %p141
      %p143 = scmp.ne.s32.totalorder %s129, %s130
      %p144 = scmp.eq.s32.totalorder %s28, 1
      %p145 = por %p143, %p144
      %p147 = scmp.ne.s32.totalorder %s130, %s146
      %p148 = scmp.eq.s32.totalorder %s28, 0
      %p149 = por %p147, %p148
      %s150 = ssub.s32 %s29, %s41
      %s151 = ssub.s32 %s30, %s37
      %s152 = sor.u32 %s150, %s151
      %p153 = scmp.eq.s32.totalorder %s152, 0
      %s155 = sadd.s32 %s154, 1
      %s156 = scalar_select %p153, %s154, %s155
      %p159 = pneg %p153
      %p160 = scmp.eq.s32.totalorder %s22, 1
      %p161 = por %p159, %p160
      %p162 = scmp.ne.s32.totalorder %s154, %s157
      %p163 = scmp.eq.s32.totalorder %s22, 0
      %p164 = por %p162, %p163
      %p165 = scmp.ne.s32.totalorder %s154, %s157
      %p166 = scmp.eq.s32.totalorder %s27, 1
      %p167 = por %p165, %p166
      %p168 = scmp.ne.s32.totalorder %s157, %s158
      %p169 = scmp.eq.s32.totalorder %s27, 0
      %p170 = por %p168, %p169
      %p171 = scmp.ne.s32.totalorder %s157, %s158
      %p172 = scmp.eq.s32.totalorder %s28, 1
      %p173 = por %p171, %p172
      %p175 = scmp.ne.s32.totalorder %s158, %s174
      %p176 = scmp.eq.s32.totalorder %s28, 0
      %p177 = por %p175, %p176
      %p178 = scmp.le.s32.totalorder 1, %s22
      %p179 = scmp.lt.s32.totalorder %s22, 3
      %p180 = pnand %p178, %p179
      %p181 = pneg %p180
      // Predicated region
      $region9: #{decoder_forward.24} parent=5 // pred_check
        _
      $region10: #{decoder_forward.24} parent=5 // pred_check_branch
        %183 = sbr.rel (%p180) target = $region12
      $region11: #{decoder_forward.24} parent=5 // pred_region
        %s184 = ssub.s32 %s22, 1
      $region12: #{decoder_forward.24} parent=5 // pred_fallthru
        _
      %p185 = scmp.lt.s32.totalorder %s22, 2
      // Predicated region
      $region13: #{decoder_forward.24} parent=5 // pred_check
        %p186 = pneg %p185
      $region14: #{decoder_forward.24} parent=5 // pred_check_branch
        %188 = sbr.rel (%p186) target = $region16
      $region15: #{decoder_forward.24} parent=5 // pred_region
        // Predicated region
        $region17: #{decoder_forward.24} parent=15 // pred_check
          %p189 = pneg %p56
        $region18: #{decoder_forward.24} parent=15 // pred_check_branch
          %191 = sbr.rel (%p189) target = $region20
        $region19: #{decoder_forward.24} parent=15 // pred_region
          %s192 = sand.u32 %s46, 1
          %s193 = scalar_lea.sflag [#allocation3], %s192
          %s194 = sand.u32 %s46, 1
          %s195 = smul.addr %s194, 8
          %s196 = scalar_lea.vmem [#allocation2], %s195
          %s198 = ssub.s32 128, 128
          %199 = vsyncadd %s193, %s198
          %s200 = sadd.s32 %s30, %s29
          %s201 = smul.addr %s200, 128
          %s202 = scalar_lea.hbm %s0, %s201
          %s204 = sshll.u32 %s196, 4
          %s205 = int_to_ptr.vmem [resolvable:$true] %s204
          %207 = dma.hbm_to_vmem [thread:$0]  %s202, 128, %s205, %s193
        $region20: #{decoder_forward.24} parent=15 // pred_fallthru
          _
        // Predicated region
        $region21: #{decoder_forward.24} parent=15 // pred_check
          %p208 = pneg %p82
        $region22: #{decoder_forward.24} parent=15 // pred_check_branch
          %210 = sbr.rel (%p208) target = $region24
        $region23: #{decoder_forward.24} parent=15 // pred_region
          %s211 = sand.u32 %s22, 1
          %s212 = scalar_lea.sflag [#allocation6], %s211
          %s213 = sand.u32 %s72, 1
          %s214 = smul.addr %s213, 8
          %s215 = scalar_lea.vmem [#allocation5], %s214
          %s217 = ssub.s32 128, 128
          %218 = vsyncadd %s212, %s217
          %s219 = smul.addr %s29, 128
          %s220 = scalar_lea.hbm %s1, %s219
          %s222 = sshll.u32 %s215, 4
          %s223 = int_to_ptr.vmem [resolvable:$true] %s222
          %225 = dma.hbm_to_vmem [thread:$0]  %s220, 128, %s223, %s212
        $region24: #{decoder_forward.24} parent=15 // pred_fallthru
          _
        // Predicated region
        $region25: #{decoder_forward.24} parent=15 // pred_check
          %p226 = pneg %p108
        $region26: #{decoder_forward.24} parent=15 // pred_check_branch
          %228 = sbr.rel (%p226) target = $region28
        $region27: #{decoder_forward.24} parent=15 // pred_region
          %s229 = sand.u32 %s22, 1
          %s230 = scalar_lea.sflag [#allocation6], %s229
          %s231 = sand.u32 %s98, 1
          %s232 = smul.addr %s231, 8
          %s233 = scalar_lea.vmem [#allocation7], %s232
          %s235 = ssub.s32 128, 128
          %236 = vsyncadd %s230, %s235
          %s237 = smul.addr %s29, 128
          %s238 = scalar_lea.hbm %s2, %s237
          %s240 = sshll.u32 %s233, 4
          %s241 = int_to_ptr.vmem [resolvable:$true] %s240
          %243 = dma.hbm_to_vmem [thread:$0]  %s238, 128, %s241, %s230
        $region28: #{decoder_forward.24} parent=15 // pred_fallthru
          _
        // Predicated region
        $region29: #{decoder_forward.24} parent=15 // pred_check
          %p244 = pneg %p136
        $region30: #{decoder_forward.24} parent=15 // pred_check_branch
          %246 = sbr.rel (%p244) target = $region32
        $region31: #{decoder_forward.24} parent=15 // pred_region
          %s247 = sand.u32 %s126, 1
          %s248 = scalar_lea.sflag [#allocation9], %s247
          %s249 = sand.u32 %s126, 1
          %s250 = smul.addr %s249, 8
          %s251 = scalar_lea.vmem [#allocation8], %s250
          %s253 = ssub.s32 128, 128
          %254 = vsyncadd %s248, %s253
          %s255 = sadd.s32 %s30, %s29
          %s256 = smul.addr %s255, 128
          %s257 = scalar_lea.hbm %s3, %s256
          %s259 = sshll.u32 %s251, 4
          %s260 = int_to_ptr.vmem [resolvable:$true] %s259
          %262 = dma.hbm_to_vmem [thread:$0]  %s257, 128, %s260, %s248
        $region32: #{decoder_forward.24} parent=15 // pred_fallthru
          _
      $region16: #{decoder_forward.24} parent=5 // pred_fallthru
        _
      %p263 = scmp.le.s32.totalorder 1, %s22
      %p264 = scmp.lt.s32.totalorder %s22, 3
      %p265 = pnand %p263, %p264
      %p266 = pneg %p265
      // Predicated region
      $region33: #{decoder_forward.24} parent=5 // pred_check
        _
      $region34: #{decoder_forward.24} parent=5 // pred_check_branch
        %268 = sbr.rel (%p265) target = $region36
      $region35: #{decoder_forward.24} parent=5 // pred_region
        %s269 = ssub.s32 %s22, 1
        %s270 = sand.u32 %s49, 1
        %s271 = scalar_lea.sflag [#allocation3], %s270
        %s272 = sand.u32 %s49, 1
        %s273 = smul.addr %s272, 8
        %s274 = scalar_lea.vmem [#allocation2], %s273
        // Predicated region
        $region37: #{decoder_forward.24} parent=35 // pred_check
          %p275 = pneg %p62
        $region38: #{decoder_forward.24} parent=35 // pred_check_branch
          %277 = sbr.rel (%p275) target = $region40
        $region39: #{decoder_forward.24} parent=35 // pred_region
          %278 = dma.done %s271, 128
        $region40: #{decoder_forward.24} parent=35 // pred_fallthru
          _
        %s279 = sand.u32 %s27, 1
        %s280 = scalar_lea.sflag [#allocation6], %s279
        %s281 = sand.u32 %s75, 1
        %s282 = smul.addr %s281, 8
        %s283 = scalar_lea.vmem [#allocation5], %s282
        // Predicated region
        $region41: #{decoder_forward.24} parent=35 // pred_check
          %p284 = pneg %p88
        $region42: #{decoder_forward.24} parent=35 // pred_check_branch
          %286 = sbr.rel (%p284) target = $region44
        $region43: #{decoder_forward.24} parent=35 // pred_region
          %287 = dma.done %s280, 128
        $region44: #{decoder_forward.24} parent=35 // pred_fallthru
          _
        %s288 = sand.u32 %s27, 1
        %s289 = scalar_lea.sflag [#allocation6], %s288
        %s290 = sand.u32 %s101, 1
        %s291 = smul.addr %s290, 8
        %s292 = scalar_lea.vmem [#allocation7], %s291
        // Predicated region
        $region45: #{decoder_forward.24} parent=35 // pred_check
          %p293 = pneg %p114
        $region46: #{decoder_forward.24} parent=35 // pred_check_branch
          %295 = sbr.rel (%p293) target = $region48
        $region47: #{decoder_forward.24} parent=35 // pred_region
          %296 = dma.done %s289, 128
        $region48: #{decoder_forward.24} parent=35 // pred_fallthru
          _
        %s297 = sand.u32 %s129, 1
        %s298 = scalar_lea.sflag [#allocation9], %s297
        %s299 = sand.u32 %s129, 1
        %s300 = smul.addr %s299, 8
        %s301 = scalar_lea.vmem [#allocation8], %s300
        // Predicated region
        $region49: #{decoder_forward.24} parent=35 // pred_check
          %p302 = pneg %p142
        $region50: #{decoder_forward.24} parent=35 // pred_check_branch
          %304 = sbr.rel (%p302) target = $region52
        $region51: #{decoder_forward.24} parent=35 // pred_region
          %305 = dma.done %s298, 128
        $region52: #{decoder_forward.24} parent=35 // pred_fallthru
          _
        %s306 = sand.u32 %s49, 1
        %s307 = scalar_lea.sflag [#allocation3], %s306
        %s308 = sand.u32 %s49, 1
        %s309 = smul.addr %s308, 8
        %s310 = scalar_lea.vmem [#allocation2], %s309
        %p311 = pneg %p62
        %p312 = pneg %p59
        %s313 = sand.u32 %s27, 1
        %s314 = scalar_lea.sflag [#allocation6], %s313
        %s315 = sand.u32 %s75, 1
        %s316 = smul.addr %s315, 8
        %s317 = scalar_lea.vmem [#allocation5], %s316
        %p318 = pneg %p88
        %p319 = pneg %p85
        %s320 = sand.u32 %s27, 1
        %s321 = scalar_lea.sflag [#allocation6], %s320
        %s322 = sand.u32 %s101, 1
        %s323 = smul.addr %s322, 8
        %s324 = scalar_lea.vmem [#allocation7], %s323
        %p325 = pneg %p114
        %p326 = pneg %p111
        %s327 = sand.u32 %s129, 1
        %s328 = scalar_lea.sflag [#allocation9], %s327
        %s329 = sand.u32 %s129, 1
        %s330 = smul.addr %s329, 8
        %s331 = scalar_lea.vmem [#allocation8], %s330
        %p332 = pneg %p142
        %p333 = pneg %p139
        %p334 = pneg %p170
        %p335 = pneg %p167
        %s336 = sand.u32 %s157, 1
        %s337 = scalar_lea.sflag [#allocation4], %s336
        %s338 = sand.u32 %s157, 1
        %s339 = smul.addr %s338, 8
        %s340 = scalar_lea.vmem [#allocation10], %s339
        %v342 = vld [vmem:[%s274] sm:$0xff]
        %v343 = vpack.c.bf16 %v342, %v342
        %v344 = vld [vmem:[%s283] sm:$0xff]
        %v345 = vpack.c.bf16 %v344, %v344
        %v346 = vld [vmem:[%s292] sm:$0xff]
        %v347 = vpack.c.bf16 %v346, %v346
        %v348 = vld [vmem:[%s301] sm:$0xff]
        %v349 = vsub.f32 %v348, 1.0
        %v350 = vmul.f32 %v349, 1e+09
        %vm351 = vcmask 64512
        %v353 = vsel %vm351, %v343, 0
        %v356 = vsel %vm351, %v345, 0
        %358 = vmatprep.subr.bf16.mxu0 0
        %359 = vmatpush1.bf16.xpose.msra.mxu0 %v356
        %360 = vmatprep.subr.bf16.mxu0 0
        %361 = vmatpush1.bf16.xpose.msra.mxu0 0
        %362 = vmatprep.subr.bf16.mxu0 0
        %363 = vmatpush1.bf16.xpose.msra.mxu0 0
        %364 = vmatprep.subr.bf16.mxu0 0
        %365 = vmatpush1.bf16.xpose.msra.mxu0 0
        %366 = vmatprep.subr.bf16.mxu0 0
        %367 = vmatpush1.bf16.xpose.msra.mxu0 0
        %368 = vmatprep.subr.bf16.mxu0 0
        %369 = vmatpush1.bf16.xpose.msra.mxu0 0
        %370 = vmatprep.subr.bf16.mxu0 0
        %371 = vmatpush1.bf16.xpose.msra.mxu0 0
        %372 = vmatprep.subr.bf16.mxu0 0
        %373 = vmatpush1.bf16.xpose.msra.mxu0 0
        %374 = vmatprep.subr.bf16.mxu0 0
        %375 = vmatpush1.bf16.xpose.msra.mxu0 0
        %376 = vmatprep.subr.bf16.mxu0 0
        %377 = vmatpush1.bf16.xpose.msra.mxu0 0
        %378 = vmatprep.subr.bf16.mxu0 0
        %379 = vmatpush1.bf16.xpose.msra.mxu0 0
        %380 = vmatprep.subr.bf16.mxu0 0
        %381 = vmatpush1.bf16.xpose.msra.mxu0 0
        %382 = vmatprep.subr.bf16.mxu0 0
        %383 = vmatpush1.bf16.xpose.msra.mxu0 0
        %384 = vmatprep.subr.bf16.mxu0 0
        %385 = vmatpush1.bf16.xpose.msra.mxu0 0
        %386 = vmatprep.subr.bf16.mxu0 0
        %387 = vmatpush1.bf16.xpose.msra.mxu0 0
        %388 = vmatprep.subr.bf16.mxu0 0
        %389 = vmatpush1.bf16.xpose.msra.mxu0 0
        %390 = vmatprep.mubr.bf16.mxu0 0
        %391 = vmatmul.mubr.bf16.gmra.mrb[0].mxu0 %v353
        %v392 = vpop.f32.mrb[0].mxu0
        %v393 = vadd.f32 0.0, %v392
        %v394 = vpop.f32.mrb[0].mxu0
        %v395 = vpop.f32.mrb[0].mxu0
        %v396 = vpop.f32.mrb[0].mxu0
        %397 = vdwg.mxu0
        %v398 = vmul.f32 %v393, 0.35355338
        %v399 = vadd.f32 %v398, %v350
        %v400 = vsel %vm351, %v399, -inf
        %401 = vmax.xlane.f32.xlu0 %v400
        %v402 = vpop.xlane.xlu0 %401
        %v403 = vsub.f32 %v399, %v402
        %v404 = vmul.f32 %v403, 1.442695
        %v405 = vpow.pop %v404
        %v406 = vsel %vm351, %v405, 0.0
        %407 = vadd.xlane.f32.xlu0 %v406
        %v408 = vpop.xlane.xlu0 %407
        %v409 = vrcp.pop %v408
        %v410 = vmul.f32 %v405, %v409
        %v411 = vpack.c.bf16 %v410, %v410
        %413 = vrot.lane.b32.xlu0 %v347, 96
        %v414 = vpop.permute.xlu0 %413
        %v416 = vsel %vm351, %v411, 0
        %vm418 = vcmask 1043456
        %v420 = vsel %vm418, %v414, 0
        %422 = vmatprep.subr.bf16.mxu0 0
        %423 = vmatpush1.bf16.msra.mxu0 %v420
        %424 = vmatprep.subr.bf16.mxu0 0
        %425 = vmatpush1.bf16.msra.mxu0 0
        %426 = vmatprep.subr.bf16.mxu0 0
        %427 = vmatpush1.bf16.msra.mxu0 0
        %428 = vmatprep.subr.bf16.mxu0 0
        %429 = vmatpush1.bf16.msra.mxu0 0
        %430 = vmatprep.subr.bf16.mxu0 0
        %431 = vmatpush1.bf16.msra.mxu0 0
        %432 = vmatprep.subr.bf16.mxu0 0
        %433 = vmatpush1.bf16.msra.mxu0 0
        %434 = vmatprep.subr.bf16.mxu0 0
        %435 = vmatpush1.bf16.msra.mxu0 0
        %436 = vmatprep.subr.bf16.mxu0 0
        %437 = vmatpush1.bf16.msra.mxu0 0
        %438 = vmatprep.subr.bf16.mxu0 0
        %439 = vmatpush1.bf16.msra.mxu0 0
        %440 = vmatprep.subr.bf16.mxu0 0
        %441 = vmatpush1.bf16.msra.mxu0 0
        %442 = vmatprep.subr.bf16.mxu0 0
        %443 = vmatpush1.bf16.msra.mxu0 0
        %444 = vmatprep.subr.bf16.mxu0 0
        %445 = vmatpush1.bf16.msra.mxu0 0
        %446 = vmatprep.subr.bf16.mxu0 0
        %447 = vmatpush1.bf16.msra.mxu0 0
        %448 = vmatprep.subr.bf16.mxu0 0
        %449 = vmatpush1.bf16.msra.mxu0 0
        %450 = vmatprep.subr.bf16.mxu0 0
        %451 = vmatpush1.bf16.msra.mxu0 0
        %452 = vmatprep.subr.bf16.mxu0 0
        %453 = vmatpush1.bf16.msra.mxu0 0
        %454 = vmatprep.mubr.bf16.mxu0 0
        %455 = vmatmul.mubr.bf16.gmra.mrb[0].mxu0 %v416
        %v456 = vpop.f32.mrb[0].mxu0
        %v457 = vadd.f32 0.0, %v456
        %v458 = vpop.f32.mrb[0].mxu0
        %v459 = vpop.f32.mrb[0].mxu0
        %v460 = vpop.f32.mrb[0].mxu0
        %461 = vdwg.mxu0
        %462 = vst.msk [vmem:[%s340] sm:$0xff] %vm351, %v457
        %464 = vrot.lane.b32.xlu0 %v343, 120
        %v465 = vpop.permute.xlu0 %464
        %467 = vrot.lane.b32.xlu0 %v345, 120
        %v468 = vpop.permute.xlu0 %467
        %v470 = vsel %vm351, %v465, 0
        %v473 = vsel %vm351, %v468, 0
        %475 = vmatprep.subr.bf16.mxu0 0
        %476 = vmatpush1.bf16.xpose.msra.mxu0 %v473
        %477 = vmatprep.subr.bf16.mxu0 0
        %478 = vmatpush1.bf16.xpose.msra.mxu0 0
        %479 = vmatprep.subr.bf16.mxu0 0
        %480 = vmatpush1.bf16.xpose.msra.mxu0 0
        %481 = vmatprep.subr.bf16.mxu0 0
        %482 = vmatpush1.bf16.xpose.msra.mxu0 0
        %483 = vmatprep.subr.bf16.mxu0 0
        %484 = vmatpush1.bf16.xpose.msra.mxu0 0
        %485 = vmatprep.subr.bf16.mxu0 0
        %486 = vmatpush1.bf16.xpose.msra.mxu0 0
        %487 = vmatprep.subr.bf16.mxu0 0
        %488 = vmatpush1.bf16.xpose.msra.mxu0 0
        %489 = vmatprep.subr.bf16.mxu0 0
        %490 = vmatpush1.bf16.xpose.msra.mxu0 0
        %491 = vmatprep.subr.bf16.mxu0 0
        %492 = vmatpush1.bf16.xpose.msra.mxu0 0
        %493 = vmatprep.subr.bf16.mxu0 0
        %494 = vmatpush1.bf16.xpose.msra.mxu0 0
        %495 = vmatprep.subr.bf16.mxu0 0
        %496 = vmatpush1.bf16.xpose.msra.mxu0 0
        %497 = vmatprep.subr.bf16.mxu0 0
        %498 = vmatpush1.bf16.xpose.msra.mxu0 0
        %499 = vmatprep.subr.bf16.mxu0 0
        %500 = vmatpush1.bf16.xpose.msra.mxu0 0
        %501 = vmatprep.subr.bf16.mxu0 0
        %502 = vmatpush1.bf16.xpose.msra.mxu0 0
        %503 = vmatprep.subr.bf16.mxu0 0
        %504 = vmatpush1.bf16.xpose.msra.mxu0 0
        %505 = vmatprep.subr.bf16.mxu0 0
        %506 = vmatpush1.bf16.xpose.msra.mxu0 0
        %507 = vmatprep.mubr.bf16.mxu0 0
        %508 = vmatmul.mubr.bf16.gmra.mrb[0].mxu0 %v470
        %v509 = vpop.f32.mrb[0].mxu0
        %v510 = vadd.f32 0.0, %v509
        %v511 = vpop.f32.mrb[0].mxu0
        %v512 = vpop.f32.mrb[0].mxu0
        %v513 = vpop.f32.mrb[0].mxu0
        %514 = vdwg.mxu0
        %v515 = vmul.f32 %v510, 0.35355338
        %v516 = vadd.f32 %v515, %v350
        %v517 = vsel %vm351, %v516, -inf
        %518 = vmax.xlane.f32.xlu0 %v517
        %v519 = vpop.xlane.xlu0 %518
        %v520 = vsub.f32 %v516, %v519
        %v521 = vmul.f32 %v520, 1.442695
        %v522 = vpow.pop %v521
        %v523 = vsel %vm351, %v522, 0.0
        %524 = vadd.xlane.f32.xlu0 %v523
        %v525 = vpop.xlane.xlu0 %524
        %v526 = vrcp.pop %v525
        %v527 = vmul.f32 %v522, %v526
        %v528 = vpack.c.bf16 %v527, %v527
        %529 = vrot.lane.b32.xlu0 %v347, 88
        %v530 = vpop.permute.xlu0 %529
        %v532 = vsel %vm351, %v528, 0
        %v535 = vsel %vm418, %v530, 0
        %537 = vmatprep.subr.bf16.mxu0 0
        %538 = vmatpush1.bf16.msra.mxu0 %v535
        %539 = vmatprep.subr.bf16.mxu0 0
        %540 = vmatpush1.bf16.msra.mxu0 0
        %541 = vmatprep.subr.bf16.mxu0 0
        %542 = vmatpush1.bf16.msra.mxu0 0
        %543 = vmatprep.subr.bf16.mxu0 0
        %544 = vmatpush1.bf16.msra.mxu0 0
        %545 = vmatprep.subr.bf16.mxu0 0
        %546 = vmatpush1.bf16.msra.mxu0 0
        %547 = vmatprep.subr.bf16.mxu0 0
        %548 = vmatpush1.bf16.msra.mxu0 0
        %549 = vmatprep.subr.bf16.mxu0 0
        %550 = vmatpush1.bf16.msra.mxu0 0
        %551 = vmatprep.subr.bf16.mxu0 0
        %552 = vmatpush1.bf16.msra.mxu0 0
        %553 = vmatprep.subr.bf16.mxu0 0
        %554 = vmatpush1.bf16.msra.mxu0 0
        %555 = vmatprep.subr.bf16.mxu0 0
        %556 = vmatpush1.bf16.msra.mxu0 0
        %557 = vmatprep.subr.bf16.mxu0 0
        %558 = vmatpush1.bf16.msra.mxu0 0
        %559 = vmatprep.subr.bf16.mxu0 0
        %560 = vmatpush1.bf16.msra.mxu0 0
        %561 = vmatprep.subr.bf16.mxu0 0
        %562 = vmatpush1.bf16.msra.mxu0 0
        %563 = vmatprep.subr.bf16.mxu0 0
        %564 = vmatpush1.bf16.msra.mxu0 0
        %565 = vmatprep.subr.bf16.mxu0 0
        %566 = vmatpush1.bf16.msra.mxu0 0
        %567 = vmatprep.subr.bf16.mxu0 0
        %568 = vmatpush1.bf16.msra.mxu0 0
        %569 = vmatprep.mubr.bf16.mxu0 0
        %570 = vmatmul.mubr.bf16.gmra.mrb[0].mxu0 %v532
        %v571 = vpop.f32.mrb[0].mxu0
        %v572 = vadd.f32 0.0, %v571
        %v573 = vpop.f32.mrb[0].mxu0
        %v574 = vpop.f32.mrb[0].mxu0
        %v575 = vpop.f32.mrb[0].mxu0
        %576 = vdwg.mxu0
        %578 = vrot.lane.b32.xlu0 %v572, 8
        %v579 = vpop.permute.xlu0 %578
        %vm581 = vcmask 130112
        %582 = vst.msk [vmem:[%s340] sm:$0xff] %vm581, %v579
        %583 = vrot.lane.b32.xlu0 %v343, 112
        %v584 = vpop.permute.xlu0 %583
        %585 = vrot.lane.b32.xlu0 %v345, 112
        %v586 = vpop.permute.xlu0 %585
        %v588 = vsel %vm351, %v584, 0
        %v591 = vsel %vm351, %v586, 0
        %593 = vmatprep.subr.bf16.mxu0 0
        %594 = vmatpush1.bf16.xpose.msra.mxu0 %v591
        %595 = vmatprep.subr.bf16.mxu0 0
        %596 = vmatpush1.bf16.xpose.msra.mxu0 0
        %597 = vmatprep.subr.bf16.mxu0 0
        %598 = vmatpush1.bf16.xpose.msra.mxu0 0
        %599 = vmatprep.subr.bf16.mxu0 0
        %600 = vmatpush1.bf16.xpose.msra.mxu0 0
        %601 = vmatprep.subr.bf16.mxu0 0
        %602 = vmatpush1.bf16.xpose.msra.mxu0 0
        %603 = vmatprep.subr.bf16.mxu0 0
        %604 = vmatpush1.bf16.xpose.msra.mxu0 0
        %605 = vmatprep.subr.bf16.mxu0 0
        %606 = vmatpush1.bf16.xpose.msra.mxu0 0
        %607 = vmatprep.subr.bf16.mxu0 0
        %608 = vmatpush1.bf16.xpose.msra.mxu0 0
        %609 = vmatprep.subr.bf16.mxu0 0
        %610 = vmatpush1.bf16.xpose.msra.mxu0 0
        %611 = vmatprep.subr.bf16.mxu0 0
        %612 = vmatpush1.bf16.xpose.msra.mxu0 0
        %613 = vmatprep.subr.bf16.mxu0 0
        %614 = vmatpush1.bf16.xpose.msra.mxu0 0
        %615 = vmatprep.subr.bf16.mxu0 0
        %616 = vmatpush1.bf16.xpose.msra.mxu0 0
        %617 = vmatprep.subr.bf16.mxu0 0
        %618 = vmatpush1.bf16.xpose.msra.mxu0 0
        %619 = vmatprep.subr.bf16.mxu0 0
        %620 = vmatpush1.bf16.xpose.msra.mxu0 0
        %621 = vmatprep.subr.bf16.mxu0 0
        %622 = vmatpush1.bf16.xpose.msra.mxu0 0
        %623 = vmatprep.subr.bf16.mxu0 0
        %624 = vmatpush1.bf16.xpose.msra.mxu0 0
        %625 = vmatprep.mubr.bf16.mxu0 0
        %626 = vmatmul.mubr.bf16.gmra.mrb[0].mxu0 %v588
        %v627 = vpop.f32.mrb[0].mxu0
        %v628 = vadd.f32 0.0, %v627
        %v629 = vpop.f32.mrb[0].mxu0
        %v630 = vpop.f32.mrb[0].mxu0
        %v631 = vpop.f32.mrb[0].mxu0
        %632 = vdwg.mxu0
        %v633 = vmul.f32 %v628, 0.35355338
        %v634 = vadd.f32 %v633, %v350
        %v635 = vsel %vm351, %v634, -inf
        %636 = vmax.xlane.f32.xlu0 %v635
        %v637 = vpop.xlane.xlu0 %636
        %v638 = vsub.f32 %v634, %v637
        %v639 = vmul.f32 %v638, 1.442695
        %v640 = vpow.pop %v639
        %v641 = vsel %vm351, %v640, 0.0
        %642 = vadd.xlane.f32.xlu0 %v641
        %v643 = vpop.xlane.xlu0 %642
        %v644 = vrcp.pop %v643
        %v645 = vmul.f32 %v640, %v644
        %v646 = vpack.c.bf16 %v645, %v645
        %647 = vrot.lane.b32.xlu0 %v347, 80
        %v648 = vpop.permute.xlu0 %647
        %v650 = vsel %vm351, %v646, 0
        %v653 = vsel %vm418, %v648, 0
        %655 = vmatprep.subr.bf16.mxu0 0
        %656 = vmatpush1.bf16.msra.mxu0 %v653
        %657 = vmatprep.subr.bf16.mxu0 0
        %658 = vmatpush1.bf16.msra.mxu0 0
        %659 = vmatprep.subr.bf16.mxu0 0
        %660 = vmatpush1.bf16.msra.mxu0 0
        %661 = vmatprep.subr.bf16.mxu0 0
        %662 = vmatpush1.bf16.msra.mxu0 0
        %663 = vmatprep.subr.bf16.mxu0 0
        %664 = vmatpush1.bf16.msra.mxu0 0
        %665 = vmatprep.subr.bf16.mxu0 0
        %666 = vmatpush1.bf16.msra.mxu0 0
        %667 = vmatprep.subr.bf16.mxu0 0
        %668 = vmatpush1.bf16.msra.mxu0 0
        %669 = vmatprep.subr.bf16.mxu0 0
        %670 = vmatpush1.bf16.msra.mxu0 0
        %671 = vmatprep.subr.bf16.mxu0 0
        %672 = vmatpush1.bf16.msra.mxu0 0
        %673 = vmatprep.subr.bf16.mxu0 0
        %674 = vmatpush1.bf16.msra.mxu0 0
        %675 = vmatprep.subr.bf16.mxu0 0
        %676 = vmatpush1.bf16.msra.mxu0 0
        %677 = vmatprep.subr.bf16.mxu0 0
        %678 = vmatpush1.bf16.msra.mxu0 0
        %679 = vmatprep.subr.bf16.mxu0 0
        %680 = vmatpush1.bf16.msra.mxu0 0
        %681 = vmatprep.subr.bf16.mxu0 0
        %682 = vmatpush1.bf16.msra.mxu0 0
        %683 = vmatprep.subr.bf16.mxu0 0
        %684 = vmatpush1.bf16.msra.mxu0 0
        %685 = vmatprep.subr.bf16.mxu0 0
        %686 = vmatpush1.bf16.msra.mxu0 0
        %687 = vmatprep.mubr.bf16.mxu0 0
        %688 = vmatmul.mubr.bf16.gmra.mrb[0].mxu0 %v650
        %v689 = vpop.f32.mrb[0].mxu0
        %v690 = vadd.f32 0.0, %v689
        %v691 = vpop.f32.mrb[0].mxu0
        %v692 = vpop.f32.mrb[0].mxu0
        %v693 = vpop.f32.mrb[0].mxu0
        %694 = vdwg.mxu0
        %696 = vrot.lane.b32.xlu0 %v690, 16
        %v697 = vpop.permute.xlu0 %696
        %vm699 = vcmask 195712
        %700 = vst.msk [vmem:[%s340] sm:$0xff] %vm699, %v697
        %701 = vrot.lane.b32.xlu0 %v343, 104
        %v702 = vpop.permute.xlu0 %701
        %703 = vrot.lane.b32.xlu0 %v345, 104
        %v704 = vpop.permute.xlu0 %703
        %v706 = vsel %vm351, %v702, 0
        %v709 = vsel %vm351, %v704, 0
        %711 = vmatprep.subr.bf16.mxu0 0
        %712 = vmatpush1.bf16.xpose.msra.mxu0 %v709
        %713 = vmatprep.subr.bf16.mxu0 0
        %714 = vmatpush1.bf16.xpose.msra.mxu0 0
        %715 = vmatprep.subr.bf16.mxu0 0
        %716 = vmatpush1.bf16.xpose.msra.mxu0 0
        %717 = vmatprep.subr.bf16.mxu0 0
        %718 = vmatpush1.bf16.xpose.msra.mxu0 0
        %719 = vmatprep.subr.bf16.mxu0 0
        %720 = vmatpush1.bf16.xpose.msra.mxu0 0
        %721 = vmatprep.subr.bf16.mxu0 0
        %722 = vmatpush1.bf16.xpose.msra.mxu0 0
        %723 = vmatprep.subr.bf16.mxu0 0
        %724 = vmatpush1.bf16.xpose.msra.mxu0 0
        %725 = vmatprep.subr.bf16.mxu0 0
        %726 = vmatpush1.bf16.xpose.msra.mxu0 0
        %727 = vmatprep.subr.bf16.mxu0 0
        %728 = vmatpush1.bf16.xpose.msra.mxu0 0
        %729 = vmatprep.subr.bf16.mxu0 0
        %730 = vmatpush1.bf16.xpose.msra.mxu0 0
        %731 = vmatprep.subr.bf16.mxu0 0
        %732 = vmatpush1.bf16.xpose.msra.mxu0 0
        %733 = vmatprep.subr.bf16.mxu0 0
        %734 = vmatpush1.bf16.xpose.msra.mxu0 0
        %735 = vmatprep.subr.bf16.mxu0 0
        %736 = vmatpush1.bf16.xpose.msra.mxu0 0
        %737 = vmatprep.subr.bf16.mxu0 0
        %738 = vmatpush1.bf16.xpose.msra.mxu0 0
        %739 = vmatprep.subr.bf16.mxu0 0
        %740 = vmatpush1.bf16.xpose.msra.mxu0 0
        %741 = vmatprep.subr.bf16.mxu0 0
        %742 = vmatpush1.bf16.xpose.msra.mxu0 0
        %743 = vmatprep.mubr.bf16.mxu0 0
        %744 = vmatmul.mubr.bf16.gmra.mrb[0].mxu0 %v706
        %v745 = vpop.f32.mrb[0].mxu0
        %v746 = vadd.f32 0.0, %v745
        %v747 = vpop.f32.mrb[0].mxu0
        %v748 = vpop.f32.mrb[0].mxu0
        %v749 = vpop.f32.mrb[0].mxu0
        %750 = vdwg.mxu0
        %v751 = vmul.f32 %v746, 0.35355338
        %v752 = vadd.f32 %v751, %v350
        %v753 = vsel %vm351, %v752, -inf
        %754 = vmax.xlane.f32.xlu0 %v753
        %v755 = vpop.xlane.xlu0 %754
        %v756 = vsub.f32 %v752, %v755
        %v757 = vmul.f32 %v756, 1.442695
        %v758 = vpow.pop %v757
        %v759 = vsel %vm351, %v758, 0.0
        %760 = vadd.xlane.f32.xlu0 %v759
        %v761 = vpop.xlane.xlu0 %760
        %v762 = vrcp.pop %v761
        %v763 = vmul.f32 %v758, %v762
        %v764 = vpack.c.bf16 %v763, %v763
        %765 = vrot.lane.b32.xlu0 %v347, 72
        %v766 = vpop.permute.xlu0 %765
        %v768 = vsel %vm351, %v764, 0
        %v771 = vsel %vm418, %v766, 0
        %773 = vmatprep.subr.bf16.mxu0 0
        %774 = vmatpush1.bf16.msra.mxu0 %v771
        %775 = vmatprep.subr.bf16.mxu0 0
        %776 = vmatpush1.bf16.msra.mxu0 0
        %777 = vmatprep.subr.bf16.mxu0 0
        %778 = vmatpush1.bf16.msra.mxu0 0
        %779 = vmatprep.subr.bf16.mxu0 0
        %780 = vmatpush1.bf16.msra.mxu0 0
        %781 = vmatprep.subr.bf16.mxu0 0
        %782 = vmatpush1.bf16.msra.mxu0 0
        %783 = vmatprep.subr.bf16.mxu0 0
        %784 = vmatpush1.bf16.msra.mxu0 0
        %785 = vmatprep.subr.bf16.mxu0 0
        %786 = vmatpush1.bf16.msra.mxu0 0
        %787 = vmatprep.subr.bf16.mxu0 0
        %788 = vmatpush1.bf16.msra.mxu0 0
        %789 = vmatprep.subr.bf16.mxu0 0
        %790 = vmatpush1.bf16.msra.mxu0 0
        %791 = vmatprep.subr.bf16.mxu0 0
        %792 = vmatpush1.bf16.msra.mxu0 0
        %793 = vmatprep.subr.bf16.mxu0 0
        %794 = vmatpush1.bf16.msra.mxu0 0
        %795 = vmatprep.subr.bf16.mxu0 0
        %796 = vmatpush1.bf16.msra.mxu0 0
        %797 = vmatprep.subr.bf16.mxu0 0
        %798 = vmatpush1.bf16.msra.mxu0 0
        %799 = vmatprep.subr.bf16.mxu0 0
        %800 = vmatpush1.bf16.msra.mxu0 0
        %801 = vmatprep.subr.bf16.mxu0 0
        %802 = vmatpush1.bf16.msra.mxu0 0
        %803 = vmatprep.subr.bf16.mxu0 0
        %804 = vmatpush1.bf16.msra.mxu0 0
        %805 = vmatprep.mubr.bf16.mxu0 0
        %806 = vmatmul.mubr.bf16.gmra.mrb[0].mxu0 %v768
        %v807 = vpop.f32.mrb[0].mxu0
        %v808 = vadd.f32 0.0, %v807
        %v809 = vpop.f32.mrb[0].mxu0
        %v810 = vpop.f32.mrb[0].mxu0
        %v811 = vpop.f32.mrb[0].mxu0
        %812 = vdwg.mxu0
        %814 = vrot.lane.b32.xlu0 %v808, 24
        %v815 = vpop.permute.xlu0 %814
        %vm817 = vcmask 261312
        %818 = vst.msk [vmem:[%s340] sm:$0xff] %vm817, %v815
        %s819 = sand.u32 %s157, 1
        %s820 = scalar_lea.sflag [#allocation4], %s819
        %s821 = sand.u32 %s157, 1
        %s822 = smul.addr %s821, 8
        %s823 = scalar_lea.vmem [#allocation10], %s822
        // Predicated region
        $region53: #{decoder_forward.24} parent=35 // pred_check
          %p824 = pneg %p167
        $region54: #{decoder_forward.24} parent=35 // pred_check_branch
          %826 = sbr.rel (%p824) target = $region56
        $region55: #{decoder_forward.24} parent=35 // pred_region
          %s828 = ssub.s32 128, 128
          %829 = vsyncadd %s820, %s828
          %s830 = sadd.s32 %s32, %s31
          %s831 = smul.addr %s830, 128
          %s832 = scalar_lea.hbm %s4, %s831
          %s834 = sshll.u32 %s823, 4
          %s835 = int_to_ptr.vmem [resolvable:$true] %s834
          %837 = dma.vmem_to_hbm [thread:$0]  %s835, 128, %s832, %s820
        $region56: #{decoder_forward.24} parent=35 // pred_fallthru
          _
      $region36: #{decoder_forward.24} parent=5 // pred_fallthru
        _
      %p838 = scmp.le.s32.totalorder 2, %s22
      // Predicated region
      $region57: #{decoder_forward.24} parent=5 // pred_check
        %p839 = pneg %p838
      $region58: #{decoder_forward.24} parent=5 // pred_check_branch
        %841 = sbr.rel (%p839) target = $region60
      $region59: #{decoder_forward.24} parent=5 // pred_region
        %s842 = ssub.s32 %s22, 2
        // Predicated region
        $region61: #{decoder_forward.24} parent=59 // pred_check
          %p843 = pneg %p173
        $region62: #{decoder_forward.24} parent=59 // pred_check_branch
          %845 = sbr.rel (%p843) target = $region64
        $region63: #{decoder_forward.24} parent=59 // pred_region
          %s846 = sand.u32 %s158, 1
          %s847 = scalar_lea.sflag [#allocation4], %s846
          %s848 = sand.u32 %s158, 1
          %s849 = smul.addr %s848, 8
          %s850 = scalar_lea.vmem [#allocation10], %s849
          %851 = dma.done %s847, 128
        $region64: #{decoder_forward.24} parent=59 // pred_fallthru
          _
      $region60: #{decoder_forward.24} parent=5 // pred_fallthru
        _
    $region6: #{decoder_forward.24} parent=1 // loop_footer
      %s26 = sadd.s32 1, %s22
    $region7: #{decoder_forward.24} parent=1 // loop_footer_branch
      %21 = sbr.rel target = $region3
    $region8: #{decoder_forward.24} parent=1 // loop_exit
      _
    %852 = vsyncpa [#allocation3], 1
    %s853 = scalar_lea.sflag [#allocation3], 1
    %854 = vsyncpa %s853, 1
    %855 = vsyncpa [#allocation6], 1
    %s856 = scalar_lea.sflag [#allocation6], 1
    %857 = vsyncpa %s856, 1
    %858 = vsyncpa [#allocation9], 1
    %s859 = scalar_lea.sflag [#allocation9], 1
    %860 = vsyncpa %s859, 1
    %861 = vsyncpa [#allocation4], 1
    %s862 = scalar_lea.sflag [#allocation4], 1
    %863 = vsyncpa %s862, 1

// kernel: decoder_forward.37
$region0: #{decoder_forward.37}
  #allocation0 [shape = 'u32[]', space=smem, size = 0x4, offset = 0x4, fixed_abs, tag = 'smem constant byte address 0x4 - core index']
  #allocation1 [shape = 'u32[144,128]{1,0:T(1,128)}', space=vmem, size = 0x12000, scoped, tag = 'internal scratch']
  %s0 = inlined_call_operand.hbm [shape: f32[16,32], index: 0, kind: input, shape index: {}]
  %s1 = inlined_call_operand.hbm [shape: f32[1,32], index: 1, kind: input, shape index: {}]
  %s2 = inlined_call_operand.hbm [shape: f32[1,32], index: 2, kind: input, shape index: {}]
  %s3 = inlined_call_operand.hbm [shape: f32[16,32], index: 3, kind: output, shape index: {}]
  %s4 = sld [smem:[#allocation0]]
  $region34: #{decoder_forward.37} parent=0
    _
  %s6 = ssub.s32 1, %s4
  %s7 = scalar_select 0, %s6, %s4
  $region1: #{decoder_forward.37} parent=0
    #allocation2 [shape = 'u8[8192]{0}', space=vmem, size = 0x2000, scoped, tag = 'input window, operand 0, single buffered']
    #allocation3 [shape = 's32[1]{0}', space=sflag, size = 0x4, scoped, tag = 'scoped memory for decoder_forward.37']
    #allocation4 [shape = 's32[1]{0}', space=sflag, size = 0x4, scoped, tag = 'scoped memory for decoder_forward.37']
    #allocation5 [shape = 'u8[512]{0}', space=vmem, size = 0x400, scoped, tag = 'input window, operand 1, single buffered']
    #allocation6 [shape = 's32[1]{0}', space=sflag, size = 0x4, scoped, tag = 'scoped memory for decoder_forward.37']
    #allocation7 [shape = 'u8[512]{0}', space=vmem, size = 0x400, scoped, tag = 'input window, operand 2, single buffered']
    #allocation8 [shape = 'u8[8192]{0}', space=vmem, size = 0x2000, scoped, tag = 'output window, operand 0, single buffered']
    %8 = vsyncpa [#allocation3], 0
    %9 = vsyncpa [#allocation6], 0
    %10 = vsyncpa [#allocation4], 0
    // Predicated region
    $region2: #{decoder_forward.37} parent=1 // pred_check
      _
    $region3: #{decoder_forward.37} parent=1 // pred_check_branch
      %12 = sbr.rel (0) target = $region5
    $region4: #{decoder_forward.37} parent=1 // pred_region
      %s14 = ssub.s32 256, 256
      %15 = vsyncadd [#allocation3], %s14
      %s16 = sshll.u32 [#allocation2], 4
      %s17 = int_to_ptr.vmem [resolvable:$true] %s16
      %22 = dma.hbm_to_vmem [thread:$0]  %s0, 256, %s17, [#allocation3], 128, 128, 8
    $region5: #{decoder_forward.37} parent=1 // pred_fallthru
      _
    // Predicated region
    $region6: #{decoder_forward.37} parent=1 // pred_check
      _
    $region7: #{decoder_forward.37} parent=1 // pred_check_branch
      %24 = sbr.rel (0) target = $region9
    $region8: #{decoder_forward.37} parent=1 // pred_region
      %s26 = ssub.s32 16, 16
      %27 = vsyncadd [#allocation6], %s26
      %s29 = sshll.u32 [#allocation5], 4
      %s30 = int_to_ptr.vmem [resolvable:$true] %s29
      %32 = dma.hbm_to_vmem [thread:$0]  %s1, 16, %s30, [#allocation6]
    $region9: #{decoder_forward.37} parent=1 // pred_fallthru
      _
    // Predicated region
    $region10: #{decoder_forward.37} parent=1 // pred_check
      _
    $region11: #{decoder_forward.37} parent=1 // pred_check_branch
      %34 = sbr.rel (0) target = $region13
    $region12: #{decoder_forward.37} parent=1 // pred_region
      %s36 = ssub.s32 16, 16
      %37 = vsyncadd [#allocation6], %s36
      %s39 = sshll.u32 [#allocation7], 4
      %s40 = int_to_ptr.vmem [resolvable:$true] %s39
      %42 = dma.hbm_to_vmem [thread:$0]  %s2, 16, %s40, [#allocation6]
    $region13: #{decoder_forward.37} parent=1 // pred_fallthru
      _
    // Predicated region
    $region14: #{decoder_forward.37} parent=1 // pred_check
      _
    $region15: #{decoder_forward.37} parent=1 // pred_check_branch
      %44 = sbr.rel (0) target = $region17
    $region16: #{decoder_forward.37} parent=1 // pred_region
      %45 = dma.done [#allocation3], 256
    $region17: #{decoder_forward.37} parent=1 // pred_fallthru
      _
    // Predicated region
    $region18: #{decoder_forward.37} parent=1 // pred_check
      _
    $region19: #{decoder_forward.37} parent=1 // pred_check_branch
      %47 = sbr.rel (0) target = $region21
    $region20: #{decoder_forward.37} parent=1 // pred_region
      %48 = dma.done [#allocation6], 16
    $region21: #{decoder_forward.37} parent=1 // pred_fallthru
      _
    // Predicated region
    $region22: #{decoder_forward.37} parent=1 // pred_check
      _
    $region23: #{decoder_forward.37} parent=1 // pred_check_branch
      %50 = sbr.rel (0) target = $region25
    $region24: #{decoder_forward.37} parent=1 // pred_region
      %51 = dma.done [#allocation6], 16
    $region25: #{decoder_forward.37} parent=1 // pred_fallthru
      _
    %v52 = vld [vmem:[#allocation2] sm:$0xff]
    %v53 = vld [vmem:[#allocation2 + $0x8] sm:$0xff]
    %vm54 = vcmask 261120
    %v55 = vsel %vm54, %v52, 0.0
    %56 = vadd.xlane.f32.xlu0 %v55
    %v57 = vpop.xlane.xlu0 %56
    %v58 = vsel %vm54, %v53, 0.0
    %59 = vadd.xlane.f32.xlu0 %v58
    %v60 = vpop.xlane.xlu0 %59
    %v61 = vrcp.pop 32.0
    %v62 = vmul.f32 %v57, %v61
    %v63 = vmul.f32 %v60, %v61
    %v64 = vsub.f32 %v52, %v62
    %v65 = vsub.f32 %v53, %v63
    %v66 = vmul.f32 %v64, %v64
    %v67 = vmul.f32 %v65, %v65
    %v68 = vsel %vm54, %v66, 0.0
    %69 = vadd.xlane.f32.xlu0 %v68
    %v70 = vpop.xlane.xlu0 %69
    %v71 = vsel %vm54, %v67, 0.0
    %72 = vadd.xlane.f32.xlu0 %v71
    %v73 = vpop.xlane.xlu0 %72
    %v74 = vmul.f32 %v70, %v61
    %v75 = vmul.f32 %v73, %v61
    %v76 = vadd.f32 %v74, 1e-06
    %v77 = vadd.f32 %v75, 1e-06
    %v78 = vrsqrt.pop %v76
    %v79 = vrsqrt.pop %v77
    %v80 = vmul.f32 %v64, %v78
    %v81 = vmul.f32 %v65, %v79
    %v82 = vld [vmem:[#allocation5] sm:$0x1]
    %v84 = vlaneseq
    %v85 = vshrl.u32 %v84, 7
    %v86 = vsub.s32 0, %v85
    %v87 = vrot.slane %v82, %v86
    %v89 = vmul.f32 %v80, %v87
    %v90 = vmul.f32 %v81, %v87
    %v91 = vld [vmem:[#allocation7] sm:$0x1]
    %v93 = vlaneseq
    %v94 = vshrl.u32 %v93, 7
    %v95 = vsub.s32 0, %v94
    %v96 = vrot.slane %v91, %v95
    %v98 = vadd.f32 %v89, %v96
    %v99 = vadd.f32 %v90, %v96
    %100 = vst.msk [vmem:[#allocation8] sm:$0xff] %vm54, %v98
    %101 = vst.msk [vmem:[#allocation8 + $0x8] sm:$0xff] %vm54, %v99
    // Predicated region
    $region26: #{decoder_forward.37} parent=1 // pred_check
      _
    $region27: #{decoder_forward.37} parent=1 // pred_check_branch
      %103 = sbr.rel (0) target = $region29
    $region28: #{decoder_forward.37} parent=1 // pred_region
      %s105 = ssub.s32 256, 256
      %106 = vsyncadd [#allocation4], %s105
      %s107 = sshll.u32 [#allocation8], 4
      %s108 = int_to_ptr.vmem [resolvable:$true] %s107
      %113 = dma.vmem_to_hbm [thread:$0]  %s108, 256, %s3, [#allocation4], 128, 128, 8
    $region29: #{decoder_forward.37} parent=1 // pred_fallthru
      _
    // Predicated region
    $region30: #{decoder_forward.37} parent=1 // pred_check
      _
    $region31: #{decoder_forward.37} parent=1 // pred_check_branch
      %115 = sbr.rel (0) target = $region33
    $region32: #{decoder_forward.37} parent=1 // pred_region
      %116 = dma.done [#allocation4], 256
    $region33: #{decoder_forward.37} parent=1 // pred_fallthru
      _
    %117 = vsyncpa [#allocation3], 1
    %118 = vsyncpa [#allocation6], 1
    %119 = vsyncpa [#allocation4], 1

</llo_original>
